<compile_context>
chip_gen: v5e
topology: v5e:2x2
jax: 0.10.0
libtpu: 0.0.40
codegen_flags: <defaults>
</compile_context>

<pallas_src>
import functools

import jax
import jax.numpy as jnp
from jax import lax
from jax.experimental import pallas as pl
from jax.experimental.pallas import tpu as pltpu


MATMUL_DTYPE = jnp.bfloat16   # MXU operand dtype; accumulation stays float32.


# --------------------------------------------------------------------------- #
# In-kernel helpers (complex math carried as (real, imag) float32 pairs)
# --------------------------------------------------------------------------- #
def _complex_mul(ar, ai, br, bi):
    return ar * br - ai * bi, ar * bi + ai * br


def _complex_normalize(zr, zi):
    # tanh(|z|) * (cos(angle z) + i sin(angle z)), safe at z == 0.
    mag2 = zr * zr + zi * zi
    is_zero = mag2 < 1e-18                        # |z| < 1e-9
    inv_rho = lax.rsqrt(jnp.where(is_zero, 1.0, mag2))
    rho = mag2 * inv_rho                          # == |z| (≈0 when is_zero)
    ph_r = jnp.where(is_zero, 1.0, zr * inv_rho)
    ph_i = jnp.where(is_zero, 0.0, zi * inv_rho)
    t = jnp.tanh(rho)
    return t * ph_r, t * ph_i


def _complex_tanh(zr, zi):
    # tanh(x+iy) = (sinh 2x + i sin 2y) / (cosh 2x + cos 2y), overflow-safe via
    # a single exp(-2|x|).  Exact division (denominator precision near poles).
    a = 2.0 * zr
    b = 2.0 * zi
    ea = jnp.exp(-jnp.abs(a))                     # in (0, 1] — never overflows
    ea2 = ea * ea
    sgn = jnp.where(a >= 0.0, 1.0, -1.0)
    num_r = sgn * (1.0 - ea2)                     # 2*ea*sinh(a)
    num_i = 2.0 * ea * jnp.sin(b)
    den = (1.0 + ea2) + 2.0 * ea * jnp.cos(b)     # 2*ea*(cosh(a)+cos(b))
    inv_den = 1.0 / den
    return num_r * inv_den, num_i * inv_den


def _layernorm_per_sample(x, gamma, beta, seg, inv_n, eps=1e-5):
    """Per-sample LayerNorm over a lane-packed (C, L=Bb*N) slab.

    seg[m, n] = 1 iff lanes m and n belong to the same sample (block-diagonal
    ones).  mean/var are exact f32 (HIGHEST matmul precision), biased variance,
    matching torch.nn.LayerNorm([C, H, W]).
    """
    dot_f32 = functools.partial(jnp.dot, precision=lax.Precision.HIGHEST,
                                preferred_element_type=jnp.float32)
    colsum = jnp.sum(x, axis=0, keepdims=True)            # (1, L)
    mean_l = dot_f32(colsum, seg) * inv_n                  # (1, L) per-sample mean
    d = x - mean_l
    sqsum = jnp.sum(d * d, axis=0, keepdims=True)          # (1, L)
    var_l = dot_f32(sqsum, seg) * inv_n                    # (1, L) per-sample var
    return d * lax.rsqrt(var_l + eps) * gamma + beta


# --------------------------------------------------------------------------- #
# Fused per-block kernel (Bb samples per grid step, tokens lane-packed)
# --------------------------------------------------------------------------- #
def _rg_aeg_fused_kernel(patch_ref, wconv_ref, bconv_ref,
                         lnc_w_ref, lnc_b_ref,
                         wqkv_ref, wo_ref, maskb_ref, seg_ref,
                         lnr_w_ref, lnr_b_ref, lni_w_ref, lni_b_ref,
                         aeg_ref,
                         out_r_ref, out_i_ref,
                         *, out_channels, num_heads, tokens_per_sample,
                         use_attention):
    f32 = jnp.float32
    c_att = 2 * out_channels
    dh = c_att // num_heads
    patches = patch_ref[0]                                 # (K, L)
    seg = seg_ref[...]                                     # (L, L) same-sample sel
    inv_full = 1.0 / float(c_att * tokens_per_sample)
    inv_half = 1.0 / float(out_channels * tokens_per_sample)

    # ---- conv as im2col matmul: channel-major, lane-dense over tokens -------
    x_cm = jnp.dot(wconv_ref[...].astype(MATMUL_DTYPE),
                   patches.astype(MATMUL_DTYPE),
                   preferred_element_type=f32) + bconv_ref[...]    # (C_att, L)
    L = x_cm.shape[-1]

    if use_attention:
        # Per-sample LayerNorm over [C, H, W].
        xn = _layernorm_per_sample(x_cm, lnc_w_ref[...], lnc_b_ref[...],
                                   seg, inv_full)
        xb = xn.astype(MATMUL_DTYPE)

        # Fused QKV: single (3*C_att, C_att) x (C_att, L) matmul; q rows are
        # pre-scaled by head_dim**-0.5 in the wrapper.
        qkv = jnp.dot(wqkv_ref[...].astype(MATMUL_DTYPE), xb,
                      preferred_element_type=f32)                  # (3C, L)
        q3 = qkv[0 * c_att:1 * c_att].reshape(num_heads, dh, L)    # sublane split
        k3 = qkv[1 * c_att:2 * c_att].reshape(num_heads, dh, L)
        v3 = qkv[2 * c_att:3 * c_att].reshape(num_heads, dh, L)

        # Head-batched scores, contracting d in place (no swapaxes).
        s = jnp.einsum("hdn,hdm->hnm", q3.astype(MATMUL_DTYPE),
                       k3.astype(MATMUL_DTYPE),
                       preferred_element_type=f32)                 # (H, L, L)
        # Block-diag spatial mask + (-1e9) cross-sample bias; stable softmax.
        s = s + maskb_ref[...]
        s = s - jnp.max(s, axis=-1, keepdims=True)
        e = jnp.exp(s)
        inv_den = pl.reciprocal(jnp.sum(e, axis=-1, keepdims=True), approx=True)
        probs = (e * inv_den).astype(MATMUL_DTYPE)

        # Context kept feature-major; one output-projection matmul (head sum
        # implicit in the C_att = H*dh contraction).
        ctx = jnp.einsum("hdm,hnm->hdn", v3.astype(MATMUL_DTYPE), probs,
                         preferred_element_type=f32)               # (H, dh, L)
        ctx2 = ctx.reshape(c_att, L).astype(MATMUL_DTYPE)
        attn = jnp.dot(wo_ref[...].astype(MATMUL_DTYPE), ctx2,
                       preferred_element_type=f32)                 # (C_att, L)
        x_res = x_cm + attn                     # residual uses raw conv output
    else:
        x_res = x_cm

    # ---- split re/im channel halves, per-sample LayerNorm each --------------
    xr = _layernorm_per_sample(x_res[:out_channels], lnr_w_ref[...],
                               lnr_b_ref[...], seg, inv_half)
    xi = _layernorm_per_sample(x_res[out_channels:], lni_w_ref[...],
                               lni_b_ref[...], seg, inv_half)

    # ---- OptAEGV3 complex flow (scalar params from SMEM) ---------------------
    vx_r, vx_i = aeg_ref[0], aeg_ref[1]
    vy_r, vy_i = aeg_ref[2], aeg_ref[3]
    wx_r, wx_i = aeg_ref[4], aeg_ref[5]
    wy_r, wy_i = aeg_ref[6], aeg_ref[7]
    af_r, af_i = aeg_ref[8], aeg_ref[9]
    mf_r, mf_i = aeg_ref[10], aeg_ref[11]

    dn_r, dn_i = _complex_normalize(xr, xi)                  # data_norm
    v_r, v_i = _complex_mul(dn_r, dn_i, 1.0 + vy_r, vy_i)    # flow(vx, vy, .)
    v_r, v_i = v_r + vx_r, v_i + vx_i
    w_r, w_i = _complex_mul(dn_r, dn_i, 1.0 + wy_r, wy_i)    # flow(wx, wy, .)
    w_r, w_i = w_r + wx_r, w_i + wx_i
    tw_r, tw_i = _complex_tanh(w_r, w_i)
    p_r, p_i = _complex_mul(v_r, v_i, tw_r, tw_i)            # v * tanh(w)
    dx_r, dx_i = _complex_mul(p_r, p_i, af_r, af_i)          # afactor * (...)
    td_r, td_i = _complex_tanh(dn_r, dn_i)
    dy_r, dy_i = _complex_mul(td_r, td_i, mf_r, mf_i)        # mfactor * tanh(.)
    fl_r, fl_i = _complex_mul(dn_r, dn_i, 1.0 + dy_r, dy_i)  # flow(dx, dy, .)
    fl_r, fl_i = fl_r + dx_r, fl_i + dx_i
    o_r, o_i = _complex_normalize(fl_r, fl_i)

    out_r_ref[0] = o_r
    out_i_ref[0] = o_i


# --------------------------------------------------------------------------- #
# Wrapper
# --------------------------------------------------------------------------- #
def _pick_sample_block(batch, tokens):
    """Bb so lanes = Bb*N >= 128 where possible, grid >= 2 kept when possible,
    lanes capped at 512 (AEG-chain vreg pressure)."""
    best, best_key = 1, None
    for bb in range(1, batch + 1):
        if batch % bb != 0:
            continue
        lanes = bb * tokens
        if lanes > 512:
            continue
        key = (lanes >= 128, (batch // bb) >= 2, -abs(lanes - 128))
        if best_key is None or key > best_key:
            best_key, best = key, bb
    return best


def rg_aeg_block_forward(x, params, *, out_channels, stride=2, num_heads=2,
                         use_attention=True):
    B, Cin, H, W = x.shape
    k, pad = 4, 1
    Hc = (H - k + 2 * pad) // stride + 1
    Wc = (W - k + 2 * pad) // stride + 1
    N = Hc * Wc
    C_att = 2 * out_channels
    K = Cin * k * k
    dh = C_att // num_heads

    Bb = _pick_sample_block(B, N)          # samples per grid step
    G = B // Bb                            # grid length
    L = Bb * N                             # lane width per block

    # im2col patches in (G, K, L): K index = c*16 + kh*4 + kw,
    # lanes = [sample0 tokens | sample1 tokens | ...].
    xp = jnp.pad(x, ((0, 0), (0, 0), (pad, pad), (pad, pad)))
    slabs = []
    for kh in range(k):
        for kw in range(k):
            slabs.append(
                xp[:, :, kh:kh + stride * Hc:stride, kw:kw + stride * Wc:stride])
    patches = jnp.stack(slabs, axis=2).reshape(B, K, N)
    patches = patches.reshape(G, Bb, K, N).transpose(0, 2, 1, 3).reshape(G, K, L)

    # Weight / constant re-layouts (tiny, once per call in XLA).
    w_conv = params["conv_w"].reshape(C_att, K)
    b_conv = params["conv_b"].reshape(C_att, 1)
    tile_ln = lambda a, c: jnp.tile(a.reshape(c, N), (1, Bb))
    lnc_w = tile_ln(params["ln_conv_w"], C_att)
    lnc_b = tile_ln(params["ln_conv_b"], C_att)
    lnr_w = tile_ln(params["ln_re_w"], out_channels)
    lnr_b = tile_ln(params["ln_re_b"], out_channels)
    lni_w = tile_ln(params["ln_im_w"], out_channels)
    lni_b = tile_ln(params["ln_im_b"], out_channels)

    scale = float(dh) ** -0.5
    qkv_w = params["qkv_w"]                                   # (3C, C)
    wqkv = jnp.concatenate([qkv_w[:C_att] * scale, qkv_w[C_att:]], axis=0)
    wo = params["proj_w"]                                     # (C, C), cols = (h, d)

    # Block-diagonal additive mask bias and same-sample selector.
    blk = jnp.where(params["spatial_mask"] > 0, -1e9, 0.0).astype(jnp.float32)
    mask_big = jnp.full((L, L), -1e9, jnp.float32)
    seg = jnp.zeros((L, L), jnp.float32)
    for b in range(Bb):
        sl = slice(b * N, (b + 1) * N)
        mask_big = mask_big.at[sl, sl].set(blk)
        seg = seg.at[sl, sl].set(1.0)

    kernel = functools.partial(_rg_aeg_fused_kernel,
                               out_channels=out_channels,
                               num_heads=num_heads,
                               tokens_per_sample=N,
                               use_attention=use_attention)
    full2d = lambda g: (0, 0)

    # Advisory cost estimate for the XLA scheduler.
    mm_flops = 2 * L * (C_att * K + 3 * C_att * C_att + C_att * C_att)
    mm_flops += 2 * 2 * num_heads * dh * L * L          # scores + context
    mm_flops += 3 * 2 * 2 * L * L                       # per-sample LN stats
    ew_flops = 80 * C_att * L                           # softmax/LN/AEG (rough)
    transc = num_heads * L * L + 14 * out_channels * L + 3 * L
    weight_bytes = 4 * (w_conv.size + b_conv.size + wqkv.size + wo.size +
                        lnc_w.size + lnc_b.size + lnr_w.size + lnr_b.size +
                        lni_w.size + lni_b.size + mask_big.size + seg.size + 12)
    step_bytes = 4 * (K * L + 2 * out_channels * L) + weight_bytes
    cost = pl.CostEstimate(flops=int(G * (mm_flops + ew_flops)),
                           transcendentals=int(G * transc),
                           bytes_accessed=int(G * step_bytes))

    out_r, out_i = pl.pallas_call(
        kernel,
        out_shape=(jax.ShapeDtypeStruct((G, out_channels, L), jnp.float32),
                   jax.ShapeDtypeStruct((G, out_channels, L), jnp.float32)),
        grid=(G,),
        in_specs=[
            pl.BlockSpec((1, K, L), lambda g: (g, 0, 0)),          # patches
            pl.BlockSpec((C_att, K), full2d),                      # conv W
            pl.BlockSpec((C_att, 1), full2d),                      # conv bias
            pl.BlockSpec((C_att, L), full2d),                      # LN(conv) w
            pl.BlockSpec((C_att, L), full2d),                      # LN(conv) b
            pl.BlockSpec((3 * C_att, C_att), full2d),              # fused QKV W
            pl.BlockSpec((C_att, C_att), full2d),                  # proj W
            pl.BlockSpec((L, L), full2d),                          # mask bias
            pl.BlockSpec((L, L), full2d),                          # same-sample sel
            pl.BlockSpec((out_channels, L), full2d),               # LN(re) w
            pl.BlockSpec((out_channels, L), full2d),               # LN(re) b
            pl.BlockSpec((out_channels, L), full2d),               # LN(im) w
            pl.BlockSpec((out_channels, L), full2d),               # LN(im) b
            pl.BlockSpec(memory_space=pltpu.MemorySpace.SMEM),     # AEG scalars
        ],
        out_specs=(pl.BlockSpec((1, out_channels, L), lambda g: (g, 0, 0)),
                   pl.BlockSpec((1, out_channels, L), lambda g: (g, 0, 0))),
        compiler_params=pltpu.CompilerParams(
            dimension_semantics=("parallel",)),
        cost_estimate=cost,
    )(patches, w_conv, b_conv, lnc_w, lnc_b, wqkv, wo, mask_big, seg,
      lnr_w, lnr_b, lni_w, lni_b, params["aeg_params"])

    def to_nchw(o):
        return (o.reshape(G, out_channels, Bb, N)
                 .transpose(0, 2, 1, 3)
                 .reshape(B, out_channels, Hc, Wc))

    out_r = to_nchw(out_r)
    out_i = to_nchw(out_i)
    x_aeg = lax.complex(out_r, out_i)                        # complex64
    x_disentangled = jnp.concatenate([out_r, out_i], axis=1)
    return x_aeg, x_disentangled


# --------------------------------------------------------------------------- #
# Parameter init (deterministic)
# --------------------------------------------------------------------------- #
def init_params(key, in_channels, out_channels, H_in, W_in, stride, radius_sq):
    Hc = (H_in - 4 + 2) // stride + 1
    Wc = (W_in - 4 + 2) // stride + 1
    N = Hc * Wc
    C_att = out_channels * 2
    ks = jax.random.split(key, 12)
    p = {}
    p["conv_w"] = 0.1 * jax.random.normal(ks[0], (C_att, in_channels, 4, 4), jnp.float32)
    p["conv_b"] = 0.1 * jax.random.normal(ks[1], (C_att,), jnp.float32)
    p["ln_conv_w"] = 1.0 + 0.1 * jax.random.normal(ks[2], (C_att * N,), jnp.float32)
    p["ln_conv_b"] = 0.01 * jax.random.normal(ks[3], (C_att * N,), jnp.float32)
    p["qkv_w"] = 0.1 * jax.random.normal(ks[4], (3 * C_att, C_att), jnp.float32)
    p["proj_w"] = 0.1 * jax.random.normal(ks[5], (C_att, C_att), jnp.float32)
    p["ln_re_w"] = 1.0 + 0.1 * jax.random.normal(ks[6], (out_channels * N,), jnp.float32)
    p["ln_re_b"] = 0.01 * jax.random.normal(ks[7], (out_channels * N,), jnp.float32)
    p["ln_im_w"] = 1.0 + 0.1 * jax.random.normal(ks[8], (out_channels * N,), jnp.float32)
    p["ln_im_b"] = 0.01 * jax.random.normal(ks[9], (out_channels * N,), jnp.float32)
    # OptAEGV3 complex scalars as 12 reals:
    # [vx_r, vx_i, vy_r, vy_i, wx_r, wx_i, wy_r, wy_i, af_r, af_i, mf_r, mf_i]
    p["aeg_params"] = jax.random.uniform(ks[10], (12,), jnp.float32) / 100.0
    # Spatial mask (N, N): 1.0 where squared patch distance > radius^2.
    ii, jj = jnp.meshgrid(jnp.arange(Hc), jnp.arange(Wc), indexing="ij")
    coords = jnp.stack([ii.reshape(-1), jj.reshape(-1)], axis=-1).astype(jnp.float32)
    d2 = jnp.sum((coords[None, :, :] - coords[:, None, :]) ** 2, axis=-1)
    p["spatial_mask"] = (d2 > radius_sq).astype(jnp.float32)
    return p, (Hc, Wc)


if __name__ == "__main__":
    # B=4 so the sample-blocking path (Bb=2 -> 128 lanes) keeps 2 grid steps.
    B, in_channels, H_in, W_in = 4, 4, 16, 16
    out_channels, stride, num_heads, radius_sq = 8, 2, 2, 4.0

    key = jax.random.PRNGKey(0)
    key_p, key_x = jax.random.split(key)
    params, (Hc, Wc) = init_params(key_p, in_channels, out_channels,
                                   H_in, W_in, stride, radius_sq)
    x = jax.random.normal(key_x, (B, in_channels, H_in, W_in), jnp.float32)

    forward = jax.jit(functools.partial(
        rg_aeg_block_forward, out_channels=out_channels, stride=stride,
        num_heads=num_heads, use_attention=True))

    x_aeg, x_dis = forward(x, params)
    jax.block_until_ready(x_aeg)
    jax.block_until_ready(x_dis)

    assert x_aeg.shape == (B, out_channels, Hc, Wc) and x_aeg.dtype == jnp.complex64
    assert x_dis.shape == (B, 2 * out_channels, Hc, Wc)
    assert bool(jnp.all(jnp.isfinite(x_dis)))
    print("KERNEL_OK")
</pallas_src>

<mosaic_0001>
module attributes {stable_mosaic.version = 11 : i64} {
  func.func @_rg_aeg_fused_kernel(%arg0: i32, %arg1: memref<1x64x128xf32, #tpu.memory_space<vmem>>, %arg2: memref<16x64xf32, #tpu.memory_space<vmem>>, %arg3: memref<16x1xf32, #tpu.memory_space<vmem>>, %arg4: memref<16x128xf32, #tpu.memory_space<vmem>>, %arg5: memref<16x128xf32, #tpu.memory_space<vmem>>, %arg6: memref<48x16xf32, #tpu.memory_space<vmem>>, %arg7: memref<16x16xf32, #tpu.memory_space<vmem>>, %arg8: memref<128x128xf32, #tpu.memory_space<vmem>>, %arg9: memref<128x128xf32, #tpu.memory_space<vmem>>, %arg10: memref<8x128xf32, #tpu.memory_space<vmem>>, %arg11: memref<8x128xf32, #tpu.memory_space<vmem>>, %arg12: memref<8x128xf32, #tpu.memory_space<vmem>>, %arg13: memref<8x128xf32, #tpu.memory_space<vmem>>, %arg14: memref<12xf32, #tpu.memory_space<smem>>, %arg15: memref<1x8x128xf32, #tpu.memory_space<vmem>>, %arg16: memref<1x8x128xf32, #tpu.memory_space<vmem>>) attributes {dimension_semantics = [#tpu.dimension_semantics<parallel>], iteration_bounds = array<i64: 2>, scalar_prefetch = 0 : i64, scratch_operands = 0 : i64, tpu.core_type = #tpu.core_type<tc>, window_params = [{transform_indices = @transform_0, window_bounds = array<i64: 1, 64, 128>}, {pipeline_mode = #tpu.pipeline_mode<synchronous>, transform_indices = @transform_1, window_bounds = array<i64: 16, 64>}, {pipeline_mode = #tpu.pipeline_mode<synchronous>, transform_indices = @transform_2, window_bounds = array<i64: 16, 1>}, {pipeline_mode = #tpu.pipeline_mode<synchronous>, transform_indices = @transform_3, window_bounds = array<i64: 16, 128>}, {pipeline_mode = #tpu.pipeline_mode<synchronous>, transform_indices = @transform_4, window_bounds = array<i64: 16, 128>}, {pipeline_mode = #tpu.pipeline_mode<synchronous>, transform_indices = @transform_5, window_bounds = array<i64: 48, 16>}, {pipeline_mode = #tpu.pipeline_mode<synchronous>, transform_indices = @transform_6, window_bounds = array<i64: 16, 16>}, {pipeline_mode = #tpu.pipeline_mode<synchronous>, transform_indices = @transform_7, window_bounds = array<i64: 128, 128>}, {pipeline_mode = #tpu.pipeline_mode<synchronous>, transform_indices = @transform_8, window_bounds = array<i64: 128, 128>}, {pipeline_mode = #tpu.pipeline_mode<synchronous>, transform_indices = @transform_9, window_bounds = array<i64: 8, 128>}, {pipeline_mode = #tpu.pipeline_mode<synchronous>, transform_indices = @transform_10, window_bounds = array<i64: 8, 128>}, {pipeline_mode = #tpu.pipeline_mode<synchronous>, transform_indices = @transform_11, window_bounds = array<i64: 8, 128>}, {pipeline_mode = #tpu.pipeline_mode<synchronous>, transform_indices = @transform_12, window_bounds = array<i64: 8, 128>}, {transform_indices = @transform_13, window_bounds = array<i64: 12>}, {transform_indices = @transform_14, window_bounds = array<i64: 1, 8, 128>}, {transform_indices = @transform_15, window_bounds = array<i64: 1, 8, 128>}]} {
    %c0 = arith.constant 0 : index
    %c0_0 = arith.constant 0 : index
    %c0_1 = arith.constant 0 : index
    %0 = vector.load %arg1[%c0, %c0_0, %c0_1] : memref<1x64x128xf32, #tpu.memory_space<vmem>>, vector<1x64x128xf32>
    %1 = vector.shape_cast %0 : vector<1x64x128xf32> to vector<64x128xf32>
    %c0_2 = arith.constant 0 : index
    %c0_3 = arith.constant 0 : index
    %2 = vector.load %arg9[%c0_2, %c0_3] : memref<128x128xf32, #tpu.memory_space<vmem>>, vector<128x128xf32>
    %c0_4 = arith.constant 0 : index
    %c0_5 = arith.constant 0 : index
    %3 = vector.load %arg2[%c0_4, %c0_5] : memref<16x64xf32, #tpu.memory_space<vmem>>, vector<16x64xf32>
    %4 = arith.truncf %3 : vector<16x64xf32> to vector<16x64xbf16>
    %5 = arith.truncf %1 : vector<64x128xf32> to vector<64x128xbf16>
    %cst = arith.constant dense<0.000000e+00> : vector<16x128xf32>
    %6 = tpu.matmul %4, %5, %cst {dimension_numbers = #tpu.dot_dimension_numbers<[1], [0], [0], [1], [0, 0, 1, 1], [], []>} : vector<16x64xbf16>, vector<64x128xbf16>, vector<16x128xf32> -> vector<16x128xf32>
    %c0_6 = arith.constant 0 : index
    %c0_7 = arith.constant 0 : index
    %7 = vector.load %arg3[%c0_6, %c0_7] : memref<16x1xf32, #tpu.memory_space<vmem>>, vector<16x1xf32>
    %8 = vector.broadcast %7 : vector<16x1xf32> to vector<16x128xf32>
    %9 = arith.addf %6, %8 : vector<16x128xf32>
    %c0_8 = arith.constant 0 : index
    %c0_9 = arith.constant 0 : index
    %10 = vector.load %arg4[%c0_8, %c0_9] : memref<16x128xf32, #tpu.memory_space<vmem>>, vector<16x128xf32>
    %c0_10 = arith.constant 0 : index
    %c0_11 = arith.constant 0 : index
    %11 = vector.load %arg5[%c0_10, %c0_11] : memref<16x128xf32, #tpu.memory_space<vmem>>, vector<16x128xf32>
    %cst_12 = arith.constant dense<0.000000e+00> : vector<128xf32>
    %12 = vector.multi_reduction <add>, %9, %cst_12 [0] : vector<16x128xf32> to vector<128xf32>
    %13 = vector.shape_cast %12 : vector<128xf32> to vector<1x128xf32>
    %cst_13 = arith.constant dense<0.000000e+00> : vector<1x128xf32>
    %14 = tpu.matmul %13, %2, %cst_13 {dimension_numbers = #tpu.dot_dimension_numbers<[1], [0], [0], [1], [0, 0, 1, 1], [], []>, precision = #tpu.contract_precision<fp32>} : vector<1x128xf32>, vector<128x128xf32>, vector<1x128xf32> -> vector<1x128xf32>
    %cst_14 = arith.constant 9.765625E-4 : f32
    %15 = vector.broadcast %cst_14 : f32 to vector<1x128xf32>
    %16 = arith.mulf %14, %15 : vector<1x128xf32>
    %17 = vector.broadcast %16 : vector<1x128xf32> to vector<16x128xf32>
    %18 = arith.subf %9, %17 : vector<16x128xf32>
    %19 = arith.mulf %18, %18 : vector<16x128xf32>
    %cst_15 = arith.constant dense<0.000000e+00> : vector<128xf32>
    %20 = vector.multi_reduction <add>, %19, %cst_15 [0] : vector<16x128xf32> to vector<128xf32>
    %21 = vector.shape_cast %20 : vector<128xf32> to vector<1x128xf32>
    %cst_16 = arith.constant dense<0.000000e+00> : vector<1x128xf32>
    %22 = tpu.matmul %21, %2, %cst_16 {dimension_numbers = #tpu.dot_dimension_numbers<[1], [0], [0], [1], [0, 0, 1, 1], [], []>, precision = #tpu.contract_precision<fp32>} : vector<1x128xf32>, vector<128x128xf32>, vector<1x128xf32> -> vector<1x128xf32>
    %cst_17 = arith.constant 9.765625E-4 : f32
    %23 = vector.broadcast %cst_17 : f32 to vector<1x128xf32>
    %24 = arith.mulf %22, %23 : vector<1x128xf32>
    %cst_18 = arith.constant 9.99999974E-6 : f32
    %25 = vector.broadcast %cst_18 : f32 to vector<1x128xf32>
    %26 = arith.addf %24, %25 : vector<1x128xf32>
    %27 = math.rsqrt %26 : vector<1x128xf32>
    %28 = vector.broadcast %27 : vector<1x128xf32> to vector<16x128xf32>
    %29 = arith.mulf %18, %28 : vector<16x128xf32>
    %30 = arith.mulf %29, %10 : vector<16x128xf32>
    %31 = arith.addf %30, %11 : vector<16x128xf32>
    %32 = arith.truncf %31 : vector<16x128xf32> to vector<16x128xbf16>
    %c0_19 = arith.constant 0 : index
    %c0_20 = arith.constant 0 : index
    %33 = vector.load %arg6[%c0_19, %c0_20] : memref<48x16xf32, #tpu.memory_space<vmem>>, vector<48x16xf32>
    %34 = arith.truncf %33 : vector<48x16xf32> to vector<48x16xbf16>
    %cst_21 = arith.constant dense<0.000000e+00> : vector<48x128xf32>
    %35 = tpu.matmul %34, %32, %cst_21 {dimension_numbers = #tpu.dot_dimension_numbers<[1], [0], [0], [1], [0, 0, 1, 1], [], []>} : vector<48x16xbf16>, vector<16x128xbf16>, vector<48x128xf32> -> vector<48x128xf32>
    %36 = vector.extract_strided_slice %35 {offsets = [0, 0], sizes = [16, 128], strides = [1, 1]} : vector<48x128xf32> to vector<16x128xf32>
    %37 = vector.shape_cast %36 : vector<16x128xf32> to vector<2x8x128xf32>
    %38 = vector.extract_strided_slice %35 {offsets = [16, 0], sizes = [16, 128], strides = [1, 1]} : vector<48x128xf32> to vector<16x128xf32>
    %39 = vector.shape_cast %38 : vector<16x128xf32> to vector<2x8x128xf32>
    %40 = vector.extract_strided_slice %35 {offsets = [32, 0], sizes = [16, 128], strides = [1, 1]} : vector<48x128xf32> to vector<16x128xf32>
    %41 = vector.shape_cast %40 : vector<16x128xf32> to vector<2x8x128xf32>
    %42 = arith.truncf %37 : vector<2x8x128xf32> to vector<2x8x128xbf16>
    %43 = arith.truncf %39 : vector<2x8x128xf32> to vector<2x8x128xbf16>
    "tpu.trace_start"() <{level = 10 : i32, message = "hdn,hdm->hnm"}> : () -> ()
    %cst_22 = arith.constant dense<0.000000e+00> : vector<2x128x128xf32>
    %44 = tpu.matmul %42, %43, %cst_22 {dimension_numbers = #tpu.dot_dimension_numbers<[1], [1], [2], [2], [0, 0, 0, 2, 1, 2], [0], [0]>} : vector<2x8x128xbf16>, vector<2x8x128xbf16>, vector<2x128x128xf32> -> vector<2x128x128xf32>
    "tpu.trace_stop"() : () -> ()
    %c0_23 = arith.constant 0 : index
    %c0_24 = arith.constant 0 : index
    %45 = vector.load %arg8[%c0_23, %c0_24] : memref<128x128xf32, #tpu.memory_space<vmem>>, vector<128x128xf32>
    %46 = vector.shape_cast %45 : vector<128x128xf32> to vector<1x128x128xf32>
    %47 = vector.broadcast %46 : vector<1x128x128xf32> to vector<2x128x128xf32>
    %48 = arith.addf %44, %47 : vector<2x128x128xf32>
    %cst_25 = arith.constant dense<0xFF800000> : vector<2x128xf32>
    %49 = vector.multi_reduction <maximumf>, %48, %cst_25 [2] : vector<2x128x128xf32> to vector<2x128xf32>
    %50 = vector.shape_cast %49 : vector<2x128xf32> to vector<2x128x1xf32>
    %51 = vector.broadcast %50 : vector<2x128x1xf32> to vector<2x128x128xf32>
    %52 = arith.subf %48, %51 : vector<2x128x128xf32>
    %53 = math.exp %52 : vector<2x128x128xf32>
    %cst_26 = arith.constant dense<0.000000e+00> : vector<2x128xf32>
    %54 = vector.multi_reduction <add>, %53, %cst_26 [2] : vector<2x128x128xf32> to vector<2x128xf32>
    %55 = vector.shape_cast %54 : vector<2x128xf32> to vector<2x128x1xf32>
    %56 = tpu.reciprocal %55 {approx = true} : vector<2x128x1xf32> -> vector<2x128x1xf32>
    %57 = vector.broadcast %56 : vector<2x128x1xf32> to vector<2x128x128xf32>
    %58 = arith.mulf %53, %57 : vector<2x128x128xf32>
    %59 = arith.truncf %58 : vector<2x128x128xf32> to vector<2x128x128xbf16>
    %60 = arith.truncf %41 : vector<2x8x128xf32> to vector<2x8x128xbf16>
    "tpu.trace_start"() <{level = 10 : i32, message = "hdm,hnm->hdn"}> : () -> ()
    %cst_27 = arith.constant dense<0.000000e+00> : vector<2x8x128xf32>
    %61 = tpu.matmul %60, %59, %cst_27 {dimension_numbers = #tpu.dot_dimension_numbers<[2], [2], [1], [1], [0, 0, 0, 1, 1, 1], [0], [0]>} : vector<2x8x128xbf16>, vector<2x128x128xbf16>, vector<2x8x128xf32> -> vector<2x8x128xf32>
    "tpu.trace_stop"() : () -> ()
    %62 = vector.shape_cast %61 : vector<2x8x128xf32> to vector<16x128xf32>
    %63 = arith.truncf %62 : vector<16x128xf32> to vector<16x128xbf16>
    %c0_28 = arith.constant 0 : index
    %c0_29 = arith.constant 0 : index
    %64 = vector.load %arg7[%c0_28, %c0_29] : memref<16x16xf32, #tpu.memory_space<vmem>>, vector<16x16xf32>
    %65 = arith.truncf %64 : vector<16x16xf32> to vector<16x16xbf16>
    %cst_30 = arith.constant dense<0.000000e+00> : vector<16x128xf32>
    %66 = tpu.matmul %65, %63, %cst_30 {dimension_numbers = #tpu.dot_dimension_numbers<[1], [0], [0], [1], [0, 0, 1, 1], [], []>} : vector<16x16xbf16>, vector<16x128xbf16>, vector<16x128xf32> -> vector<16x128xf32>
    %67 = arith.addf %9, %66 : vector<16x128xf32>
    %68 = vector.extract_strided_slice %67 {offsets = [0, 0], sizes = [8, 128], strides = [1, 1]} : vector<16x128xf32> to vector<8x128xf32>
    %c0_31 = arith.constant 0 : index
    %c0_32 = arith.constant 0 : index
    %69 = vector.load %arg10[%c0_31, %c0_32] : memref<8x128xf32, #tpu.memory_space<vmem>>, vector<8x128xf32>
    %c0_33 = arith.constant 0 : index
    %c0_34 = arith.constant 0 : index
    %70 = vector.load %arg11[%c0_33, %c0_34] : memref<8x128xf32, #tpu.memory_space<vmem>>, vector<8x128xf32>
    %cst_35 = arith.constant dense<0.000000e+00> : vector<128xf32>
    %71 = vector.multi_reduction <add>, %68, %cst_35 [0] : vector<8x128xf32> to vector<128xf32>
    %72 = vector.shape_cast %71 : vector<128xf32> to vector<1x128xf32>
    %cst_36 = arith.constant dense<0.000000e+00> : vector<1x128xf32>
    %73 = tpu.matmul %72, %2, %cst_36 {dimension_numbers = #tpu.dot_dimension_numbers<[1], [0], [0], [1], [0, 0, 1, 1], [], []>, precision = #tpu.contract_precision<fp32>} : vector<1x128xf32>, vector<128x128xf32>, vector<1x128xf32> -> vector<1x128xf32>
    %cst_37 = arith.constant 0.001953125 : f32
    %74 = vector.broadcast %cst_37 : f32 to vector<1x128xf32>
    %75 = arith.mulf %73, %74 : vector<1x128xf32>
    %76 = vector.broadcast %75 : vector<1x128xf32> to vector<8x128xf32>
    %77 = arith.subf %68, %76 : vector<8x128xf32>
    %78 = arith.mulf %77, %77 : vector<8x128xf32>
    %cst_38 = arith.constant dense<0.000000e+00> : vector<128xf32>
    %79 = vector.multi_reduction <add>, %78, %cst_38 [0] : vector<8x128xf32> to vector<128xf32>
    %80 = vector.shape_cast %79 : vector<128xf32> to vector<1x128xf32>
    %cst_39 = arith.constant dense<0.000000e+00> : vector<1x128xf32>
    %81 = tpu.matmul %80, %2, %cst_39 {dimension_numbers = #tpu.dot_dimension_numbers<[1], [0], [0], [1], [0, 0, 1, 1], [], []>, precision = #tpu.contract_precision<fp32>} : vector<1x128xf32>, vector<128x128xf32>, vector<1x128xf32> -> vector<1x128xf32>
    %cst_40 = arith.constant 0.001953125 : f32
    %82 = vector.broadcast %cst_40 : f32 to vector<1x128xf32>
    %83 = arith.mulf %81, %82 : vector<1x128xf32>
    %cst_41 = arith.constant 9.99999974E-6 : f32
    %84 = vector.broadcast %cst_41 : f32 to vector<1x128xf32>
    %85 = arith.addf %83, %84 : vector<1x128xf32>
    %86 = math.rsqrt %85 : vector<1x128xf32>
    %87 = vector.broadcast %86 : vector<1x128xf32> to vector<8x128xf32>
    %88 = arith.mulf %77, %87 : vector<8x128xf32>
    %89 = arith.mulf %88, %69 : vector<8x128xf32>
    %90 = arith.addf %89, %70 : vector<8x128xf32>
    %91 = vector.extract_strided_slice %67 {offsets = [8, 0], sizes = [8, 128], strides = [1, 1]} : vector<16x128xf32> to vector<8x128xf32>
    %c0_42 = arith.constant 0 : index
    %c0_43 = arith.constant 0 : index
    %92 = vector.load %arg12[%c0_42, %c0_43] : memref<8x128xf32, #tpu.memory_space<vmem>>, vector<8x128xf32>
    %c0_44 = arith.constant 0 : index
    %c0_45 = arith.constant 0 : index
    %93 = vector.load %arg13[%c0_44, %c0_45] : memref<8x128xf32, #tpu.memory_space<vmem>>, vector<8x128xf32>
    %cst_46 = arith.constant dense<0.000000e+00> : vector<128xf32>
    %94 = vector.multi_reduction <add>, %91, %cst_46 [0] : vector<8x128xf32> to vector<128xf32>
    %95 = vector.shape_cast %94 : vector<128xf32> to vector<1x128xf32>
    %cst_47 = arith.constant dense<0.000000e+00> : vector<1x128xf32>
    %96 = tpu.matmul %95, %2, %cst_47 {dimension_numbers = #tpu.dot_dimension_numbers<[1], [0], [0], [1], [0, 0, 1, 1], [], []>, precision = #tpu.contract_precision<fp32>} : vector<1x128xf32>, vector<128x128xf32>, vector<1x128xf32> -> vector<1x128xf32>
    %cst_48 = arith.constant 0.001953125 : f32
    %97 = vector.broadcast %cst_48 : f32 to vector<1x128xf32>
    %98 = arith.mulf %96, %97 : vector<1x128xf32>
    %99 = vector.broadcast %98 : vector<1x128xf32> to vector<8x128xf32>
    %100 = arith.subf %91, %99 : vector<8x128xf32>
    %101 = arith.mulf %100, %100 : vector<8x128xf32>
    %cst_49 = arith.constant dense<0.000000e+00> : vector<128xf32>
    %102 = vector.multi_reduction <add>, %101, %cst_49 [0] : vector<8x128xf32> to vector<128xf32>
    %103 = vector.shape_cast %102 : vector<128xf32> to vector<1x128xf32>
    %cst_50 = arith.constant dense<0.000000e+00> : vector<1x128xf32>
    %104 = tpu.matmul %103, %2, %cst_50 {dimension_numbers = #tpu.dot_dimension_numbers<[1], [0], [0], [1], [0, 0, 1, 1], [], []>, precision = #tpu.contract_precision<fp32>} : vector<1x128xf32>, vector<128x128xf32>, vector<1x128xf32> -> vector<1x128xf32>
    %cst_51 = arith.constant 0.001953125 : f32
    %105 = vector.broadcast %cst_51 : f32 to vector<1x128xf32>
    %106 = arith.mulf %104, %105 : vector<1x128xf32>
    %cst_52 = arith.constant 9.99999974E-6 : f32
    %107 = vector.broadcast %cst_52 : f32 to vector<1x128xf32>
    %108 = arith.addf %106, %107 : vector<1x128xf32>
    %109 = math.rsqrt %108 : vector<1x128xf32>
    %110 = vector.broadcast %109 : vector<1x128xf32> to vector<8x128xf32>
    %111 = arith.mulf %100, %110 : vector<8x128xf32>
    %112 = arith.mulf %111, %92 : vector<8x128xf32>
    %113 = arith.addf %112, %93 : vector<8x128xf32>
    %c0_53 = arith.constant 0 : index
    %114 = memref.load %arg14[%c0_53] : memref<12xf32, #tpu.memory_space<smem>>
    %c1 = arith.constant 1 : index
    %115 = memref.load %arg14[%c1] : memref<12xf32, #tpu.memory_space<smem>>
    %c2 = arith.constant 2 : index
    %116 = memref.load %arg14[%c2] : memref<12xf32, #tpu.memory_space<smem>>
    %c3 = arith.constant 3 : index
    %117 = memref.load %arg14[%c3] : memref<12xf32, #tpu.memory_space<smem>>
    %c4 = arith.constant 4 : index
    %118 = memref.load %arg14[%c4] : memref<12xf32, #tpu.memory_space<smem>>
    %c5 = arith.constant 5 : index
    %119 = memref.load %arg14[%c5] : memref<12xf32, #tpu.memory_space<smem>>
    %c6 = arith.constant 6 : index
    %120 = memref.load %arg14[%c6] : memref<12xf32, #tpu.memory_space<smem>>
    %c7 = arith.constant 7 : index
    %121 = memref.load %arg14[%c7] : memref<12xf32, #tpu.memory_space<smem>>
    %c8 = arith.constant 8 : index
    %122 = memref.load %arg14[%c8] : memref<12xf32, #tpu.memory_space<smem>>
    %c9 = arith.constant 9 : index
    %123 = memref.load %arg14[%c9] : memref<12xf32, #tpu.memory_space<smem>>
    %c10 = arith.constant 10 : index
    %124 = memref.load %arg14[%c10] : memref<12xf32, #tpu.memory_space<smem>>
    %c11 = arith.constant 11 : index
    %125 = memref.load %arg14[%c11] : memref<12xf32, #tpu.memory_space<smem>>
    %126 = arith.mulf %90, %90 : vector<8x128xf32>
    %127 = arith.mulf %113, %113 : vector<8x128xf32>
    %128 = arith.addf %126, %127 : vector<8x128xf32>
    %cst_54 = arith.constant 1.000000e-18 : f32
    %129 = vector.broadcast %cst_54 : f32 to vector<8x128xf32>
    %130 = arith.cmpf olt, %128, %129 : vector<8x128xf32>
    %cst_55 = arith.constant 1.000000e+00 : f32
    %131 = vector.broadcast %cst_55 : f32 to vector<8x128xf32>
    %132 = arith.select %130, %131, %128 : vector<8x128xi1>, vector<8x128xf32>
    %133 = math.rsqrt %132 : vector<8x128xf32>
    %134 = arith.mulf %128, %133 : vector<8x128xf32>
    %135 = arith.mulf %90, %133 : vector<8x128xf32>
    %cst_56 = arith.constant 1.000000e+00 : f32
    %136 = vector.broadcast %cst_56 : f32 to vector<8x128xf32>
    %137 = arith.select %130, %136, %135 : vector<8x128xi1>, vector<8x128xf32>
    %138 = arith.mulf %113, %133 : vector<8x128xf32>
    %cst_57 = arith.constant 0.000000e+00 : f32
    %139 = vector.broadcast %cst_57 : f32 to vector<8x128xf32>
    %140 = arith.select %130, %139, %138 : vector<8x128xi1>, vector<8x128xf32>
    %141 = math.tanh %134 : vector<8x128xf32>
    %142 = arith.mulf %141, %137 : vector<8x128xf32>
    %143 = arith.mulf %141, %140 : vector<8x128xf32>
    %cst_58 = arith.constant 1.000000e+00 : f32
    %144 = arith.addf %cst_58, %116 : f32
    %145 = vector.broadcast %144 : f32 to vector<8x128xf32>
    %146 = arith.mulf %142, %145 : vector<8x128xf32>
    %147 = vector.broadcast %117 : f32 to vector<8x128xf32>
    %148 = arith.mulf %143, %147 : vector<8x128xf32>
    %149 = arith.subf %146, %148 : vector<8x128xf32>
    %150 = vector.broadcast %117 : f32 to vector<8x128xf32>
    %151 = arith.mulf %142, %150 : vector<8x128xf32>
    %152 = vector.broadcast %144 : f32 to vector<8x128xf32>
    %153 = arith.mulf %143, %152 : vector<8x128xf32>
    %154 = arith.addf %151, %153 : vector<8x128xf32>
    %155 = vector.broadcast %114 : f32 to vector<8x128xf32>
    %156 = arith.addf %149, %155 : vector<8x128xf32>
    %157 = vector.broadcast %115 : f32 to vector<8x128xf32>
    %158 = arith.addf %154, %157 : vector<8x128xf32>
    %cst_59 = arith.constant 1.000000e+00 : f32
    %159 = arith.addf %cst_59, %120 : f32
    %160 = vector.broadcast %159 : f32 to vector<8x128xf32>
    %161 = arith.mulf %142, %160 : vector<8x128xf32>
    %162 = vector.broadcast %121 : f32 to vector<8x128xf32>
    %163 = arith.mulf %143, %162 : vector<8x128xf32>
    %164 = arith.subf %161, %163 : vector<8x128xf32>
    %165 = vector.broadcast %121 : f32 to vector<8x128xf32>
    %166 = arith.mulf %142, %165 : vector<8x128xf32>
    %167 = vector.broadcast %159 : f32 to vector<8x128xf32>
    %168 = arith.mulf %143, %167 : vector<8x128xf32>
    %169 = arith.addf %166, %168 : vector<8x128xf32>
    %170 = vector.broadcast %118 : f32 to vector<8x128xf32>
    %171 = arith.addf %164, %170 : vector<8x128xf32>
    %172 = vector.broadcast %119 : f32 to vector<8x128xf32>
    %173 = arith.addf %169, %172 : vector<8x128xf32>
    %cst_60 = arith.constant 2.000000e+00 : f32
    %174 = vector.broadcast %cst_60 : f32 to vector<8x128xf32>
    %175 = arith.mulf %174, %171 : vector<8x128xf32>
    %cst_61 = arith.constant 2.000000e+00 : f32
    %176 = vector.broadcast %cst_61 : f32 to vector<8x128xf32>
    %177 = arith.mulf %176, %173 : vector<8x128xf32>
    %178 = math.absf %175 : vector<8x128xf32>
    %cst_62 = arith.constant 0.000000e+00 : f32
    %179 = vector.broadcast %cst_62 : f32 to vector<8x128xf32>
    %180 = arith.subf %179, %178 : vector<8x128xf32>
    %181 = math.exp %180 : vector<8x128xf32>
    %182 = arith.mulf %181, %181 : vector<8x128xf32>
    %cst_63 = arith.constant 0.000000e+00 : f32
    %183 = vector.broadcast %cst_63 : f32 to vector<8x128xf32>
    %184 = arith.cmpf oge, %175, %183 : vector<8x128xf32>
    %cst_64 = arith.constant 1.000000e+00 : f32
    %cst_65 = arith.constant -1.000000e+00 : f32
    %185 = vector.broadcast %cst_64 : f32 to vector<8x128xf32>
    %186 = vector.broadcast %cst_65 : f32 to vector<8x128xf32>
    %187 = arith.select %184, %185, %186 : vector<8x128xi1>, vector<8x128xf32>
    %cst_66 = arith.constant 1.000000e+00 : f32
    %188 = vector.broadcast %cst_66 : f32 to vector<8x128xf32>
    %189 = arith.subf %188, %182 : vector<8x128xf32>
    %190 = arith.mulf %187, %189 : vector<8x128xf32>
    %cst_67 = arith.constant 2.000000e+00 : f32
    %191 = vector.broadcast %cst_67 : f32 to vector<8x128xf32>
    %192 = arith.mulf %191, %181 : vector<8x128xf32>
    %193 = math.sin %177 : vector<8x128xf32>
    %194 = arith.mulf %192, %193 : vector<8x128xf32>
    %cst_68 = arith.constant 1.000000e+00 : f32
    %195 = vector.broadcast %cst_68 : f32 to vector<8x128xf32>
    %196 = arith.addf %195, %182 : vector<8x128xf32>
    %cst_69 = arith.constant 2.000000e+00 : f32
    %197 = vector.broadcast %cst_69 : f32 to vector<8x128xf32>
    %198 = arith.mulf %197, %181 : vector<8x128xf32>
    %199 = math.cos %177 : vector<8x128xf32>
    %200 = arith.mulf %198, %199 : vector<8x128xf32>
    %201 = arith.addf %196, %200 : vector<8x128xf32>
    %cst_70 = arith.constant 1.000000e+00 : f32
    %202 = vector.broadcast %cst_70 : f32 to vector<8x128xf32>
    %203 = arith.divf %202, %201 : vector<8x128xf32>
    %204 = arith.mulf %190, %203 : vector<8x128xf32>
    %205 = arith.mulf %194, %203 : vector<8x128xf32>
    %206 = arith.mulf %156, %204 : vector<8x128xf32>
    %207 = arith.mulf %158, %205 : vector<8x128xf32>
    %208 = arith.subf %206, %207 : vector<8x128xf32>
    %209 = arith.mulf %156, %205 : vector<8x128xf32>
    %210 = arith.mulf %158, %204 : vector<8x128xf32>
    %211 = arith.addf %209, %210 : vector<8x128xf32>
    %212 = vector.broadcast %122 : f32 to vector<8x128xf32>
    %213 = arith.mulf %208, %212 : vector<8x128xf32>
    %214 = vector.broadcast %123 : f32 to vector<8x128xf32>
    %215 = arith.mulf %211, %214 : vector<8x128xf32>
    %216 = arith.subf %213, %215 : vector<8x128xf32>
    %217 = vector.broadcast %123 : f32 to vector<8x128xf32>
    %218 = arith.mulf %208, %217 : vector<8x128xf32>
    %219 = vector.broadcast %122 : f32 to vector<8x128xf32>
    %220 = arith.mulf %211, %219 : vector<8x128xf32>
    %221 = arith.addf %218, %220 : vector<8x128xf32>
    %cst_71 = arith.constant 2.000000e+00 : f32
    %222 = vector.broadcast %cst_71 : f32 to vector<8x128xf32>
    %223 = arith.mulf %222, %142 : vector<8x128xf32>
    %cst_72 = arith.constant 2.000000e+00 : f32
    %224 = vector.broadcast %cst_72 : f32 to vector<8x128xf32>
    %225 = arith.mulf %224, %143 : vector<8x128xf32>
    %226 = math.absf %223 : vector<8x128xf32>
    %cst_73 = arith.constant 0.000000e+00 : f32
    %227 = vector.broadcast %cst_73 : f32 to vector<8x128xf32>
    %228 = arith.subf %227, %226 : vector<8x128xf32>
    %229 = math.exp %228 : vector<8x128xf32>
    %230 = arith.mulf %229, %229 : vector<8x128xf32>
    %cst_74 = arith.constant 0.000000e+00 : f32
    %231 = vector.broadcast %cst_74 : f32 to vector<8x128xf32>
    %232 = arith.cmpf oge, %223, %231 : vector<8x128xf32>
    %cst_75 = arith.constant 1.000000e+00 : f32
    %cst_76 = arith.constant -1.000000e+00 : f32
    %233 = vector.broadcast %cst_75 : f32 to vector<8x128xf32>
    %234 = vector.broadcast %cst_76 : f32 to vector<8x128xf32>
    %235 = arith.select %232, %233, %234 : vector<8x128xi1>, vector<8x128xf32>
    %cst_77 = arith.constant 1.000000e+00 : f32
    %236 = vector.broadcast %cst_77 : f32 to vector<8x128xf32>
    %237 = arith.subf %236, %230 : vector<8x128xf32>
    %238 = arith.mulf %235, %237 : vector<8x128xf32>
    %cst_78 = arith.constant 2.000000e+00 : f32
    %239 = vector.broadcast %cst_78 : f32 to vector<8x128xf32>
    %240 = arith.mulf %239, %229 : vector<8x128xf32>
    %241 = math.sin %225 : vector<8x128xf32>
    %242 = arith.mulf %240, %241 : vector<8x128xf32>
    %cst_79 = arith.constant 1.000000e+00 : f32
    %243 = vector.broadcast %cst_79 : f32 to vector<8x128xf32>
    %244 = arith.addf %243, %230 : vector<8x128xf32>
    %cst_80 = arith.constant 2.000000e+00 : f32
    %245 = vector.broadcast %cst_80 : f32 to vector<8x128xf32>
    %246 = arith.mulf %245, %229 : vector<8x128xf32>
    %247 = math.cos %225 : vector<8x128xf32>
    %248 = arith.mulf %246, %247 : vector<8x128xf32>
    %249 = arith.addf %244, %248 : vector<8x128xf32>
    %cst_81 = arith.constant 1.000000e+00 : f32
    %250 = vector.broadcast %cst_81 : f32 to vector<8x128xf32>
    %251 = arith.divf %250, %249 : vector<8x128xf32>
    %252 = arith.mulf %238, %251 : vector<8x128xf32>
    %253 = arith.mulf %242, %251 : vector<8x128xf32>
    %254 = vector.broadcast %124 : f32 to vector<8x128xf32>
    %255 = arith.mulf %252, %254 : vector<8x128xf32>
    %256 = vector.broadcast %125 : f32 to vector<8x128xf32>
    %257 = arith.mulf %253, %256 : vector<8x128xf32>
    %258 = arith.subf %255, %257 : vector<8x128xf32>
    %259 = vector.broadcast %125 : f32 to vector<8x128xf32>
    %260 = arith.mulf %252, %259 : vector<8x128xf32>
    %261 = vector.broadcast %124 : f32 to vector<8x128xf32>
    %262 = arith.mulf %253, %261 : vector<8x128xf32>
    %263 = arith.addf %260, %262 : vector<8x128xf32>
    %cst_82 = arith.constant 1.000000e+00 : f32
    %264 = vector.broadcast %cst_82 : f32 to vector<8x128xf32>
    %265 = arith.addf %264, %258 : vector<8x128xf32>
    %266 = arith.mulf %142, %265 : vector<8x128xf32>
    %267 = arith.mulf %143, %263 : vector<8x128xf32>
    %268 = arith.subf %266, %267 : vector<8x128xf32>
    %269 = arith.mulf %142, %263 : vector<8x128xf32>
    %270 = arith.mulf %143, %265 : vector<8x128xf32>
    %271 = arith.addf %269, %270 : vector<8x128xf32>
    %272 = arith.addf %268, %216 : vector<8x128xf32>
    %273 = arith.addf %271, %221 : vector<8x128xf32>
    %274 = arith.mulf %272, %272 : vector<8x128xf32>
    %275 = arith.mulf %273, %273 : vector<8x128xf32>
    %276 = arith.addf %274, %275 : vector<8x128xf32>
    %cst_83 = arith.constant 1.000000e-18 : f32
    %277 = vector.broadcast %cst_83 : f32 to vector<8x128xf32>
    %278 = arith.cmpf olt, %276, %277 : vector<8x128xf32>
    %cst_84 = arith.constant 1.000000e+00 : f32
    %279 = vector.broadcast %cst_84 : f32 to vector<8x128xf32>
    %280 = arith.select %278, %279, %276 : vector<8x128xi1>, vector<8x128xf32>
    %281 = math.rsqrt %280 : vector<8x128xf32>
    %282 = arith.mulf %276, %281 : vector<8x128xf32>
    %283 = arith.mulf %272, %281 : vector<8x128xf32>
    %cst_85 = arith.constant 1.000000e+00 : f32
    %284 = vector.broadcast %cst_85 : f32 to vector<8x128xf32>
    %285 = arith.select %278, %284, %283 : vector<8x128xi1>, vector<8x128xf32>
    %286 = arith.mulf %273, %281 : vector<8x128xf32>
    %cst_86 = arith.constant 0.000000e+00 : f32
    %287 = vector.broadcast %cst_86 : f32 to vector<8x128xf32>
    %288 = arith.select %278, %287, %286 : vector<8x128xi1>, vector<8x128xf32>
    %289 = math.tanh %282 : vector<8x128xf32>
    %290 = arith.mulf %289, %285 : vector<8x128xf32>
    %291 = arith.mulf %289, %288 : vector<8x128xf32>
    %c0_87 = arith.constant 0 : index
    %c0_88 = arith.constant 0 : index
    %c0_89 = arith.constant 0 : index
    %292 = vector.load %arg15[%c0_87, %c0_88, %c0_89] : memref<1x8x128xf32, #tpu.memory_space<vmem>>, vector<1x8x128xf32>
    %293 = vector.shape_cast %292 : vector<1x8x128xf32> to vector<8x128xf32>
    %294 = vector.shape_cast %290 : vector<8x128xf32> to vector<1x8x128xf32>
    tpu.vector_store %arg15[%c0_87, %c0_88, %c0_89], %294 {strides = array<i32>} : memref<1x8x128xf32, #tpu.memory_space<vmem>>, vector<1x8x128xf32>,
    %c0_90 = arith.constant 0 : index
    %c0_91 = arith.constant 0 : index
    %c0_92 = arith.constant 0 : index
    %295 = vector.load %arg16[%c0_90, %c0_91, %c0_92] : memref<1x8x128xf32, #tpu.memory_space<vmem>>, vector<1x8x128xf32>
    %296 = vector.shape_cast %295 : vector<1x8x128xf32> to vector<8x128xf32>
    %297 = vector.shape_cast %291 : vector<8x128xf32> to vector<1x8x128xf32>
    tpu.vector_store %arg16[%c0_90, %c0_91, %c0_92], %297 {strides = array<i32>} : memref<1x8x128xf32, #tpu.memory_space<vmem>>, vector<1x8x128xf32>,
    return
  }
  func.func @transform_0(%arg0: i32) -> (i32, i32, i32) {
    %c0_i32 = arith.constant 0 : i32
    %c0_i32_0 = arith.constant 0 : i32
    %c0_i32_1 = arith.constant 0 : i32
    return %arg0, %c0_i32, %c0_i32_0 : i32, i32, i32
  }
  func.func @transform_1(%arg0: i32) -> (i32, i32) {
    %c0_i32 = arith.constant 0 : i32
    %c0_i32_0 = arith.constant 0 : i32
    %c0_i32_1 = arith.constant 0 : i32
    return %c0_i32, %c0_i32_0 : i32, i32
  }
  func.func @transform_2(%arg0: i32) -> (i32, i32) {
    %c0_i32 = arith.constant 0 : i32
    %c0_i32_0 = arith.constant 0 : i32
    %c0_i32_1 = arith.constant 0 : i32
    return %c0_i32, %c0_i32_0 : i32, i32
  }
  func.func @transform_3(%arg0: i32) -> (i32, i32) {
    %c0_i32 = arith.constant 0 : i32
    %c0_i32_0 = arith.constant 0 : i32
    %c0_i32_1 = arith.constant 0 : i32
    return %c0_i32, %c0_i32_0 : i32, i32
  }
  func.func @transform_4(%arg0: i32) -> (i32, i32) {
    %c0_i32 = arith.constant 0 : i32
    %c0_i32_0 = arith.constant 0 : i32
    %c0_i32_1 = arith.constant 0 : i32
    return %c0_i32, %c0_i32_0 : i32, i32
  }
  func.func @transform_5(%arg0: i32) -> (i32, i32) {
    %c0_i32 = arith.constant 0 : i32
    %c0_i32_0 = arith.constant 0 : i32
    %c0_i32_1 = arith.constant 0 : i32
    return %c0_i32, %c0_i32_0 : i32, i32
  }
  func.func @transform_6(%arg0: i32) -> (i32, i32) {
    %c0_i32 = arith.constant 0 : i32
    %c0_i32_0 = arith.constant 0 : i32
    %c0_i32_1 = arith.constant 0 : i32
    return %c0_i32, %c0_i32_0 : i32, i32
  }
  func.func @transform_7(%arg0: i32) -> (i32, i32) {
    %c0_i32 = arith.constant 0 : i32
    %c0_i32_0 = arith.constant 0 : i32
    %c0_i32_1 = arith.constant 0 : i32
    return %c0_i32, %c0_i32_0 : i32, i32
  }
  func.func @transform_8(%arg0: i32) -> (i32, i32) {
    %c0_i32 = arith.constant 0 : i32
    %c0_i32_0 = arith.constant 0 : i32
    %c0_i32_1 = arith.constant 0 : i32
    return %c0_i32, %c0_i32_0 : i32, i32
  }
  func.func @transform_9(%arg0: i32) -> (i32, i32) {
    %c0_i32 = arith.constant 0 : i32
    %c0_i32_0 = arith.constant 0 : i32
    %c0_i32_1 = arith.constant 0 : i32
    return %c0_i32, %c0_i32_0 : i32, i32
  }
  func.func @transform_10(%arg0: i32) -> (i32, i32) {
    %c0_i32 = arith.constant 0 : i32
    %c0_i32_0 = arith.constant 0 : i32
    %c0_i32_1 = arith.constant 0 : i32
    return %c0_i32, %c0_i32_0 : i32, i32
  }
  func.func @transform_11(%arg0: i32) -> (i32, i32) {
    %c0_i32 = arith.constant 0 : i32
    %c0_i32_0 = arith.constant 0 : i32
    %c0_i32_1 = arith.constant 0 : i32
    return %c0_i32, %c0_i32_0 : i32, i32
  }
  func.func @transform_12(%arg0: i32) -> (i32, i32) {
    %c0_i32 = arith.constant 0 : i32
    %c0_i32_0 = arith.constant 0 : i32
    %c0_i32_1 = arith.constant 0 : i32
    return %c0_i32, %c0_i32_0 : i32, i32
  }
  func.func @transform_13(%arg0: i32) -> i32 {
    %c0_i32 = arith.constant 0 : i32
    %c0_i32_0 = arith.constant 0 : i32
    return %c0_i32 : i32
  }
  func.func @transform_14(%arg0: i32) -> (i32, i32, i32) {
    %c0_i32 = arith.constant 0 : i32
    %c0_i32_0 = arith.constant 0 : i32
    %c0_i32_1 = arith.constant 0 : i32
    return %arg0, %c0_i32, %c0_i32_0 : i32, i32, i32
  }
  func.func @transform_15(%arg0: i32) -> (i32, i32, i32) {
    %c0_i32 = arith.constant 0 : i32
    %c0_i32_0 = arith.constant 0 : i32
    %c0_i32_1 = arith.constant 0 : i32
    return %arg0, %c0_i32, %c0_i32_0 : i32, i32, i32
  }
}

</mosaic_0001>

<llo_original>
// kernel: tile.27
$region0: #{tile.27}
  %s0 = inlined_call_operand.vmem [shape: f32[16,2,64], index: 0, kind: input, shape index: {}]
  %s1 = inlined_call_operand.vmem [shape: f32[16,128], index: 1, kind: output, shape index: {}]
  $region1: #{tile.27} parent=0
    #allocation0 [shape = 'u8[65536]{0}', space=vmem, size = 0x10000, scoped, tag = 'scoped mem for input reshape']
    %s3 = ssub.s32 4, 1
    %s4 = scalar_lea.vmem %s0, 30
    %v5 = vld [vmem:[%s4] sm:%s3]
    %s6 = scalar_lea.vmem [#allocation0], 120
    %7 = vst [vmem:[%s6] sm:%s3] %v5
    %s8 = scalar_lea.vmem %s0, 28
    %v9 = vld [vmem:[%s8] sm:%s3]
    %s10 = scalar_lea.vmem [#allocation0], 112
    %11 = vst [vmem:[%s10] sm:%s3] %v9
    %s12 = scalar_lea.vmem %s0, 26
    %v13 = vld [vmem:[%s12] sm:%s3]
    %s14 = scalar_lea.vmem [#allocation0], 104
    %15 = vst [vmem:[%s14] sm:%s3] %v13
    %s16 = scalar_lea.vmem %s0, 24
    %v17 = vld [vmem:[%s16] sm:%s3]
    %s18 = scalar_lea.vmem [#allocation0], 96
    %19 = vst [vmem:[%s18] sm:%s3] %v17
    %s20 = scalar_lea.vmem %s0, 22
    %v21 = vld [vmem:[%s20] sm:%s3]
    %s22 = scalar_lea.vmem [#allocation0], 88
    %23 = vst [vmem:[%s22] sm:%s3] %v21
    %s24 = scalar_lea.vmem %s0, 20
    %v25 = vld [vmem:[%s24] sm:%s3]
    %s26 = scalar_lea.vmem [#allocation0], 80
    %27 = vst [vmem:[%s26] sm:%s3] %v25
    %s28 = scalar_lea.vmem %s0, 18
    %v29 = vld [vmem:[%s28] sm:%s3]
    %s30 = scalar_lea.vmem [#allocation0], 72
    %31 = vst [vmem:[%s30] sm:%s3] %v29
    %s32 = scalar_lea.vmem %s0, 16
    %v33 = vld [vmem:[%s32] sm:%s3]
    %s34 = scalar_lea.vmem [#allocation0], 64
    %35 = vst [vmem:[%s34] sm:%s3] %v33
    %s36 = scalar_lea.vmem %s0, 14
    %v37 = vld [vmem:[%s36] sm:%s3]
    %s38 = scalar_lea.vmem [#allocation0], 56
    %39 = vst [vmem:[%s38] sm:%s3] %v37
    %s40 = scalar_lea.vmem %s0, 12
    %v41 = vld [vmem:[%s40] sm:%s3]
    %s42 = scalar_lea.vmem [#allocation0], 48
    %43 = vst [vmem:[%s42] sm:%s3] %v41
    %s44 = scalar_lea.vmem %s0, 10
    %v45 = vld [vmem:[%s44] sm:%s3]
    %s46 = scalar_lea.vmem [#allocation0], 40
    %47 = vst [vmem:[%s46] sm:%s3] %v45
    %s48 = scalar_lea.vmem %s0, 8
    %v49 = vld [vmem:[%s48] sm:%s3]
    %s50 = scalar_lea.vmem [#allocation0], 32
    %51 = vst [vmem:[%s50] sm:%s3] %v49
    %s52 = scalar_lea.vmem %s0, 6
    %v53 = vld [vmem:[%s52] sm:%s3]
    %s54 = scalar_lea.vmem [#allocation0], 24
    %55 = vst [vmem:[%s54] sm:%s3] %v53
    %s56 = scalar_lea.vmem %s0, 4
    %v57 = vld [vmem:[%s56] sm:%s3]
    %s58 = scalar_lea.vmem [#allocation0], 16
    %59 = vst [vmem:[%s58] sm:%s3] %v57
    %s60 = scalar_lea.vmem %s0, 2
    %v61 = vld [vmem:[%s60] sm:%s3]
    %s62 = scalar_lea.vmem [#allocation0], 8
    %63 = vst [vmem:[%s62] sm:%s3] %v61
    %v64 = vld [vmem:[%s0] sm:%s3]
    %65 = vst [vmem:[#allocation0] sm:%s3] %v64
    %v66 = vld [vmem:[#allocation0] ss:$8 sm:$0xf]
    %v67 = vld [vmem:[#allocation0] ss:$8 sm:$0xf0]
    %vm68 = vcmask 1047556
    %v69 = vsel %vm68, %v67, %v66
    %vm70 = vcmask 523264
    %71 = vst.msk [vmem:[%s1] sm:$0xff] %vm70, %v69
    %s72 = scalar_lea.vmem [#allocation0], 64
    %v73 = vld [vmem:[%s72] ss:$8 sm:$0xf]
    %s74 = scalar_lea.vmem [#allocation0], 64
    %v75 = vld [vmem:[%s74] ss:$8 sm:$0xf0]
    %vm76 = vcmask 1047556
    %v77 = vsel %vm76, %v75, %v73
    %vm78 = vcmask 523264
    %s79 = scalar_lea.vmem %s1, 8
    %80 = vst.msk [vmem:[%s79] sm:$0xff] %vm78, %v77
    %s81 = scalar_lea.vmem [#allocation0], 1
    %v82 = vld [vmem:[%s81] ss:$8 sm:$0xf]
    %s83 = scalar_lea.vmem [#allocation0], 1
    %v84 = vld [vmem:[%s83] ss:$8 sm:$0xf0]
    %vm85 = vcmask 1047556
    %v86 = vsel %vm85, %v84, %v82
    %87 = vrot.lane.b32.xlu0 %v86, 64
    %v88 = vpop.permute.xlu0 %87
    %vm89 = vcmask 1048064
    %90 = vst.msk [vmem:[%s1] sm:$0xff] %vm89, %v88
    %s91 = scalar_lea.vmem [#allocation0], 65
    %v92 = vld [vmem:[%s91] ss:$8 sm:$0xf]
    %s93 = scalar_lea.vmem [#allocation0], 65
    %v94 = vld [vmem:[%s93] ss:$8 sm:$0xf0]
    %vm95 = vcmask 1047556
    %v96 = vsel %vm95, %v94, %v92
    %97 = vrot.lane.b32.xlu0 %v96, 64
    %v98 = vpop.permute.xlu0 %97
    %vm99 = vcmask 1048064
    %s100 = scalar_lea.vmem %s1, 8
    %101 = vst.msk [vmem:[%s100] sm:$0xff] %vm99, %v98

// kernel: tile.35
$region0: #{tile.35}
  %s0 = inlined_call_operand.vmem [shape: f32[8,2,64], index: 0, kind: input, shape index: {}]
  %s1 = inlined_call_operand.vmem [shape: f32[8,128], index: 1, kind: output, shape index: {}]
  $region1: #{tile.35} parent=0
    #allocation0 [shape = 'u8[32768]{0}', space=vmem, size = 0x8000, scoped, tag = 'scoped mem for input reshape']
    %s3 = ssub.s32 4, 1
    %s4 = scalar_lea.vmem %s0, 14
    %v5 = vld [vmem:[%s4] sm:%s3]
    %s6 = scalar_lea.vmem [#allocation0], 56
    %7 = vst [vmem:[%s6] sm:%s3] %v5
    %s8 = scalar_lea.vmem %s0, 12
    %v9 = vld [vmem:[%s8] sm:%s3]
    %s10 = scalar_lea.vmem [#allocation0], 48
    %11 = vst [vmem:[%s10] sm:%s3] %v9
    %s12 = scalar_lea.vmem %s0, 10
    %v13 = vld [vmem:[%s12] sm:%s3]
    %s14 = scalar_lea.vmem [#allocation0], 40
    %15 = vst [vmem:[%s14] sm:%s3] %v13
    %s16 = scalar_lea.vmem %s0, 8
    %v17 = vld [vmem:[%s16] sm:%s3]
    %s18 = scalar_lea.vmem [#allocation0], 32
    %19 = vst [vmem:[%s18] sm:%s3] %v17
    %s20 = scalar_lea.vmem %s0, 6
    %v21 = vld [vmem:[%s20] sm:%s3]
    %s22 = scalar_lea.vmem [#allocation0], 24
    %23 = vst [vmem:[%s22] sm:%s3] %v21
    %s24 = scalar_lea.vmem %s0, 4
    %v25 = vld [vmem:[%s24] sm:%s3]
    %s26 = scalar_lea.vmem [#allocation0], 16
    %27 = vst [vmem:[%s26] sm:%s3] %v25
    %s28 = scalar_lea.vmem %s0, 2
    %v29 = vld [vmem:[%s28] sm:%s3]
    %s30 = scalar_lea.vmem [#allocation0], 8
    %31 = vst [vmem:[%s30] sm:%s3] %v29
    %v32 = vld [vmem:[%s0] sm:%s3]
    %33 = vst [vmem:[#allocation0] sm:%s3] %v32
    %v34 = vld [vmem:[#allocation0] ss:$8 sm:$0xf]
    %v35 = vld [vmem:[#allocation0] ss:$8 sm:$0xf0]
    %vm36 = vcmask 1047556
    %v37 = vsel %vm36, %v35, %v34
    %vm38 = vcmask 523264
    %39 = vst.msk [vmem:[%s1] sm:$0xff] %vm38, %v37
    %s40 = scalar_lea.vmem [#allocation0], 1
    %v41 = vld [vmem:[%s40] ss:$8 sm:$0xf]
    %s42 = scalar_lea.vmem [#allocation0], 1
    %v43 = vld [vmem:[%s42] ss:$8 sm:$0xf0]
    %vm44 = vcmask 1047556
    %v45 = vsel %vm44, %v43, %v41
    %46 = vrot.lane.b32.xlu0 %v45, 64
    %v47 = vpop.permute.xlu0 %46
    %vm48 = vcmask 1048064
    %49 = vst.msk [vmem:[%s1] sm:$0xff] %vm48, %v47

// kernel: custom-call
$region0: #{custom-call}
  %s0 = inlined_call_operand.vmem [shape: f32[4,8,8,8], index: 0, kind: input, shape index: {}]
  %s1 = inlined_call_operand.vmem [shape: f32[4,8,8,8], index: 1, kind: input, shape index: {}]
  %s2 = inlined_call_operand.vmem [shape: c64[4,8,8,8], index: 2, kind: output, shape index: {}]
  %s3 = scalar_lea.vmem %s2, 256
  %v4 = vld [vmem:[%s0] sm:$0xff]
  %5 = vst [vmem:[%s2] sm:$0xff] %v4
  %s6 = scalar_lea.vmem %s2, 8
  %s7 = scalar_lea.vmem %s0, 8
  %v8 = vld [vmem:[%s7] sm:$0xff]
  %9 = vst [vmem:[%s6] sm:$0xff] %v8
  %s10 = scalar_lea.vmem %s2, 16
  %s11 = scalar_lea.vmem %s0, 16
  %v12 = vld [vmem:[%s11] sm:$0xff]
  %13 = vst [vmem:[%s10] sm:$0xff] %v12
  %s14 = scalar_lea.vmem %s2, 24
  %s15 = scalar_lea.vmem %s0, 24
  %v16 = vld [vmem:[%s15] sm:$0xff]
  %17 = vst [vmem:[%s14] sm:$0xff] %v16
  %s18 = scalar_lea.vmem %s2, 32
  %s19 = scalar_lea.vmem %s0, 32
  %v20 = vld [vmem:[%s19] sm:$0xff]
  %21 = vst [vmem:[%s18] sm:$0xff] %v20
  %s22 = scalar_lea.vmem %s2, 40
  %s23 = scalar_lea.vmem %s0, 40
  %v24 = vld [vmem:[%s23] sm:$0xff]
  %25 = vst [vmem:[%s22] sm:$0xff] %v24
  %s26 = scalar_lea.vmem %s2, 48
  %s27 = scalar_lea.vmem %s0, 48
  %v28 = vld [vmem:[%s27] sm:$0xff]
  %29 = vst [vmem:[%s26] sm:$0xff] %v28
  %s30 = scalar_lea.vmem %s2, 56
  %s31 = scalar_lea.vmem %s0, 56
  %v32 = vld [vmem:[%s31] sm:$0xff]
  %33 = vst [vmem:[%s30] sm:$0xff] %v32
  %s34 = scalar_lea.vmem %s2, 64
  %s35 = scalar_lea.vmem %s0, 64
  %v36 = vld [vmem:[%s35] sm:$0xff]
  %37 = vst [vmem:[%s34] sm:$0xff] %v36
  %s38 = scalar_lea.vmem %s2, 72
  %s39 = scalar_lea.vmem %s0, 72
  %v40 = vld [vmem:[%s39] sm:$0xff]
  %41 = vst [vmem:[%s38] sm:$0xff] %v40
  %s42 = scalar_lea.vmem %s2, 80
  %s43 = scalar_lea.vmem %s0, 80
  %v44 = vld [vmem:[%s43] sm:$0xff]
  %45 = vst [vmem:[%s42] sm:$0xff] %v44
  %s46 = scalar_lea.vmem %s2, 88
  %s47 = scalar_lea.vmem %s0, 88
  %v48 = vld [vmem:[%s47] sm:$0xff]
  %49 = vst [vmem:[%s46] sm:$0xff] %v48
  %s50 = scalar_lea.vmem %s2, 96
  %s51 = scalar_lea.vmem %s0, 96
  %v52 = vld [vmem:[%s51] sm:$0xff]
  %53 = vst [vmem:[%s50] sm:$0xff] %v52
  %s54 = scalar_lea.vmem %s2, 104
  %s55 = scalar_lea.vmem %s0, 104
  %v56 = vld [vmem:[%s55] sm:$0xff]
  %57 = vst [vmem:[%s54] sm:$0xff] %v56
  %s58 = scalar_lea.vmem %s2, 112
  %s59 = scalar_lea.vmem %s0, 112
  %v60 = vld [vmem:[%s59] sm:$0xff]
  %61 = vst [vmem:[%s58] sm:$0xff] %v60
  %s62 = scalar_lea.vmem %s2, 120
  %s63 = scalar_lea.vmem %s0, 120
  %v64 = vld [vmem:[%s63] sm:$0xff]
  %65 = vst [vmem:[%s62] sm:$0xff] %v64
  %s66 = scalar_lea.vmem %s2, 128
  %s67 = scalar_lea.vmem %s0, 128
  %v68 = vld [vmem:[%s67] sm:$0xff]
  %69 = vst [vmem:[%s66] sm:$0xff] %v68
  %s70 = scalar_lea.vmem %s2, 136
  %s71 = scalar_lea.vmem %s0, 136
  %v72 = vld [vmem:[%s71] sm:$0xff]
  %73 = vst [vmem:[%s70] sm:$0xff] %v72
  %s74 = scalar_lea.vmem %s2, 144
  %s75 = scalar_lea.vmem %s0, 144
  %v76 = vld [vmem:[%s75] sm:$0xff]
  %77 = vst [vmem:[%s74] sm:$0xff] %v76
  %s78 = scalar_lea.vmem %s2, 152
  %s79 = scalar_lea.vmem %s0, 152
  %v80 = vld [vmem:[%s79] sm:$0xff]
  %81 = vst [vmem:[%s78] sm:$0xff] %v80
  %s82 = scalar_lea.vmem %s2, 160
  %s83 = scalar_lea.vmem %s0, 160
  %v84 = vld [vmem:[%s83] sm:$0xff]
  %85 = vst [vmem:[%s82] sm:$0xff] %v84
  %s86 = scalar_lea.vmem %s2, 168
  %s87 = scalar_lea.vmem %s0, 168
  %v88 = vld [vmem:[%s87] sm:$0xff]
  %89 = vst [vmem:[%s86] sm:$0xff] %v88
  %s90 = scalar_lea.vmem %s2, 176
  %s91 = scalar_lea.vmem %s0, 176
  %v92 = vld [vmem:[%s91] sm:$0xff]
  %93 = vst [vmem:[%s90] sm:$0xff] %v92
  %s94 = scalar_lea.vmem %s2, 184
  %s95 = scalar_lea.vmem %s0, 184
  %v96 = vld [vmem:[%s95] sm:$0xff]
  %97 = vst [vmem:[%s94] sm:$0xff] %v96
  %s98 = scalar_lea.vmem %s2, 192
  %s99 = scalar_lea.vmem %s0, 192
  %v100 = vld [vmem:[%s99] sm:$0xff]
  %101 = vst [vmem:[%s98] sm:$0xff] %v100
  %s102 = scalar_lea.vmem %s2, 200
  %s103 = scalar_lea.vmem %s0, 200
  %v104 = vld [vmem:[%s103] sm:$0xff]
  %105 = vst [vmem:[%s102] sm:$0xff] %v104
  %s106 = scalar_lea.vmem %s2, 208
  %s107 = scalar_lea.vmem %s0, 208
  %v108 = vld [vmem:[%s107] sm:$0xff]
  %109 = vst [vmem:[%s106] sm:$0xff] %v108
  %s110 = scalar_lea.vmem %s2, 216
  %s111 = scalar_lea.vmem %s0, 216
  %v112 = vld [vmem:[%s111] sm:$0xff]
  %113 = vst [vmem:[%s110] sm:$0xff] %v112
  %s114 = scalar_lea.vmem %s2, 224
  %s115 = scalar_lea.vmem %s0, 224
  %v116 = vld [vmem:[%s115] sm:$0xff]
  %117 = vst [vmem:[%s114] sm:$0xff] %v116
  %s118 = scalar_lea.vmem %s2, 232
  %s119 = scalar_lea.vmem %s0, 232
  %v120 = vld [vmem:[%s119] sm:$0xff]
  %121 = vst [vmem:[%s118] sm:$0xff] %v120
  %s122 = scalar_lea.vmem %s2, 240
  %s123 = scalar_lea.vmem %s0, 240
  %v124 = vld [vmem:[%s123] sm:$0xff]
  %125 = vst [vmem:[%s122] sm:$0xff] %v124
  %s126 = scalar_lea.vmem %s2, 248
  %s127 = scalar_lea.vmem %s0, 248
  %v128 = vld [vmem:[%s127] sm:$0xff]
  %129 = vst [vmem:[%s126] sm:$0xff] %v128
  %v130 = vld [vmem:[%s1] sm:$0xff]
  %131 = vst [vmem:[%s3] sm:$0xff] %v130
  %s132 = scalar_lea.vmem %s3, 8
  %s133 = scalar_lea.vmem %s1, 8
  %v134 = vld [vmem:[%s133] sm:$0xff]
  %135 = vst [vmem:[%s132] sm:$0xff] %v134
  %s136 = scalar_lea.vmem %s3, 16
  %s137 = scalar_lea.vmem %s1, 16
  %v138 = vld [vmem:[%s137] sm:$0xff]
  %139 = vst [vmem:[%s136] sm:$0xff] %v138
  %s140 = scalar_lea.vmem %s3, 24
  %s141 = scalar_lea.vmem %s1, 24
  %v142 = vld [vmem:[%s141] sm:$0xff]
  %143 = vst [vmem:[%s140] sm:$0xff] %v142
  %s144 = scalar_lea.vmem %s3, 32
  %s145 = scalar_lea.vmem %s1, 32
  %v146 = vld [vmem:[%s145] sm:$0xff]
  %147 = vst [vmem:[%s144] sm:$0xff] %v146
  %s148 = scalar_lea.vmem %s3, 40
  %s149 = scalar_lea.vmem %s1, 40
  %v150 = vld [vmem:[%s149] sm:$0xff]
  %151 = vst [vmem:[%s148] sm:$0xff] %v150
  %s152 = scalar_lea.vmem %s3, 48
  %s153 = scalar_lea.vmem %s1, 48
  %v154 = vld [vmem:[%s153] sm:$0xff]
  %155 = vst [vmem:[%s152] sm:$0xff] %v154
  %s156 = scalar_lea.vmem %s3, 56
  %s157 = scalar_lea.vmem %s1, 56
  %v158 = vld [vmem:[%s157] sm:$0xff]
  %159 = vst [vmem:[%s156] sm:$0xff] %v158
  %s160 = scalar_lea.vmem %s3, 64
  %s161 = scalar_lea.vmem %s1, 64
  %v162 = vld [vmem:[%s161] sm:$0xff]
  %163 = vst [vmem:[%s160] sm:$0xff] %v162
  %s164 = scalar_lea.vmem %s3, 72
  %s165 = scalar_lea.vmem %s1, 72
  %v166 = vld [vmem:[%s165] sm:$0xff]
  %167 = vst [vmem:[%s164] sm:$0xff] %v166
  %s168 = scalar_lea.vmem %s3, 80
  %s169 = scalar_lea.vmem %s1, 80
  %v170 = vld [vmem:[%s169] sm:$0xff]
  %171 = vst [vmem:[%s168] sm:$0xff] %v170
  %s172 = scalar_lea.vmem %s3, 88
  %s173 = scalar_lea.vmem %s1, 88
  %v174 = vld [vmem:[%s173] sm:$0xff]
  %175 = vst [vmem:[%s172] sm:$0xff] %v174
  %s176 = scalar_lea.vmem %s3, 96
  %s177 = scalar_lea.vmem %s1, 96
  %v178 = vld [vmem:[%s177] sm:$0xff]
  %179 = vst [vmem:[%s176] sm:$0xff] %v178
  %s180 = scalar_lea.vmem %s3, 104
  %s181 = scalar_lea.vmem %s1, 104
  %v182 = vld [vmem:[%s181] sm:$0xff]
  %183 = vst [vmem:[%s180] sm:$0xff] %v182
  %s184 = scalar_lea.vmem %s3, 112
  %s185 = scalar_lea.vmem %s1, 112
  %v186 = vld [vmem:[%s185] sm:$0xff]
  %187 = vst [vmem:[%s184] sm:$0xff] %v186
  %s188 = scalar_lea.vmem %s3, 120
  %s189 = scalar_lea.vmem %s1, 120
  %v190 = vld [vmem:[%s189] sm:$0xff]
  %191 = vst [vmem:[%s188] sm:$0xff] %v190
  %s192 = scalar_lea.vmem %s3, 128
  %s193 = scalar_lea.vmem %s1, 128
  %v194 = vld [vmem:[%s193] sm:$0xff]
  %195 = vst [vmem:[%s192] sm:$0xff] %v194
  %s196 = scalar_lea.vmem %s3, 136
  %s197 = scalar_lea.vmem %s1, 136
  %v198 = vld [vmem:[%s197] sm:$0xff]
  %199 = vst [vmem:[%s196] sm:$0xff] %v198
  %s200 = scalar_lea.vmem %s3, 144
  %s201 = scalar_lea.vmem %s1, 144
  %v202 = vld [vmem:[%s201] sm:$0xff]
  %203 = vst [vmem:[%s200] sm:$0xff] %v202
  %s204 = scalar_lea.vmem %s3, 152
  %s205 = scalar_lea.vmem %s1, 152
  %v206 = vld [vmem:[%s205] sm:$0xff]
  %207 = vst [vmem:[%s204] sm:$0xff] %v206
  %s208 = scalar_lea.vmem %s3, 160
  %s209 = scalar_lea.vmem %s1, 160
  %v210 = vld [vmem:[%s209] sm:$0xff]
  %211 = vst [vmem:[%s208] sm:$0xff] %v210
  %s212 = scalar_lea.vmem %s3, 168
  %s213 = scalar_lea.vmem %s1, 168
  %v214 = vld [vmem:[%s213] sm:$0xff]
  %215 = vst [vmem:[%s212] sm:$0xff] %v214
  %s216 = scalar_lea.vmem %s3, 176
  %s217 = scalar_lea.vmem %s1, 176
  %v218 = vld [vmem:[%s217] sm:$0xff]
  %219 = vst [vmem:[%s216] sm:$0xff] %v218
  %s220 = scalar_lea.vmem %s3, 184
  %s221 = scalar_lea.vmem %s1, 184
  %v222 = vld [vmem:[%s221] sm:$0xff]
  %223 = vst [vmem:[%s220] sm:$0xff] %v222
  %s224 = scalar_lea.vmem %s3, 192
  %s225 = scalar_lea.vmem %s1, 192
  %v226 = vld [vmem:[%s225] sm:$0xff]
  %227 = vst [vmem:[%s224] sm:$0xff] %v226
  %s228 = scalar_lea.vmem %s3, 200
  %s229 = scalar_lea.vmem %s1, 200
  %v230 = vld [vmem:[%s229] sm:$0xff]
  %231 = vst [vmem:[%s228] sm:$0xff] %v230
  %s232 = scalar_lea.vmem %s3, 208
  %s233 = scalar_lea.vmem %s1, 208
  %v234 = vld [vmem:[%s233] sm:$0xff]
  %235 = vst [vmem:[%s232] sm:$0xff] %v234
  %s236 = scalar_lea.vmem %s3, 216
  %s237 = scalar_lea.vmem %s1, 216
  %v238 = vld [vmem:[%s237] sm:$0xff]
  %239 = vst [vmem:[%s236] sm:$0xff] %v238
  %s240 = scalar_lea.vmem %s3, 224
  %s241 = scalar_lea.vmem %s1, 224
  %v242 = vld [vmem:[%s241] sm:$0xff]
  %243 = vst [vmem:[%s240] sm:$0xff] %v242
  %s244 = scalar_lea.vmem %s3, 232
  %s245 = scalar_lea.vmem %s1, 232
  %v246 = vld [vmem:[%s245] sm:$0xff]
  %247 = vst [vmem:[%s244] sm:$0xff] %v246
  %s248 = scalar_lea.vmem %s3, 240
  %s249 = scalar_lea.vmem %s1, 240
  %v250 = vld [vmem:[%s249] sm:$0xff]
  %251 = vst [vmem:[%s248] sm:$0xff] %v250
  %s252 = scalar_lea.vmem %s3, 248
  %s253 = scalar_lea.vmem %s1, 248
  %v254 = vld [vmem:[%s253] sm:$0xff]
  %255 = vst [vmem:[%s252] sm:$0xff] %v254

// kernel: rg_aeg_block_forward.1
$region0: #{rg_aeg_block_forward.1}
  #allocation0 [shape = 'u32[]', space=smem, size = 0x4, offset = 0x4, fixed_abs, tag = 'smem constant byte address 0x4 - core index']
  #allocation1 [shape = 'u32[72,128]{1,0:T(1,128)}', space=vmem, size = 0x9000, scoped, tag = 'internal scratch']
  %s0 = inlined_call_operand.vmem [shape: f32[2,64,128], index: 0, kind: input, shape index: {}]
  %s1 = inlined_call_operand.vmem [shape: f32[16,64], index: 1, kind: input, shape index: {}]
  %s2 = inlined_call_operand.vmem [shape: f32[16,1], index: 2, kind: input, shape index: {}]
  %s3 = inlined_call_operand.vmem [shape: f32[16,128], index: 3, kind: input, shape index: {}]
  %s4 = inlined_call_operand.vmem [shape: f32[16,128], index: 4, kind: input, shape index: {}]
  %s5 = inlined_call_operand.vmem [shape: f32[48,16], index: 5, kind: input, shape index: {}]
  %s6 = inlined_call_operand.vmem [shape: f32[16,16], index: 6, kind: input, shape index: {}]
  %s7 = inlined_call_operand.vmem [shape: f32[128,128], index: 7, kind: input, shape index: {}]
  %s8 = inlined_call_operand.vmem [shape: f32[128,128], index: 8, kind: input, shape index: {}]
  %s9 = inlined_call_operand.vmem [shape: f32[8,128], index: 9, kind: input, shape index: {}]
  %s10 = inlined_call_operand.vmem [shape: f32[8,128], index: 10, kind: input, shape index: {}]
  %s11 = inlined_call_operand.vmem [shape: f32[8,128], index: 11, kind: input, shape index: {}]
  %s12 = inlined_call_operand.vmem [shape: f32[8,128], index: 12, kind: input, shape index: {}]
  %s13 = inlined_call_operand.vmem [shape: f32[12], index: 13, kind: input, shape index: {}]
  %s14 = inlined_call_operand.vmem [shape: f32[2,8,128], index: 14, kind: output, shape index: {0}]
  %s15 = inlined_call_operand.vmem [shape: f32[2,8,128], index: 15, kind: output, shape index: {1}]
  %16 = xla_tuple %s14, %s15
  %s17 = sld [smem:[#allocation0]]
  $region101: #{rg_aeg_block_forward.1} parent=0
    _
  %s19 = ssub.s32 1, %s17
  %s20 = scalar_select 0, %s19, %s17
  $region1: #{rg_aeg_block_forward.1} parent=0
    #allocation2 [shape = 'u8[512]{0}', space=smem, size = 0x200, scoped, tag = 'input window, operand 13, single buffered']
    #allocation3 [shape = 's32[2]{0}', space=sflag, size = 0x8, scoped, tag = 'scoped memory for rg_aeg_block_forward.1']
    %21 = vsyncpa [#allocation3], 0
    loop: start=0, step=1, limit=4
    $region2: #{rg_aeg_block_forward.1} parent=1 // loop_pre_header
      _
    $region3: #{rg_aeg_block_forward.1} parent=1 // loop_header
      %s23 = sphi 0, %s27
      %p24 = scmp.ge.s32.totalorder %s23, 4
      %s33 = sphi 0, %s35
      %s36 = sphi 0, %s33
      %s37 = sphi 0, %s36
      %s53 = sphi 0, %s37
      %s57 = sphi 0, %s57
      %s59 = sphi 0, %s57
      %s60 = sphi 0, %s59
      %s74 = sphi 0, %s60
      %s78 = sphi 0, %s78
      %s80 = sphi 0, %s78
      %s81 = sphi 0, %s80
      %s95 = sphi 0, %s81
      %s99 = sphi 0, %s99
      %s101 = sphi 0, %s99
      %s102 = sphi 0, %s101
      %s116 = sphi 0, %s102
      %s120 = sphi 0, %s120
      %s122 = sphi 0, %s120
      %s123 = sphi 0, %s122
      %s137 = sphi 0, %s123
      %s141 = sphi 0, %s141
      %s143 = sphi 0, %s141
      %s144 = sphi 0, %s143
      %s158 = sphi 0, %s144
      %s162 = sphi 0, %s162
      %s164 = sphi 0, %s162
      %s165 = sphi 0, %s164
      %s179 = sphi 0, %s165
      %s183 = sphi 0, %s183
      %s185 = sphi 0, %s183
      %s186 = sphi 0, %s185
      %s200 = sphi 0, %s186
      %s204 = sphi 0, %s204
      %s206 = sphi 0, %s204
      %s207 = sphi 0, %s206
      %s221 = sphi 0, %s207
      %s225 = sphi 0, %s225
      %s227 = sphi 0, %s225
      %s228 = sphi 0, %s227
      %s242 = sphi 0, %s228
      %s246 = sphi 0, %s246
      %s248 = sphi 0, %s246
      %s249 = sphi 0, %s248
      %s263 = sphi 0, %s249
      %s267 = sphi 0, %s267
      %s269 = sphi 0, %s267
      %s270 = sphi 0, %s269
      %s284 = sphi 0, %s270
      %s288 = sphi 0, %s288
      %s290 = sphi 0, %s288
      %s291 = sphi 0, %s290
      %s305 = sphi 0, %s291
      %s309 = sphi 0, %s309
      %s311 = sphi 0, %s309
      %s312 = sphi 0, %s311
      %s326 = sphi 0, %s312
      %s332 = sphi 0, %s334
      %s335 = sphi 0, %s332
      %s336 = sphi 0, %s335
      %s352 = sphi 0, %s336
      %s358 = sphi 0, %s360
      %s361 = sphi 0, %s358
      %s362 = sphi 0, %s361
      %s378 = sphi 0, %s362
    $region4: #{rg_aeg_block_forward.1} parent=1 // loop_header_branch
      %26 = sbr.rel (%p24) target = $region8
    $region5: #{rg_aeg_block_forward.1} parent=1 // loop_body
      %s28 = ssub.s32 %s23, 1
      %s29 = ssub.s32 %s23, 2
      %s30 = sadd.s32 %s23, 1
      %s31 = ssub.s32 %s23, %s30
      %p32 = scmp.eq.s32.totalorder %s31, 0
      %s34 = sadd.s32 %s33, 1
      %s35 = scalar_select %p32, %s33, %s34
      %p38 = pneg %p32
      %p39 = scmp.eq.s32.totalorder %s23, 1
      %p40 = por %p38, %p39
      %p41 = scmp.ne.s32.totalorder %s33, %s36
      %p42 = scmp.eq.s32.totalorder %s23, 0
      %p43 = por %p41, %p42
      %p44 = scmp.ne.s32.totalorder %s33, %s36
      %p45 = scmp.eq.s32.totalorder %s28, 1
      %p46 = por %p44, %p45
      %p47 = scmp.ne.s32.totalorder %s36, %s37
      %p48 = scmp.eq.s32.totalorder %s28, 0
      %p49 = por %p47, %p48
      %p50 = scmp.ne.s32.totalorder %s36, %s37
      %p51 = scmp.eq.s32.totalorder %s29, 1
      %p52 = por %p50, %p51
      %p54 = scmp.ne.s32.totalorder %s37, %s53
      %p55 = scmp.eq.s32.totalorder %s29, 0
      %p56 = por %p54, %p55
      %s58 = sadd.s32 %s57, 1
      %p61 = scmp.eq.s32.totalorder %s23, 1
      %p62 = scmp.ne.s32.totalorder %s57, %s59
      %p63 = scmp.eq.s32.totalorder %s23, 0
      %p64 = por %p62, %p63
      %p65 = scmp.ne.s32.totalorder %s57, %s59
      %p66 = scmp.eq.s32.totalorder %s28, 1
      %p67 = por %p65, %p66
      %p68 = scmp.ne.s32.totalorder %s59, %s60
      %p69 = scmp.eq.s32.totalorder %s28, 0
      %p70 = por %p68, %p69
      %p71 = scmp.ne.s32.totalorder %s59, %s60
      %p72 = scmp.eq.s32.totalorder %s29, 1
      %p73 = por %p71, %p72
      %p75 = scmp.ne.s32.totalorder %s60, %s74
      %p76 = scmp.eq.s32.totalorder %s29, 0
      %p77 = por %p75, %p76
      %s79 = sadd.s32 %s78, 1
      %p82 = scmp.eq.s32.totalorder %s23, 1
      %p83 = scmp.ne.s32.totalorder %s78, %s80
      %p84 = scmp.eq.s32.totalorder %s23, 0
      %p85 = por %p83, %p84
      %p86 = scmp.ne.s32.totalorder %s78, %s80
      %p87 = scmp.eq.s32.totalorder %s28, 1
      %p88 = por %p86, %p87
      %p89 = scmp.ne.s32.totalorder %s80, %s81
      %p90 = scmp.eq.s32.totalorder %s28, 0
      %p91 = por %p89, %p90
      %p92 = scmp.ne.s32.totalorder %s80, %s81
      %p93 = scmp.eq.s32.totalorder %s29, 1
      %p94 = por %p92, %p93
      %p96 = scmp.ne.s32.totalorder %s81, %s95
      %p97 = scmp.eq.s32.totalorder %s29, 0
      %p98 = por %p96, %p97
      %s100 = sadd.s32 %s99, 1
      %p103 = scmp.eq.s32.totalorder %s23, 1
      %p104 = scmp.ne.s32.totalorder %s99, %s101
      %p105 = scmp.eq.s32.totalorder %s23, 0
      %p106 = por %p104, %p105
      %p107 = scmp.ne.s32.totalorder %s99, %s101
      %p108 = scmp.eq.s32.totalorder %s28, 1
      %p109 = por %p107, %p108
      %p110 = scmp.ne.s32.totalorder %s101, %s102
      %p111 = scmp.eq.s32.totalorder %s28, 0
      %p112 = por %p110, %p111
      %p113 = scmp.ne.s32.totalorder %s101, %s102
      %p114 = scmp.eq.s32.totalorder %s29, 1
      %p115 = por %p113, %p114
      %p117 = scmp.ne.s32.totalorder %s102, %s116
      %p118 = scmp.eq.s32.totalorder %s29, 0
      %p119 = por %p117, %p118
      %s121 = sadd.s32 %s120, 1
      %p124 = scmp.eq.s32.totalorder %s23, 1
      %p125 = scmp.ne.s32.totalorder %s120, %s122
      %p126 = scmp.eq.s32.totalorder %s23, 0
      %p127 = por %p125, %p126
      %p128 = scmp.ne.s32.totalorder %s120, %s122
      %p129 = scmp.eq.s32.totalorder %s28, 1
      %p130 = por %p128, %p129
      %p131 = scmp.ne.s32.totalorder %s122, %s123
      %p132 = scmp.eq.s32.totalorder %s28, 0
      %p133 = por %p131, %p132
      %p134 = scmp.ne.s32.totalorder %s122, %s123
      %p135 = scmp.eq.s32.totalorder %s29, 1
      %p136 = por %p134, %p135
      %p138 = scmp.ne.s32.totalorder %s123, %s137
      %p139 = scmp.eq.s32.totalorder %s29, 0
      %p140 = por %p138, %p139
      %s142 = sadd.s32 %s141, 1
      %p145 = scmp.eq.s32.totalorder %s23, 1
      %p146 = scmp.ne.s32.totalorder %s141, %s143
      %p147 = scmp.eq.s32.totalorder %s23, 0
      %p148 = por %p146, %p147
      %p149 = scmp.ne.s32.totalorder %s141, %s143
      %p150 = scmp.eq.s32.totalorder %s28, 1
      %p151 = por %p149, %p150
      %p152 = scmp.ne.s32.totalorder %s143, %s144
      %p153 = scmp.eq.s32.totalorder %s28, 0
      %p154 = por %p152, %p153
      %p155 = scmp.ne.s32.totalorder %s143, %s144
      %p156 = scmp.eq.s32.totalorder %s29, 1
      %p157 = por %p155, %p156
      %p159 = scmp.ne.s32.totalorder %s144, %s158
      %p160 = scmp.eq.s32.totalorder %s29, 0
      %p161 = por %p159, %p160
      %s163 = sadd.s32 %s162, 1
      %p166 = scmp.eq.s32.totalorder %s23, 1
      %p167 = scmp.ne.s32.totalorder %s162, %s164
      %p168 = scmp.eq.s32.totalorder %s23, 0
      %p169 = por %p167, %p168
      %p170 = scmp.ne.s32.totalorder %s162, %s164
      %p171 = scmp.eq.s32.totalorder %s28, 1
      %p172 = por %p170, %p171
      %p173 = scmp.ne.s32.totalorder %s164, %s165
      %p174 = scmp.eq.s32.totalorder %s28, 0
      %p175 = por %p173, %p174
      %p176 = scmp.ne.s32.totalorder %s164, %s165
      %p177 = scmp.eq.s32.totalorder %s29, 1
      %p178 = por %p176, %p177
      %p180 = scmp.ne.s32.totalorder %s165, %s179
      %p181 = scmp.eq.s32.totalorder %s29, 0
      %p182 = por %p180, %p181
      %s184 = sadd.s32 %s183, 1
      %p187 = scmp.eq.s32.totalorder %s23, 1
      %p188 = scmp.ne.s32.totalorder %s183, %s185
      %p189 = scmp.eq.s32.totalorder %s23, 0
      %p190 = por %p188, %p189
      %p191 = scmp.ne.s32.totalorder %s183, %s185
      %p192 = scmp.eq.s32.totalorder %s28, 1
      %p193 = por %p191, %p192
      %p194 = scmp.ne.s32.totalorder %s185, %s186
      %p195 = scmp.eq.s32.totalorder %s28, 0
      %p196 = por %p194, %p195
      %p197 = scmp.ne.s32.totalorder %s185, %s186
      %p198 = scmp.eq.s32.totalorder %s29, 1
      %p199 = por %p197, %p198
      %p201 = scmp.ne.s32.totalorder %s186, %s200
      %p202 = scmp.eq.s32.totalorder %s29, 0
      %p203 = por %p201, %p202
      %s205 = sadd.s32 %s204, 1
      %p208 = scmp.eq.s32.totalorder %s23, 1
      %p209 = scmp.ne.s32.totalorder %s204, %s206
      %p210 = scmp.eq.s32.totalorder %s23, 0
      %p211 = por %p209, %p210
      %p212 = scmp.ne.s32.totalorder %s204, %s206
      %p213 = scmp.eq.s32.totalorder %s28, 1
      %p214 = por %p212, %p213
      %p215 = scmp.ne.s32.totalorder %s206, %s207
      %p216 = scmp.eq.s32.totalorder %s28, 0
      %p217 = por %p215, %p216
      %p218 = scmp.ne.s32.totalorder %s206, %s207
      %p219 = scmp.eq.s32.totalorder %s29, 1
      %p220 = por %p218, %p219
      %p222 = scmp.ne.s32.totalorder %s207, %s221
      %p223 = scmp.eq.s32.totalorder %s29, 0
      %p224 = por %p222, %p223
      %s226 = sadd.s32 %s225, 1
      %p229 = scmp.eq.s32.totalorder %s23, 1
      %p230 = scmp.ne.s32.totalorder %s225, %s227
      %p231 = scmp.eq.s32.totalorder %s23, 0
      %p232 = por %p230, %p231
      %p233 = scmp.ne.s32.totalorder %s225, %s227
      %p234 = scmp.eq.s32.totalorder %s28, 1
      %p235 = por %p233, %p234
      %p236 = scmp.ne.s32.totalorder %s227, %s228
      %p237 = scmp.eq.s32.totalorder %s28, 0
      %p238 = por %p236, %p237
      %p239 = scmp.ne.s32.totalorder %s227, %s228
      %p240 = scmp.eq.s32.totalorder %s29, 1
      %p241 = por %p239, %p240
      %p243 = scmp.ne.s32.totalorder %s228, %s242
      %p244 = scmp.eq.s32.totalorder %s29, 0
      %p245 = por %p243, %p244
      %s247 = sadd.s32 %s246, 1
      %p250 = scmp.eq.s32.totalorder %s23, 1
      %p251 = scmp.ne.s32.totalorder %s246, %s248
      %p252 = scmp.eq.s32.totalorder %s23, 0
      %p253 = por %p251, %p252
      %p254 = scmp.ne.s32.totalorder %s246, %s248
      %p255 = scmp.eq.s32.totalorder %s28, 1
      %p256 = por %p254, %p255
      %p257 = scmp.ne.s32.totalorder %s248, %s249
      %p258 = scmp.eq.s32.totalorder %s28, 0
      %p259 = por %p257, %p258
      %p260 = scmp.ne.s32.totalorder %s248, %s249
      %p261 = scmp.eq.s32.totalorder %s29, 1
      %p262 = por %p260, %p261
      %p264 = scmp.ne.s32.totalorder %s249, %s263
      %p265 = scmp.eq.s32.totalorder %s29, 0
      %p266 = por %p264, %p265
      %s268 = sadd.s32 %s267, 1
      %p271 = scmp.eq.s32.totalorder %s23, 1
      %p272 = scmp.ne.s32.totalorder %s267, %s269
      %p273 = scmp.eq.s32.totalorder %s23, 0
      %p274 = por %p272, %p273
      %p275 = scmp.ne.s32.totalorder %s267, %s269
      %p276 = scmp.eq.s32.totalorder %s28, 1
      %p277 = por %p275, %p276
      %p278 = scmp.ne.s32.totalorder %s269, %s270
      %p279 = scmp.eq.s32.totalorder %s28, 0
      %p280 = por %p278, %p279
      %p281 = scmp.ne.s32.totalorder %s269, %s270
      %p282 = scmp.eq.s32.totalorder %s29, 1
      %p283 = por %p281, %p282
      %p285 = scmp.ne.s32.totalorder %s270, %s284
      %p286 = scmp.eq.s32.totalorder %s29, 0
      %p287 = por %p285, %p286
      %s289 = sadd.s32 %s288, 1
      %p292 = scmp.eq.s32.totalorder %s23, 1
      %p293 = scmp.ne.s32.totalorder %s288, %s290
      %p294 = scmp.eq.s32.totalorder %s23, 0
      %p295 = por %p293, %p294
      %p296 = scmp.ne.s32.totalorder %s288, %s290
      %p297 = scmp.eq.s32.totalorder %s28, 1
      %p298 = por %p296, %p297
      %p299 = scmp.ne.s32.totalorder %s290, %s291
      %p300 = scmp.eq.s32.totalorder %s28, 0
      %p301 = por %p299, %p300
      %p302 = scmp.ne.s32.totalorder %s290, %s291
      %p303 = scmp.eq.s32.totalorder %s29, 1
      %p304 = por %p302, %p303
      %p306 = scmp.ne.s32.totalorder %s291, %s305
      %p307 = scmp.eq.s32.totalorder %s29, 0
      %p308 = por %p306, %p307
      %s310 = sadd.s32 %s309, 1
      %p313 = scmp.eq.s32.totalorder %s23, 1
      %p314 = scmp.ne.s32.totalorder %s309, %s311
      %p315 = scmp.eq.s32.totalorder %s23, 0
      %p316 = por %p314, %p315
      %p317 = scmp.ne.s32.totalorder %s309, %s311
      %p318 = scmp.eq.s32.totalorder %s28, 1
      %p319 = por %p317, %p318
      %p320 = scmp.ne.s32.totalorder %s311, %s312
      %p321 = scmp.eq.s32.totalorder %s28, 0
      %p322 = por %p320, %p321
      %p323 = scmp.ne.s32.totalorder %s311, %s312
      %p324 = scmp.eq.s32.totalorder %s29, 1
      %p325 = por %p323, %p324
      %p327 = scmp.ne.s32.totalorder %s312, %s326
      %p328 = scmp.eq.s32.totalorder %s29, 0
      %p329 = por %p327, %p328
      %s330 = ssub.s32 %s23, %s30
      %p331 = scmp.eq.s32.totalorder %s330, 0
      %s333 = sadd.s32 %s332, 1
      %s334 = scalar_select %p331, %s332, %s333
      %p337 = pneg %p331
      %p338 = scmp.eq.s32.totalorder %s23, 1
      %p339 = por %p337, %p338
      %p340 = scmp.ne.s32.totalorder %s332, %s335
      %p341 = scmp.eq.s32.totalorder %s23, 0
      %p342 = por %p340, %p341
      %p343 = scmp.ne.s32.totalorder %s332, %s335
      %p344 = scmp.eq.s32.totalorder %s28, 1
      %p345 = por %p343, %p344
      %p346 = scmp.ne.s32.totalorder %s335, %s336
      %p347 = scmp.eq.s32.totalorder %s28, 0
      %p348 = por %p346, %p347
      %p349 = scmp.ne.s32.totalorder %s335, %s336
      %p350 = scmp.eq.s32.totalorder %s29, 1
      %p351 = por %p349, %p350
      %p353 = scmp.ne.s32.totalorder %s336, %s352
      %p354 = scmp.eq.s32.totalorder %s29, 0
      %p355 = por %p353, %p354
      %s356 = ssub.s32 %s23, %s30
      %p357 = scmp.eq.s32.totalorder %s356, 0
      %s359 = sadd.s32 %s358, 1
      %s360 = scalar_select %p357, %s358, %s359
      %p363 = pneg %p357
      %p364 = scmp.eq.s32.totalorder %s23, 1
      %p365 = por %p363, %p364
      %p366 = scmp.ne.s32.totalorder %s358, %s361
      %p367 = scmp.eq.s32.totalorder %s23, 0
      %p368 = por %p366, %p367
      %p369 = scmp.ne.s32.totalorder %s358, %s361
      %p370 = scmp.eq.s32.totalorder %s28, 1
      %p371 = por %p369, %p370
      %p372 = scmp.ne.s32.totalorder %s361, %s362
      %p373 = scmp.eq.s32.totalorder %s28, 0
      %p374 = por %p372, %p373
      %p375 = scmp.ne.s32.totalorder %s361, %s362
      %p376 = scmp.eq.s32.totalorder %s29, 1
      %p377 = por %p375, %p376
      %p379 = scmp.ne.s32.totalorder %s362, %s378
      %p380 = scmp.eq.s32.totalorder %s29, 0
      %p381 = por %p379, %p380
      %p382 = scmp.le.s32.totalorder 1, %s23
      %p383 = scmp.lt.s32.totalorder %s23, 3
      %p384 = pnand %p382, %p383
      %p385 = pneg %p384
      // Predicated region
      $region9: #{rg_aeg_block_forward.1} parent=5 // pred_check
        _
      $region10: #{rg_aeg_block_forward.1} parent=5 // pred_check_branch
        %387 = sbr.rel (%p384) target = $region12
      $region11: #{rg_aeg_block_forward.1} parent=5 // pred_region
        %s388 = ssub.s32 %s23, 1
        // Predicated region
        $region13: #{rg_aeg_block_forward.1} parent=11 // pred_check
          %p389 = pneg %p70
        $region14: #{rg_aeg_block_forward.1} parent=11 // pred_check_branch
          %391 = sbr.rel (%p389) target = $region16
        $region15: #{rg_aeg_block_forward.1} parent=11 // pred_region
          _
        $region16: #{rg_aeg_block_forward.1} parent=11 // pred_fallthru
          _
        // Predicated region
        $region17: #{rg_aeg_block_forward.1} parent=11 // pred_check
          %p392 = pneg %p91
        $region18: #{rg_aeg_block_forward.1} parent=11 // pred_check_branch
          %394 = sbr.rel (%p392) target = $region20
        $region19: #{rg_aeg_block_forward.1} parent=11 // pred_region
          _
        $region20: #{rg_aeg_block_forward.1} parent=11 // pred_fallthru
          _
        // Predicated region
        $region21: #{rg_aeg_block_forward.1} parent=11 // pred_check
          %p395 = pneg %p112
        $region22: #{rg_aeg_block_forward.1} parent=11 // pred_check_branch
          %397 = sbr.rel (%p395) target = $region24
        $region23: #{rg_aeg_block_forward.1} parent=11 // pred_region
          _
        $region24: #{rg_aeg_block_forward.1} parent=11 // pred_fallthru
          _
        // Predicated region
        $region25: #{rg_aeg_block_forward.1} parent=11 // pred_check
          %p398 = pneg %p133
        $region26: #{rg_aeg_block_forward.1} parent=11 // pred_check_branch
          %400 = sbr.rel (%p398) target = $region28
        $region27: #{rg_aeg_block_forward.1} parent=11 // pred_region
          _
        $region28: #{rg_aeg_block_forward.1} parent=11 // pred_fallthru
          _
        // Predicated region
        $region29: #{rg_aeg_block_forward.1} parent=11 // pred_check
          %p401 = pneg %p154
        $region30: #{rg_aeg_block_forward.1} parent=11 // pred_check_branch
          %403 = sbr.rel (%p401) target = $region32
        $region31: #{rg_aeg_block_forward.1} parent=11 // pred_region
          _
        $region32: #{rg_aeg_block_forward.1} parent=11 // pred_fallthru
          _
        // Predicated region
        $region33: #{rg_aeg_block_forward.1} parent=11 // pred_check
          %p404 = pneg %p175
        $region34: #{rg_aeg_block_forward.1} parent=11 // pred_check_branch
          %406 = sbr.rel (%p404) target = $region36
        $region35: #{rg_aeg_block_forward.1} parent=11 // pred_region
          _
        $region36: #{rg_aeg_block_forward.1} parent=11 // pred_fallthru
          _
        // Predicated region
        $region37: #{rg_aeg_block_forward.1} parent=11 // pred_check
          %p407 = pneg %p196
        $region38: #{rg_aeg_block_forward.1} parent=11 // pred_check_branch
          %409 = sbr.rel (%p407) target = $region40
        $region39: #{rg_aeg_block_forward.1} parent=11 // pred_region
          _
        $region40: #{rg_aeg_block_forward.1} parent=11 // pred_fallthru
          _
        // Predicated region
        $region41: #{rg_aeg_block_forward.1} parent=11 // pred_check
          %p410 = pneg %p217
        $region42: #{rg_aeg_block_forward.1} parent=11 // pred_check_branch
          %412 = sbr.rel (%p410) target = $region44
        $region43: #{rg_aeg_block_forward.1} parent=11 // pred_region
          _
        $region44: #{rg_aeg_block_forward.1} parent=11 // pred_fallthru
          _
        // Predicated region
        $region45: #{rg_aeg_block_forward.1} parent=11 // pred_check
          %p413 = pneg %p238
        $region46: #{rg_aeg_block_forward.1} parent=11 // pred_check_branch
          %415 = sbr.rel (%p413) target = $region48
        $region47: #{rg_aeg_block_forward.1} parent=11 // pred_region
          _
        $region48: #{rg_aeg_block_forward.1} parent=11 // pred_fallthru
          _
        // Predicated region
        $region49: #{rg_aeg_block_forward.1} parent=11 // pred_check
          %p416 = pneg %p259
        $region50: #{rg_aeg_block_forward.1} parent=11 // pred_check_branch
          %418 = sbr.rel (%p416) target = $region52
        $region51: #{rg_aeg_block_forward.1} parent=11 // pred_region
          _
        $region52: #{rg_aeg_block_forward.1} parent=11 // pred_fallthru
          _
        // Predicated region
        $region53: #{rg_aeg_block_forward.1} parent=11 // pred_check
          %p419 = pneg %p280
        $region54: #{rg_aeg_block_forward.1} parent=11 // pred_check_branch
          %421 = sbr.rel (%p419) target = $region56
        $region55: #{rg_aeg_block_forward.1} parent=11 // pred_region
          _
        $region56: #{rg_aeg_block_forward.1} parent=11 // pred_fallthru
          _
        // Predicated region
        $region57: #{rg_aeg_block_forward.1} parent=11 // pred_check
          %p422 = pneg %p301
        $region58: #{rg_aeg_block_forward.1} parent=11 // pred_check_branch
          %424 = sbr.rel (%p422) target = $region60
        $region59: #{rg_aeg_block_forward.1} parent=11 // pred_region
          _
        $region60: #{rg_aeg_block_forward.1} parent=11 // pred_fallthru
          _
        // Predicated region
        $region61: #{rg_aeg_block_forward.1} parent=11 // pred_check
          %p425 = pneg %p322
        $region62: #{rg_aeg_block_forward.1} parent=11 // pred_check_branch
          %427 = sbr.rel (%p425) target = $region64
        $region63: #{rg_aeg_block_forward.1} parent=11 // pred_region
          %429 = vsyncadd [#allocation3], 0
          %s431 = sshll.u32 %s13, 4
          %s432 = int_to_ptr.vmem [resolvable:$true] %s431
          %434 = dma.vmem_to_smem %s432, 16, [#allocation2], [#allocation3]
        $region64: #{rg_aeg_block_forward.1} parent=11 // pred_fallthru
          _
      $region12: #{rg_aeg_block_forward.1} parent=5 // pred_fallthru
        _
      %p435 = scmp.lt.s32.totalorder %s23, 2
      // Predicated region
      $region65: #{rg_aeg_block_forward.1} parent=5 // pred_check
        %p436 = pneg %p435
      $region66: #{rg_aeg_block_forward.1} parent=5 // pred_check_branch
        %438 = sbr.rel (%p436) target = $region68
      $region67: #{rg_aeg_block_forward.1} parent=5 // pred_region
        // Predicated region
        $region69: #{rg_aeg_block_forward.1} parent=67 // pred_check
          %p439 = pneg %p43
        $region70: #{rg_aeg_block_forward.1} parent=67 // pred_check_branch
          %441 = sbr.rel (%p439) target = $region72
        $region71: #{rg_aeg_block_forward.1} parent=67 // pred_region
          %p442 = scmp.lt.s32.totalorder %s23, 1
          %s443 = scalar_select %p442, %s23, 1
          %s444 = smul.addr %s443, 8
          %s445 = smul.addr %s444, 8
          %s446 = scalar_lea.vmem %s0, %s445
        $region72: #{rg_aeg_block_forward.1} parent=67 // pred_fallthru
          _
      $region68: #{rg_aeg_block_forward.1} parent=5 // pred_fallthru
        _
      %p447 = scmp.le.s32.totalorder 1, %s23
      %p448 = scmp.lt.s32.totalorder %s23, 3
      %p449 = pnand %p447, %p448
      %p450 = pneg %p449
      // Predicated region
      $region73: #{rg_aeg_block_forward.1} parent=5 // pred_check
        _
      $region74: #{rg_aeg_block_forward.1} parent=5 // pred_check_branch
        %452 = sbr.rel (%p449) target = $region76
      $region75: #{rg_aeg_block_forward.1} parent=5 // pred_region
        %s453 = ssub.s32 %s23, 1
        // Predicated region
        $region77: #{rg_aeg_block_forward.1} parent=75 // pred_check
          %p454 = pneg %p322
        $region78: #{rg_aeg_block_forward.1} parent=75 // pred_check_branch
          %456 = sbr.rel (%p454) target = $region80
        $region79: #{rg_aeg_block_forward.1} parent=75 // pred_region
          %458 = dma.done [#allocation3], 16
        $region80: #{rg_aeg_block_forward.1} parent=75 // pred_fallthru
          _
        %459 = sfence
        %p460 = scmp.lt.s32.totalorder %s28, 1
        %s461 = scalar_select %p460, %s28, 1
        %s462 = smul.addr %s461, 8
        %s463 = smul.addr %s462, 8
        %s464 = scalar_lea.vmem %s0, %s463
        %p465 = pneg %p49
        %p466 = pneg %p46
        %p467 = pneg %p70
        %p468 = pneg %p67
        %p469 = pneg %p91
        %p470 = pneg %p88
        %p471 = pneg %p112
        %p472 = pneg %p109
        %p473 = pneg %p133
        %p474 = pneg %p130
        %p475 = pneg %p154
        %p476 = pneg %p151
        %p477 = pneg %p175
        %p478 = pneg %p172
        %p479 = pneg %p196
        %p480 = pneg %p193
        %p481 = pneg %p217
        %p482 = pneg %p214
        %p483 = pneg %p238
        %p484 = pneg %p235
        %p485 = pneg %p259
        %p486 = pneg %p256
        %p487 = pneg %p280
        %p488 = pneg %p277
        %p489 = pneg %p301
        %p490 = pneg %p298
        %p491 = pneg %p322
        %p492 = pneg %p319
        %p493 = pneg %p348
        %p494 = pneg %p345
        %p495 = scmp.lt.s32.totalorder %s28, 1
        %s496 = scalar_select %p495, %s28, 1
        %s497 = smul.addr %s496, 8
        %s498 = scalar_lea.vmem %s14, %s497
        %p499 = pneg %p374
        %p500 = pneg %p371
        %p501 = scmp.lt.s32.totalorder %s28, 1
        %s502 = scalar_select %p501, %s28, 1
        %s503 = smul.addr %s502, 8
        %s504 = scalar_lea.vmem %s15, %s503
        %p505 = scmp.lt.s32.totalorder %s28, 1
        %s506 = scalar_select %p505, %s28, 1
        %s507 = smul.addr %s506, 8
        %s508 = smul.addr %s507, 8
        %s509 = scalar_lea.vmem %s0, %s508
        %p510 = scmp.lt.s32.totalorder %s28, 1
        %s511 = scalar_select %p510, %s28, 1
        %s512 = smul.addr %s511, 8
        %s513 = scalar_lea.vmem %s14, %s512
        %p514 = scmp.lt.s32.totalorder %s28, 1
        %s515 = scalar_select %p514, %s28, 1
        %s516 = smul.addr %s515, 8
        %s517 = scalar_lea.vmem %s15, %s516
        %v519 = vld [vmem:[%s509] sm:$0xff]
        %v520 = vld [vmem:[%s509 + $0x8] sm:$0xff]
        %v521 = vld [vmem:[%s509 + $0x10] sm:$0xff]
        %v522 = vld [vmem:[%s509 + $0x18] sm:$0xff]
        %v523 = vld [vmem:[%s509 + $0x20] sm:$0xff]
        %v524 = vld [vmem:[%s509 + $0x28] sm:$0xff]
        %v525 = vld [vmem:[%s509 + $0x30] sm:$0xff]
        %v526 = vld [vmem:[%s509 + $0x38] sm:$0xff]
        %v527 = vld [vmem:[%s8] sm:$0xff]
        %v528 = vld [vmem:[%s8 + $0x8] sm:$0xff]
        %v529 = vld [vmem:[%s8 + $0x10] sm:$0xff]
        %v530 = vld [vmem:[%s8 + $0x18] sm:$0xff]
        %v531 = vld [vmem:[%s8 + $0x20] sm:$0xff]
        %v532 = vld [vmem:[%s8 + $0x28] sm:$0xff]
        %v533 = vld [vmem:[%s8 + $0x30] sm:$0xff]
        %v534 = vld [vmem:[%s8 + $0x38] sm:$0xff]
        %v535 = vld [vmem:[%s8 + $0x40] sm:$0xff]
        %v536 = vld [vmem:[%s8 + $0x48] sm:$0xff]
        %v537 = vld [vmem:[%s8 + $0x50] sm:$0xff]
        %v538 = vld [vmem:[%s8 + $0x58] sm:$0xff]
        %v539 = vld [vmem:[%s8 + $0x60] sm:$0xff]
        %v540 = vld [vmem:[%s8 + $0x68] sm:$0xff]
        %v541 = vld [vmem:[%s8 + $0x70] sm:$0xff]
        %v542 = vld [vmem:[%s8 + $0x78] sm:$0xff]
        %v543 = vld [vmem:[%s1] sm:$0xff]
        %v544 = vld [vmem:[%s1 + $0x8] sm:$0xff]
        %v545 = vpack.c.bf16 %v544, %v543
        %v546 = vpack.c.bf16 %v520, %v519
        %v547 = vpack.c.bf16 %v522, %v521
        %v548 = vpack.c.bf16 %v524, %v523
        %v549 = vpack.c.bf16 %v526, %v525
        %v550 = vld [vmem:[%s2] sm:$0xff]
        %v551 = vld [vmem:[%s2 + $0x8] sm:$0xff]
        %553 = vset.pattern.permute.xlu0 0
        %554 = vperm.xlu0 %553, %v550
        %v555 = vpop.permute.xlu0 %554
        %558 = vset.pattern.permute.xlu0 0
        %559 = vperm.xlu0 %558, %v551
        %v560 = vpop.permute.xlu0 %559
        %vm562 = vcmask 523264
        %v564 = vsel %vm562, %v545, 0
        %566 = vmatpush.bf16.msra.mxu0 0
        %567 = vmatpush.bf16.msra.mxu0 0
        %568 = vmatpush.bf16.msra.mxu0 0
        %569 = vmatpush.bf16.msra.mxu0 0
        %570 = vmatpush.bf16.msra.mxu0 %v549
        %571 = vmatpush.bf16.msra.mxu0 %v548
        %572 = vmatpush.bf16.msra.mxu0 %v547
        %573 = vmatpush.bf16.msra.mxu0 %v546
        %574 = vmatmul.bf16.gmra.mxu0 %v564
        %v575 = vpop.f32.mrf.mxu0
        %v576 = vadd.f32 %v555, %v575
        %v577 = vpop.f32.mrf.mxu0
        %v578 = vadd.f32 %v560, %v577
        %579 = vdwg.mxu0
        %v580 = vld [vmem:[%s3] sm:$0xff]
        %v581 = vld [vmem:[%s3 + $0x8] sm:$0xff]
        %v582 = vld [vmem:[%s4] sm:$0xff]
        %v583 = vld [vmem:[%s4 + $0x8] sm:$0xff]
        %v584 = vadd.f32 %v576, %v578
        %v585 = vrot.slane %v584, 4
        %v586 = vadd.f32 %v584, %v585
        %v587 = vrot.slane %v586, 2
        %v588 = vadd.f32 %v586, %v587
        %v589 = vrot.slane %v588, 1
        %v590 = vadd.f32 %v588, %v589
        %v591 = vand.u32 %v542, 4294901760
        %592 = vmatpush.msra.mxu0 %v591
        %v593 = vand.u32 %v541, 4294901760
        %594 = vmatpush.msra.mxu0 %v593
        %v595 = vand.u32 %v540, 4294901760
        %596 = vmatpush.msra.mxu0 %v595
        %v597 = vand.u32 %v539, 4294901760
        %598 = vmatpush.msra.mxu0 %v597
        %v599 = vand.u32 %v538, 4294901760
        %600 = vmatpush.msra.mxu0 %v599
        %v601 = vand.u32 %v537, 4294901760
        %602 = vmatpush.msra.mxu0 %v601
        %v603 = vand.u32 %v536, 4294901760
        %604 = vmatpush.msra.mxu0 %v603
        %v605 = vand.u32 %v535, 4294901760
        %606 = vmatpush.msra.mxu0 %v605
        %v607 = vand.u32 %v534, 4294901760
        %608 = vmatpush.msra.mxu0 %v607
        %v609 = vand.u32 %v533, 4294901760
        %610 = vmatpush.msra.mxu0 %v609
        %v611 = vand.u32 %v532, 4294901760
        %612 = vmatpush.msra.mxu0 %v611
        %v613 = vand.u32 %v531, 4294901760
        %614 = vmatpush.msra.mxu0 %v613
        %v615 = vand.u32 %v530, 4294901760
        %616 = vmatpush.msra.mxu0 %v615
        %v617 = vand.u32 %v529, 4294901760
        %618 = vmatpush.msra.mxu0 %v617
        %v619 = vand.u32 %v528, 4294901760
        %620 = vmatpush.msra.mxu0 %v619
        %v621 = vand.u32 %v527, 4294901760
        %622 = vmatpush.msra.mxu0 %v621
        %v623 = vand.u32 %v590, 4294901760
        %v624 = vsub.f32 %v590, %v623
        %v625 = vand.u32 %v624, 4294901760
        %v626 = vsub.f32 %v624, %v625
        %v627 = vand.u32 %v626, 4294901760
        %628 = vmatmul.f32.gmra.mxu0 %v627
        %v629 = vpop.f32.mrf.mxu0
        %v630 = vadd.f32 0.0, %v629
        %631 = vdwg.mxu0
        %v632 = vand.u32 %v542, 4294901760
        %v633 = vsub.f32 %v542, %v632
        %v634 = vand.u32 %v633, 4294901760
        %v635 = vsub.f32 %v633, %v634
        %v636 = vand.u32 %v635, 4294901760
        %637 = vmatpush.msra.mxu0 %v636
        %v638 = vand.u32 %v541, 4294901760
        %v639 = vsub.f32 %v541, %v638
        %v640 = vand.u32 %v639, 4294901760
        %v641 = vsub.f32 %v639, %v640
        %v642 = vand.u32 %v641, 4294901760
        %643 = vmatpush.msra.mxu0 %v642
        %v644 = vand.u32 %v540, 4294901760
        %v645 = vsub.f32 %v540, %v644
        %v646 = vand.u32 %v645, 4294901760
        %v647 = vsub.f32 %v645, %v646
        %v648 = vand.u32 %v647, 4294901760
        %649 = vmatpush.msra.mxu0 %v648
        %v650 = vand.u32 %v539, 4294901760
        %v651 = vsub.f32 %v539, %v650
        %v652 = vand.u32 %v651, 4294901760
        %v653 = vsub.f32 %v651, %v652
        %v654 = vand.u32 %v653, 4294901760
        %655 = vmatpush.msra.mxu0 %v654
        %v656 = vand.u32 %v538, 4294901760
        %v657 = vsub.f32 %v538, %v656
        %v658 = vand.u32 %v657, 4294901760
        %v659 = vsub.f32 %v657, %v658
        %v660 = vand.u32 %v659, 4294901760
        %661 = vmatpush.msra.mxu0 %v660
        %v662 = vand.u32 %v537, 4294901760
        %v663 = vsub.f32 %v537, %v662
        %v664 = vand.u32 %v663, 4294901760
        %v665 = vsub.f32 %v663, %v664
        %v666 = vand.u32 %v665, 4294901760
        %667 = vmatpush.msra.mxu0 %v666
        %v668 = vand.u32 %v536, 4294901760
        %v669 = vsub.f32 %v536, %v668
        %v670 = vand.u32 %v669, 4294901760
        %v671 = vsub.f32 %v669, %v670
        %v672 = vand.u32 %v671, 4294901760
        %673 = vmatpush.msra.mxu0 %v672
        %v674 = vand.u32 %v535, 4294901760
        %v675 = vsub.f32 %v535, %v674
        %v676 = vand.u32 %v675, 4294901760
        %v677 = vsub.f32 %v675, %v676
        %v678 = vand.u32 %v677, 4294901760
        %679 = vmatpush.msra.mxu0 %v678
        %v680 = vand.u32 %v534, 4294901760
        %v681 = vsub.f32 %v534, %v680
        %v682 = vand.u32 %v681, 4294901760
        %v683 = vsub.f32 %v681, %v682
        %v684 = vand.u32 %v683, 4294901760
        %685 = vmatpush.msra.mxu0 %v684
        %v686 = vand.u32 %v533, 4294901760
        %v687 = vsub.f32 %v533, %v686
        %v688 = vand.u32 %v687, 4294901760
        %v689 = vsub.f32 %v687, %v688
        %v690 = vand.u32 %v689, 4294901760
        %691 = vmatpush.msra.mxu0 %v690
        %v692 = vand.u32 %v532, 4294901760
        %v693 = vsub.f32 %v532, %v692
        %v694 = vand.u32 %v693, 4294901760
        %v695 = vsub.f32 %v693, %v694
        %v696 = vand.u32 %v695, 4294901760
        %697 = vmatpush.msra.mxu0 %v696
        %v698 = vand.u32 %v531, 4294901760
        %v699 = vsub.f32 %v531, %v698
        %v700 = vand.u32 %v699, 4294901760
        %v701 = vsub.f32 %v699, %v700
        %v702 = vand.u32 %v701, 4294901760
        %703 = vmatpush.msra.mxu0 %v702
        %v704 = vand.u32 %v530, 4294901760
        %v705 = vsub.f32 %v530, %v704
        %v706 = vand.u32 %v705, 4294901760
        %v707 = vsub.f32 %v705, %v706
        %v708 = vand.u32 %v707, 4294901760
        %709 = vmatpush.msra.mxu0 %v708
        %v710 = vand.u32 %v529, 4294901760
        %v711 = vsub.f32 %v529, %v710
        %v712 = vand.u32 %v711, 4294901760
        %v713 = vsub.f32 %v711, %v712
        %v714 = vand.u32 %v713, 4294901760
        %715 = vmatpush.msra.mxu0 %v714
        %v716 = vand.u32 %v528, 4294901760
        %v717 = vsub.f32 %v528, %v716
        %v718 = vand.u32 %v717, 4294901760
        %v719 = vsub.f32 %v717, %v718
        %v720 = vand.u32 %v719, 4294901760
        %721 = vmatpush.msra.mxu0 %v720
        %v722 = vand.u32 %v527, 4294901760
        %v723 = vsub.f32 %v527, %v722
        %v724 = vand.u32 %v723, 4294901760
        %v725 = vsub.f32 %v723, %v724
        %v726 = vand.u32 %v725, 4294901760
        %727 = vmatpush.msra.mxu0 %v726
        %v728 = vand.u32 %v590, 4294901760
        %729 = vmatmul.f32.gmra.mxu0 %v728
        %v730 = vpop.f32.mrf.mxu0
        %v731 = vadd.f32 %v630, %v730
        %732 = vdwg.mxu0
        %v733 = vand.u32 %v542, 4294901760
        %v734 = vsub.f32 %v542, %v733
        %735 = vmatpush.msra.mxu0 %v734
        %v736 = vand.u32 %v541, 4294901760
        %v737 = vsub.f32 %v541, %v736
        %738 = vmatpush.msra.mxu0 %v737
        %v739 = vand.u32 %v540, 4294901760
        %v740 = vsub.f32 %v540, %v739
        %741 = vmatpush.msra.mxu0 %v740
        %v742 = vand.u32 %v539, 4294901760
        %v743 = vsub.f32 %v539, %v742
        %744 = vmatpush.msra.mxu0 %v743
        %v745 = vand.u32 %v538, 4294901760
        %v746 = vsub.f32 %v538, %v745
        %747 = vmatpush.msra.mxu0 %v746
        %v748 = vand.u32 %v537, 4294901760
        %v749 = vsub.f32 %v537, %v748
        %750 = vmatpush.msra.mxu0 %v749
        %v751 = vand.u32 %v536, 4294901760
        %v752 = vsub.f32 %v536, %v751
        %753 = vmatpush.msra.mxu0 %v752
        %v754 = vand.u32 %v535, 4294901760
        %v755 = vsub.f32 %v535, %v754
        %756 = vmatpush.msra.mxu0 %v755
        %v757 = vand.u32 %v534, 4294901760
        %v758 = vsub.f32 %v534, %v757
        %759 = vmatpush.msra.mxu0 %v758
        %v760 = vand.u32 %v533, 4294901760
        %v761 = vsub.f32 %v533, %v760
        %762 = vmatpush.msra.mxu0 %v761
        %v763 = vand.u32 %v532, 4294901760
        %v764 = vsub.f32 %v532, %v763
        %765 = vmatpush.msra.mxu0 %v764
        %v766 = vand.u32 %v531, 4294901760
        %v767 = vsub.f32 %v531, %v766
        %768 = vmatpush.msra.mxu0 %v767
        %v769 = vand.u32 %v530, 4294901760
        %v770 = vsub.f32 %v530, %v769
        %771 = vmatpush.msra.mxu0 %v770
        %v772 = vand.u32 %v529, 4294901760
        %v773 = vsub.f32 %v529, %v772
        %774 = vmatpush.msra.mxu0 %v773
        %v775 = vand.u32 %v528, 4294901760
        %v776 = vsub.f32 %v528, %v775
        %777 = vmatpush.msra.mxu0 %v776
        %v778 = vand.u32 %v527, 4294901760
        %v779 = vsub.f32 %v527, %v778
        %780 = vmatpush.msra.mxu0 %v779
        %v781 = vand.u32 %v590, 4294901760
        %v782 = vsub.f32 %v590, %v781
        %783 = vmatmul.f32.gmra.mxu0 %v782
        %v784 = vpop.f32.mrf.mxu0
        %v785 = vadd.f32 %v731, %v784
        %786 = vdwg.mxu0
        %v787 = vand.u32 %v542, 4294901760
        %788 = vmatpush.msra.mxu0 %v787
        %v789 = vand.u32 %v541, 4294901760
        %790 = vmatpush.msra.mxu0 %v789
        %v791 = vand.u32 %v540, 4294901760
        %792 = vmatpush.msra.mxu0 %v791
        %v793 = vand.u32 %v539, 4294901760
        %794 = vmatpush.msra.mxu0 %v793
        %v795 = vand.u32 %v538, 4294901760
        %796 = vmatpush.msra.mxu0 %v795
        %v797 = vand.u32 %v537, 4294901760
        %798 = vmatpush.msra.mxu0 %v797
        %v799 = vand.u32 %v536, 4294901760
        %800 = vmatpush.msra.mxu0 %v799
        %v801 = vand.u32 %v535, 4294901760
        %802 = vmatpush.msra.mxu0 %v801
        %v803 = vand.u32 %v534, 4294901760
        %804 = vmatpush.msra.mxu0 %v803
        %v805 = vand.u32 %v533, 4294901760
        %806 = vmatpush.msra.mxu0 %v805
        %v807 = vand.u32 %v532, 4294901760
        %808 = vmatpush.msra.mxu0 %v807
        %v809 = vand.u32 %v531, 4294901760
        %810 = vmatpush.msra.mxu0 %v809
        %v811 = vand.u32 %v530, 4294901760
        %812 = vmatpush.msra.mxu0 %v811
        %v813 = vand.u32 %v529, 4294901760
        %814 = vmatpush.msra.mxu0 %v813
        %v815 = vand.u32 %v528, 4294901760
        %816 = vmatpush.msra.mxu0 %v815
        %v817 = vand.u32 %v527, 4294901760
        %818 = vmatpush.msra.mxu0 %v817
        %v819 = vand.u32 %v590, 4294901760
        %v820 = vsub.f32 %v590, %v819
        %v821 = vand.u32 %v820, 4294901760
        %822 = vmatmul.f32.gmra.mxu0 %v821
        %v823 = vpop.f32.mrf.mxu0
        %v824 = vadd.f32 %v785, %v823
        %825 = vdwg.mxu0
        %v826 = vand.u32 %v542, 4294901760
        %v827 = vsub.f32 %v542, %v826
        %v828 = vand.u32 %v827, 4294901760
        %829 = vmatpush.msra.mxu0 %v828
        %v830 = vand.u32 %v541, 4294901760
        %v831 = vsub.f32 %v541, %v830
        %v832 = vand.u32 %v831, 4294901760
        %833 = vmatpush.msra.mxu0 %v832
        %v834 = vand.u32 %v540, 4294901760
        %v835 = vsub.f32 %v540, %v834
        %v836 = vand.u32 %v835, 4294901760
        %837 = vmatpush.msra.mxu0 %v836
        %v838 = vand.u32 %v539, 4294901760
        %v839 = vsub.f32 %v539, %v838
        %v840 = vand.u32 %v839, 4294901760
        %841 = vmatpush.msra.mxu0 %v840
        %v842 = vand.u32 %v538, 4294901760
        %v843 = vsub.f32 %v538, %v842
        %v844 = vand.u32 %v843, 4294901760
        %845 = vmatpush.msra.mxu0 %v844
        %v846 = vand.u32 %v537, 4294901760
        %v847 = vsub.f32 %v537, %v846
        %v848 = vand.u32 %v847, 4294901760
        %849 = vmatpush.msra.mxu0 %v848
        %v850 = vand.u32 %v536, 4294901760
        %v851 = vsub.f32 %v536, %v850
        %v852 = vand.u32 %v851, 4294901760
        %853 = vmatpush.msra.mxu0 %v852
        %v854 = vand.u32 %v535, 4294901760
        %v855 = vsub.f32 %v535, %v854
        %v856 = vand.u32 %v855, 4294901760
        %857 = vmatpush.msra.mxu0 %v856
        %v858 = vand.u32 %v534, 4294901760
        %v859 = vsub.f32 %v534, %v858
        %v860 = vand.u32 %v859, 4294901760
        %861 = vmatpush.msra.mxu0 %v860
        %v862 = vand.u32 %v533, 4294901760
        %v863 = vsub.f32 %v533, %v862
        %v864 = vand.u32 %v863, 4294901760
        %865 = vmatpush.msra.mxu0 %v864
        %v866 = vand.u32 %v532, 4294901760
        %v867 = vsub.f32 %v532, %v866
        %v868 = vand.u32 %v867, 4294901760
        %869 = vmatpush.msra.mxu0 %v868
        %v870 = vand.u32 %v531, 4294901760
        %v871 = vsub.f32 %v531, %v870
        %v872 = vand.u32 %v871, 4294901760
        %873 = vmatpush.msra.mxu0 %v872
        %v874 = vand.u32 %v530, 4294901760
        %v875 = vsub.f32 %v530, %v874
        %v876 = vand.u32 %v875, 4294901760
        %877 = vmatpush.msra.mxu0 %v876
        %v878 = vand.u32 %v529, 4294901760
        %v879 = vsub.f32 %v529, %v878
        %v880 = vand.u32 %v879, 4294901760
        %881 = vmatpush.msra.mxu0 %v880
        %v882 = vand.u32 %v528, 4294901760
        %v883 = vsub.f32 %v528, %v882
        %v884 = vand.u32 %v883, 4294901760
        %885 = vmatpush.msra.mxu0 %v884
        %v886 = vand.u32 %v527, 4294901760
        %v887 = vsub.f32 %v527, %v886
        %v888 = vand.u32 %v887, 4294901760
        %889 = vmatpush.msra.mxu0 %v888
        %v890 = vand.u32 %v590, 4294901760
        %891 = vmatmul.f32.gmra.mxu0 %v890
        %v892 = vpop.f32.mrf.mxu0
        %v893 = vadd.f32 %v824, %v892
        %894 = vdwg.mxu0
        %v895 = vand.u32 %v542, 4294901760
        %896 = vmatpush.msra.mxu0 %v895
        %v897 = vand.u32 %v541, 4294901760
        %898 = vmatpush.msra.mxu0 %v897
        %v899 = vand.u32 %v540, 4294901760
        %900 = vmatpush.msra.mxu0 %v899
        %v901 = vand.u32 %v539, 4294901760
        %902 = vmatpush.msra.mxu0 %v901
        %v903 = vand.u32 %v538, 4294901760
        %904 = vmatpush.msra.mxu0 %v903
        %v905 = vand.u32 %v537, 4294901760
        %906 = vmatpush.msra.mxu0 %v905
        %v907 = vand.u32 %v536, 4294901760
        %908 = vmatpush.msra.mxu0 %v907
        %v909 = vand.u32 %v535, 4294901760
        %910 = vmatpush.msra.mxu0 %v909
        %v911 = vand.u32 %v534, 4294901760
        %912 = vmatpush.msra.mxu0 %v911
        %v913 = vand.u32 %v533, 4294901760
        %914 = vmatpush.msra.mxu0 %v913
        %v915 = vand.u32 %v532, 4294901760
        %916 = vmatpush.msra.mxu0 %v915
        %v917 = vand.u32 %v531, 4294901760
        %918 = vmatpush.msra.mxu0 %v917
        %v919 = vand.u32 %v530, 4294901760
        %920 = vmatpush.msra.mxu0 %v919
        %v921 = vand.u32 %v529, 4294901760
        %922 = vmatpush.msra.mxu0 %v921
        %v923 = vand.u32 %v528, 4294901760
        %924 = vmatpush.msra.mxu0 %v923
        %v925 = vand.u32 %v527, 4294901760
        %926 = vmatpush.msra.mxu0 %v925
        %v927 = vand.u32 %v590, 4294901760
        %928 = vmatmul.f32.gmra.mxu0 %v927
        %v929 = vpop.f32.mrf.mxu0
        %v930 = vadd.f32 %v893, %v929
        %931 = vdwg.mxu0
        %v932 = vmul.f32 %v930, 0.0009765625
        %v933 = vperm.slane %v932, 0
        %v934 = vsub.f32 %v576, %v933
        %v935 = vsub.f32 %v578, %v933
        %v936 = vmul.f32 %v934, %v934
        %v937 = vmul.f32 %v935, %v935
        %v938 = vadd.f32 %v936, %v937
        %v939 = vrot.slane %v938, 4
        %v940 = vadd.f32 %v938, %v939
        %v941 = vrot.slane %v940, 2
        %v942 = vadd.f32 %v940, %v941
        %v943 = vrot.slane %v942, 1
        %v944 = vadd.f32 %v942, %v943
        %v945 = vand.u32 %v542, 4294901760
        %946 = vmatpush.msra.mxu0 %v945
        %v947 = vand.u32 %v541, 4294901760
        %948 = vmatpush.msra.mxu0 %v947
        %v949 = vand.u32 %v540, 4294901760
        %950 = vmatpush.msra.mxu0 %v949
        %v951 = vand.u32 %v539, 4294901760
        %952 = vmatpush.msra.mxu0 %v951
        %v953 = vand.u32 %v538, 4294901760
        %954 = vmatpush.msra.mxu0 %v953
        %v955 = vand.u32 %v537, 4294901760
        %956 = vmatpush.msra.mxu0 %v955
        %v957 = vand.u32 %v536, 4294901760
        %958 = vmatpush.msra.mxu0 %v957
        %v959 = vand.u32 %v535, 4294901760
        %960 = vmatpush.msra.mxu0 %v959
        %v961 = vand.u32 %v534, 4294901760
        %962 = vmatpush.msra.mxu0 %v961
        %v963 = vand.u32 %v533, 4294901760
        %964 = vmatpush.msra.mxu0 %v963
        %v965 = vand.u32 %v532, 4294901760
        %966 = vmatpush.msra.mxu0 %v965
        %v967 = vand.u32 %v531, 4294901760
        %968 = vmatpush.msra.mxu0 %v967
        %v969 = vand.u32 %v530, 4294901760
        %970 = vmatpush.msra.mxu0 %v969
        %v971 = vand.u32 %v529, 4294901760
        %972 = vmatpush.msra.mxu0 %v971
        %v973 = vand.u32 %v528, 4294901760
        %974 = vmatpush.msra.mxu0 %v973
        %v975 = vand.u32 %v527, 4294901760
        %976 = vmatpush.msra.mxu0 %v975
        %v977 = vand.u32 %v944, 4294901760
        %v978 = vsub.f32 %v944, %v977
        %v979 = vand.u32 %v978, 4294901760
        %v980 = vsub.f32 %v978, %v979
        %v981 = vand.u32 %v980, 4294901760
        %982 = vmatmul.f32.gmra.mxu0 %v981
        %v983 = vpop.f32.mrf.mxu0
        %v984 = vadd.f32 0.0, %v983
        %985 = vdwg.mxu0
        %v986 = vand.u32 %v542, 4294901760
        %v987 = vsub.f32 %v542, %v986
        %v988 = vand.u32 %v987, 4294901760
        %v989 = vsub.f32 %v987, %v988
        %v990 = vand.u32 %v989, 4294901760
        %991 = vmatpush.msra.mxu0 %v990
        %v992 = vand.u32 %v541, 4294901760
        %v993 = vsub.f32 %v541, %v992
        %v994 = vand.u32 %v993, 4294901760
        %v995 = vsub.f32 %v993, %v994
        %v996 = vand.u32 %v995, 4294901760
        %997 = vmatpush.msra.mxu0 %v996
        %v998 = vand.u32 %v540, 4294901760
        %v999 = vsub.f32 %v540, %v998
        %v1000 = vand.u32 %v999, 4294901760
        %v1001 = vsub.f32 %v999, %v1000
        %v1002 = vand.u32 %v1001, 4294901760
        %1003 = vmatpush.msra.mxu0 %v1002
        %v1004 = vand.u32 %v539, 4294901760
        %v1005 = vsub.f32 %v539, %v1004
        %v1006 = vand.u32 %v1005, 4294901760
        %v1007 = vsub.f32 %v1005, %v1006
        %v1008 = vand.u32 %v1007, 4294901760
        %1009 = vmatpush.msra.mxu0 %v1008
        %v1010 = vand.u32 %v538, 4294901760
        %v1011 = vsub.f32 %v538, %v1010
        %v1012 = vand.u32 %v1011, 4294901760
        %v1013 = vsub.f32 %v1011, %v1012
        %v1014 = vand.u32 %v1013, 4294901760
        %1015 = vmatpush.msra.mxu0 %v1014
        %v1016 = vand.u32 %v537, 4294901760
        %v1017 = vsub.f32 %v537, %v1016
        %v1018 = vand.u32 %v1017, 4294901760
        %v1019 = vsub.f32 %v1017, %v1018
        %v1020 = vand.u32 %v1019, 4294901760
        %1021 = vmatpush.msra.mxu0 %v1020
        %v1022 = vand.u32 %v536, 4294901760
        %v1023 = vsub.f32 %v536, %v1022
        %v1024 = vand.u32 %v1023, 4294901760
        %v1025 = vsub.f32 %v1023, %v1024
        %v1026 = vand.u32 %v1025, 4294901760
        %1027 = vmatpush.msra.mxu0 %v1026
        %v1028 = vand.u32 %v535, 4294901760
        %v1029 = vsub.f32 %v535, %v1028
        %v1030 = vand.u32 %v1029, 4294901760
        %v1031 = vsub.f32 %v1029, %v1030
        %v1032 = vand.u32 %v1031, 4294901760
        %1033 = vmatpush.msra.mxu0 %v1032
        %v1034 = vand.u32 %v534, 4294901760
        %v1035 = vsub.f32 %v534, %v1034
        %v1036 = vand.u32 %v1035, 4294901760
        %v1037 = vsub.f32 %v1035, %v1036
        %v1038 = vand.u32 %v1037, 4294901760
        %1039 = vmatpush.msra.mxu0 %v1038
        %v1040 = vand.u32 %v533, 4294901760
        %v1041 = vsub.f32 %v533, %v1040
        %v1042 = vand.u32 %v1041, 4294901760
        %v1043 = vsub.f32 %v1041, %v1042
        %v1044 = vand.u32 %v1043, 4294901760
        %1045 = vmatpush.msra.mxu0 %v1044
        %v1046 = vand.u32 %v532, 4294901760
        %v1047 = vsub.f32 %v532, %v1046
        %v1048 = vand.u32 %v1047, 4294901760
        %v1049 = vsub.f32 %v1047, %v1048
        %v1050 = vand.u32 %v1049, 4294901760
        %1051 = vmatpush.msra.mxu0 %v1050
        %v1052 = vand.u32 %v531, 4294901760
        %v1053 = vsub.f32 %v531, %v1052
        %v1054 = vand.u32 %v1053, 4294901760
        %v1055 = vsub.f32 %v1053, %v1054
        %v1056 = vand.u32 %v1055, 4294901760
        %1057 = vmatpush.msra.mxu0 %v1056
        %v1058 = vand.u32 %v530, 4294901760
        %v1059 = vsub.f32 %v530, %v1058
        %v1060 = vand.u32 %v1059, 4294901760
        %v1061 = vsub.f32 %v1059, %v1060
        %v1062 = vand.u32 %v1061, 4294901760
        %1063 = vmatpush.msra.mxu0 %v1062
        %v1064 = vand.u32 %v529, 4294901760
        %v1065 = vsub.f32 %v529, %v1064
        %v1066 = vand.u32 %v1065, 4294901760
        %v1067 = vsub.f32 %v1065, %v1066
        %v1068 = vand.u32 %v1067, 4294901760
        %1069 = vmatpush.msra.mxu0 %v1068
        %v1070 = vand.u32 %v528, 4294901760
        %v1071 = vsub.f32 %v528, %v1070
        %v1072 = vand.u32 %v1071, 4294901760
        %v1073 = vsub.f32 %v1071, %v1072
        %v1074 = vand.u32 %v1073, 4294901760
        %1075 = vmatpush.msra.mxu0 %v1074
        %v1076 = vand.u32 %v527, 4294901760
        %v1077 = vsub.f32 %v527, %v1076
        %v1078 = vand.u32 %v1077, 4294901760
        %v1079 = vsub.f32 %v1077, %v1078
        %v1080 = vand.u32 %v1079, 4294901760
        %1081 = vmatpush.msra.mxu0 %v1080
        %v1082 = vand.u32 %v944, 4294901760
        %1083 = vmatmul.f32.gmra.mxu0 %v1082
        %v1084 = vpop.f32.mrf.mxu0
        %v1085 = vadd.f32 %v984, %v1084
        %1086 = vdwg.mxu0
        %v1087 = vand.u32 %v542, 4294901760
        %v1088 = vsub.f32 %v542, %v1087
        %1089 = vmatpush.msra.mxu0 %v1088
        %v1090 = vand.u32 %v541, 4294901760
        %v1091 = vsub.f32 %v541, %v1090
        %1092 = vmatpush.msra.mxu0 %v1091
        %v1093 = vand.u32 %v540, 4294901760
        %v1094 = vsub.f32 %v540, %v1093
        %1095 = vmatpush.msra.mxu0 %v1094
        %v1096 = vand.u32 %v539, 4294901760
        %v1097 = vsub.f32 %v539, %v1096
        %1098 = vmatpush.msra.mxu0 %v1097
        %v1099 = vand.u32 %v538, 4294901760
        %v1100 = vsub.f32 %v538, %v1099
        %1101 = vmatpush.msra.mxu0 %v1100
        %v1102 = vand.u32 %v537, 4294901760
        %v1103 = vsub.f32 %v537, %v1102
        %1104 = vmatpush.msra.mxu0 %v1103
        %v1105 = vand.u32 %v536, 4294901760
        %v1106 = vsub.f32 %v536, %v1105
        %1107 = vmatpush.msra.mxu0 %v1106
        %v1108 = vand.u32 %v535, 4294901760
        %v1109 = vsub.f32 %v535, %v1108
        %1110 = vmatpush.msra.mxu0 %v1109
        %v1111 = vand.u32 %v534, 4294901760
        %v1112 = vsub.f32 %v534, %v1111
        %1113 = vmatpush.msra.mxu0 %v1112
        %v1114 = vand.u32 %v533, 4294901760
        %v1115 = vsub.f32 %v533, %v1114
        %1116 = vmatpush.msra.mxu0 %v1115
        %v1117 = vand.u32 %v532, 4294901760
        %v1118 = vsub.f32 %v532, %v1117
        %1119 = vmatpush.msra.mxu0 %v1118
        %v1120 = vand.u32 %v531, 4294901760
        %v1121 = vsub.f32 %v531, %v1120
        %1122 = vmatpush.msra.mxu0 %v1121
        %v1123 = vand.u32 %v530, 4294901760
        %v1124 = vsub.f32 %v530, %v1123
        %1125 = vmatpush.msra.mxu0 %v1124
        %v1126 = vand.u32 %v529, 4294901760
        %v1127 = vsub.f32 %v529, %v1126
        %1128 = vmatpush.msra.mxu0 %v1127
        %v1129 = vand.u32 %v528, 4294901760
        %v1130 = vsub.f32 %v528, %v1129
        %1131 = vmatpush.msra.mxu0 %v1130
        %v1132 = vand.u32 %v527, 4294901760
        %v1133 = vsub.f32 %v527, %v1132
        %1134 = vmatpush.msra.mxu0 %v1133
        %v1135 = vand.u32 %v944, 4294901760
        %v1136 = vsub.f32 %v944, %v1135
        %1137 = vmatmul.f32.gmra.mxu0 %v1136
        %v1138 = vpop.f32.mrf.mxu0
        %v1139 = vadd.f32 %v1085, %v1138
        %1140 = vdwg.mxu0
        %v1141 = vand.u32 %v542, 4294901760
        %1142 = vmatpush.msra.mxu0 %v1141
        %v1143 = vand.u32 %v541, 4294901760
        %1144 = vmatpush.msra.mxu0 %v1143
        %v1145 = vand.u32 %v540, 4294901760
        %1146 = vmatpush.msra.mxu0 %v1145
        %v1147 = vand.u32 %v539, 4294901760
        %1148 = vmatpush.msra.mxu0 %v1147
        %v1149 = vand.u32 %v538, 4294901760
        %1150 = vmatpush.msra.mxu0 %v1149
        %v1151 = vand.u32 %v537, 4294901760
        %1152 = vmatpush.msra.mxu0 %v1151
        %v1153 = vand.u32 %v536, 4294901760
        %1154 = vmatpush.msra.mxu0 %v1153
        %v1155 = vand.u32 %v535, 4294901760
        %1156 = vmatpush.msra.mxu0 %v1155
        %v1157 = vand.u32 %v534, 4294901760
        %1158 = vmatpush.msra.mxu0 %v1157
        %v1159 = vand.u32 %v533, 4294901760
        %1160 = vmatpush.msra.mxu0 %v1159
        %v1161 = vand.u32 %v532, 4294901760
        %1162 = vmatpush.msra.mxu0 %v1161
        %v1163 = vand.u32 %v531, 4294901760
        %1164 = vmatpush.msra.mxu0 %v1163
        %v1165 = vand.u32 %v530, 4294901760
        %1166 = vmatpush.msra.mxu0 %v1165
        %v1167 = vand.u32 %v529, 4294901760
        %1168 = vmatpush.msra.mxu0 %v1167
        %v1169 = vand.u32 %v528, 4294901760
        %1170 = vmatpush.msra.mxu0 %v1169
        %v1171 = vand.u32 %v527, 4294901760
        %1172 = vmatpush.msra.mxu0 %v1171
        %v1173 = vand.u32 %v944, 4294901760
        %v1174 = vsub.f32 %v944, %v1173
        %v1175 = vand.u32 %v1174, 4294901760
        %1176 = vmatmul.f32.gmra.mxu0 %v1175
        %v1177 = vpop.f32.mrf.mxu0
        %v1178 = vadd.f32 %v1139, %v1177
        %1179 = vdwg.mxu0
        %v1180 = vand.u32 %v542, 4294901760
        %v1181 = vsub.f32 %v542, %v1180
        %v1182 = vand.u32 %v1181, 4294901760
        %1183 = vmatpush.msra.mxu0 %v1182
        %v1184 = vand.u32 %v541, 4294901760
        %v1185 = vsub.f32 %v541, %v1184
        %v1186 = vand.u32 %v1185, 4294901760
        %1187 = vmatpush.msra.mxu0 %v1186
        %v1188 = vand.u32 %v540, 4294901760
        %v1189 = vsub.f32 %v540, %v1188
        %v1190 = vand.u32 %v1189, 4294901760
        %1191 = vmatpush.msra.mxu0 %v1190
        %v1192 = vand.u32 %v539, 4294901760
        %v1193 = vsub.f32 %v539, %v1192
        %v1194 = vand.u32 %v1193, 4294901760
        %1195 = vmatpush.msra.mxu0 %v1194
        %v1196 = vand.u32 %v538, 4294901760
        %v1197 = vsub.f32 %v538, %v1196
        %v1198 = vand.u32 %v1197, 4294901760
        %1199 = vmatpush.msra.mxu0 %v1198
        %v1200 = vand.u32 %v537, 4294901760
        %v1201 = vsub.f32 %v537, %v1200
        %v1202 = vand.u32 %v1201, 4294901760
        %1203 = vmatpush.msra.mxu0 %v1202
        %v1204 = vand.u32 %v536, 4294901760
        %v1205 = vsub.f32 %v536, %v1204
        %v1206 = vand.u32 %v1205, 4294901760
        %1207 = vmatpush.msra.mxu0 %v1206
        %v1208 = vand.u32 %v535, 4294901760
        %v1209 = vsub.f32 %v535, %v1208
        %v1210 = vand.u32 %v1209, 4294901760
        %1211 = vmatpush.msra.mxu0 %v1210
        %v1212 = vand.u32 %v534, 4294901760
        %v1213 = vsub.f32 %v534, %v1212
        %v1214 = vand.u32 %v1213, 4294901760
        %1215 = vmatpush.msra.mxu0 %v1214
        %v1216 = vand.u32 %v533, 4294901760
        %v1217 = vsub.f32 %v533, %v1216
        %v1218 = vand.u32 %v1217, 4294901760
        %1219 = vmatpush.msra.mxu0 %v1218
        %v1220 = vand.u32 %v532, 4294901760
        %v1221 = vsub.f32 %v532, %v1220
        %v1222 = vand.u32 %v1221, 4294901760
        %1223 = vmatpush.msra.mxu0 %v1222
        %v1224 = vand.u32 %v531, 4294901760
        %v1225 = vsub.f32 %v531, %v1224
        %v1226 = vand.u32 %v1225, 4294901760
        %1227 = vmatpush.msra.mxu0 %v1226
        %v1228 = vand.u32 %v530, 4294901760
        %v1229 = vsub.f32 %v530, %v1228
        %v1230 = vand.u32 %v1229, 4294901760
        %1231 = vmatpush.msra.mxu0 %v1230
        %v1232 = vand.u32 %v529, 4294901760
        %v1233 = vsub.f32 %v529, %v1232
        %v1234 = vand.u32 %v1233, 4294901760
        %1235 = vmatpush.msra.mxu0 %v1234
        %v1236 = vand.u32 %v528, 4294901760
        %v1237 = vsub.f32 %v528, %v1236
        %v1238 = vand.u32 %v1237, 4294901760
        %1239 = vmatpush.msra.mxu0 %v1238
        %v1240 = vand.u32 %v527, 4294901760
        %v1241 = vsub.f32 %v527, %v1240
        %v1242 = vand.u32 %v1241, 4294901760
        %1243 = vmatpush.msra.mxu0 %v1242
        %v1244 = vand.u32 %v944, 4294901760
        %1245 = vmatmul.f32.gmra.mxu0 %v1244
        %v1246 = vpop.f32.mrf.mxu0
        %v1247 = vadd.f32 %v1178, %v1246
        %1248 = vdwg.mxu0
        %v1249 = vand.u32 %v542, 4294901760
        %1250 = vmatpush.msra.mxu0 %v1249
        %v1251 = vand.u32 %v541, 4294901760
        %1252 = vmatpush.msra.mxu0 %v1251
        %v1253 = vand.u32 %v540, 4294901760
        %1254 = vmatpush.msra.mxu0 %v1253
        %v1255 = vand.u32 %v539, 4294901760
        %1256 = vmatpush.msra.mxu0 %v1255
        %v1257 = vand.u32 %v538, 4294901760
        %1258 = vmatpush.msra.mxu0 %v1257
        %v1259 = vand.u32 %v537, 4294901760
        %1260 = vmatpush.msra.mxu0 %v1259
        %v1261 = vand.u32 %v536, 4294901760
        %1262 = vmatpush.msra.mxu0 %v1261
        %v1263 = vand.u32 %v535, 4294901760
        %1264 = vmatpush.msra.mxu0 %v1263
        %v1265 = vand.u32 %v534, 4294901760
        %1266 = vmatpush.msra.mxu0 %v1265
        %v1267 = vand.u32 %v533, 4294901760
        %1268 = vmatpush.msra.mxu0 %v1267
        %v1269 = vand.u32 %v532, 4294901760
        %1270 = vmatpush.msra.mxu0 %v1269
        %v1271 = vand.u32 %v531, 4294901760
        %1272 = vmatpush.msra.mxu0 %v1271
        %v1273 = vand.u32 %v530, 4294901760
        %1274 = vmatpush.msra.mxu0 %v1273
        %v1275 = vand.u32 %v529, 4294901760
        %1276 = vmatpush.msra.mxu0 %v1275
        %v1277 = vand.u32 %v528, 4294901760
        %1278 = vmatpush.msra.mxu0 %v1277
        %v1279 = vand.u32 %v527, 4294901760
        %1280 = vmatpush.msra.mxu0 %v1279
        %v1281 = vand.u32 %v944, 4294901760
        %1282 = vmatmul.f32.gmra.mxu0 %v1281
        %v1283 = vpop.f32.mrf.mxu0
        %v1284 = vadd.f32 %v1247, %v1283
        %1285 = vdwg.mxu0
        %v1286 = vmul.f32 %v1284, 0.0009765625
        %v1287 = vadd.f32 %v1286, 1e-05
        %v1288 = vrsqrt.pop %v1287
        %v1289 = vmul.f32 %v1288, %v1287
        %v1290 = vmul.f32 %v1289, %v1288
        %v1291 = vmul.f32 0.5, %v1290
        %v1292 = vsub.f32 1.5, %v1291
        %v1293 = vmul.f32 %v1288, %v1292
        %vm1294 = vweird.f32 %v1287
        %vm1295 = vweird.f32 %v1288
        %vm1296 = vmor %vm1294, %vm1295
        %v1297 = vsel %vm1296, %v1288, %v1293
        %v1298 = vperm.slane %v1297, 0
        %v1299 = vmul.f32 %v934, %v1298
        %v1300 = vmul.f32 %v935, %v1298
        %v1301 = vmul.f32 %v1299, %v580
        %v1302 = vmul.f32 %v1300, %v581
        %v1303 = vadd.f32 %v1301, %v582
        %v1304 = vadd.f32 %v1302, %v583
        %v1305 = vpack.c.bf16 %v1304, %v1303
        %v1306 = vld [vmem:[%s5] sm:$0xff]
        %v1307 = vld [vmem:[%s5 + $0x8] sm:$0xff]
        %v1308 = vld [vmem:[%s5 + $0x10] sm:$0xff]
        %v1309 = vld [vmem:[%s5 + $0x18] sm:$0xff]
        %v1310 = vld [vmem:[%s5 + $0x20] sm:$0xff]
        %v1311 = vld [vmem:[%s5 + $0x28] sm:$0xff]
        %v1312 = vpack.c.bf16 %v1307, %v1306
        %v1313 = vpack.c.bf16 %v1309, %v1308
        %v1314 = vpack.c.bf16 %v1311, %v1310
        %vm1315 = vcmask 130048
        %v1317 = vsel %vm1315, %v1312, 0
        %v1320 = vsel %vm1315, %v1313, 0
        %v1323 = vsel %vm1315, %v1314, 0
        %1325 = vmatpush.bf16.msra.mxu0 0
        %1326 = vmatpush.bf16.msra.mxu0 0
        %1327 = vmatpush.bf16.msra.mxu0 0
        %1328 = vmatpush.bf16.msra.mxu0 0
        %1329 = vmatpush.bf16.msra.mxu0 0
        %1330 = vmatpush.bf16.msra.mxu0 0
        %1331 = vmatpush.bf16.msra.mxu0 0
        %1332 = vmatpush.bf16.msra.mxu0 %v1305
        %1333 = vmatmul.bf16.gmra.mxu0 %v1317
        %v1334 = vpop.f32.mrf.mxu0
        %v1335 = vadd.f32 0.0, %v1334
        %v1336 = vpop.f32.mrf.mxu0
        %v1337 = vadd.f32 0.0, %v1336
        %1338 = vmatmul.bf16.gmra.mxu0 %v1320
        %v1339 = vpop.f32.mrf.mxu0
        %v1340 = vadd.f32 0.0, %v1339
        %v1341 = vpop.f32.mrf.mxu0
        %v1342 = vadd.f32 0.0, %v1341
        %1343 = vmatmul.bf16.gmra.mxu0 %v1323
        %v1344 = vpop.f32.mrf.mxu0
        %v1345 = vadd.f32 0.0, %v1344
        %v1346 = vpop.f32.mrf.mxu0
        %v1347 = vadd.f32 0.0, %v1346
        %1348 = vdwg.mxu0
        %v1349 = vpack.c.bf16 %v1335, %v1335
        %v1350 = vpack.c.bf16 %v1337, %v1337
        %v1351 = vpack.c.bf16 %v1340, %v1340
        %v1352 = vpack.c.bf16 %v1342, %v1342
        %v1353 = vld [vmem:[%s7] sm:$0xff]
        %v1354 = vld [vmem:[%s7 + $0x8] sm:$0xff]
        %v1355 = vld [vmem:[%s7 + $0x10] sm:$0xff]
        %v1356 = vld [vmem:[%s7 + $0x18] sm:$0xff]
        %v1357 = vld [vmem:[%s7 + $0x20] sm:$0xff]
        %v1358 = vld [vmem:[%s7 + $0x28] sm:$0xff]
        %v1359 = vld [vmem:[%s7 + $0x30] sm:$0xff]
        %v1360 = vld [vmem:[%s7 + $0x38] sm:$0xff]
        %v1361 = vld [vmem:[%s7 + $0x40] sm:$0xff]
        %v1362 = vld [vmem:[%s7 + $0x48] sm:$0xff]
        %v1363 = vld [vmem:[%s7 + $0x50] sm:$0xff]
        %v1364 = vld [vmem:[%s7 + $0x58] sm:$0xff]
        %v1365 = vld [vmem:[%s7 + $0x60] sm:$0xff]
        %v1366 = vld [vmem:[%s7 + $0x68] sm:$0xff]
        %v1367 = vld [vmem:[%s7 + $0x70] sm:$0xff]
        %v1368 = vld [vmem:[%s7 + $0x78] sm:$0xff]
        %1369 = vxpose.xlu0.c.b16.start [1/8] %v1349, 128
        %1370 = vxpose.xlu0.c.b16.cont [2/8] 0, 128
        %1371 = vxpose.xlu0.c.b16.cont [3/8] 0, 128
        %1372 = vxpose.xlu0.c.b16.cont [4/8] 0, 128
        %1373 = vxpose.xlu0.c.b16.cont [5/8] 0, 128
        %1374 = vxpose.xlu0.c.b16.cont [6/8] 0, 128
        %1375 = vxpose.xlu0.c.b16.cont [7/8] 0, 128
        %1376 = vxpose.xlu0.c.b16.end [8/8] 0, 128
        %v1377 = vpop.trf.xlu0
        %v1378 = vpop.trf.xlu0
        %v1379 = vpop.trf.xlu0
        %v1380 = vpop.trf.xlu0
        %v1381 = vpop.trf.xlu0
        %v1382 = vpop.trf.xlu0
        %v1383 = vpop.trf.xlu0
        %v1384 = vpop.trf.xlu0
        %vm1385 = vcmask 64512
        %v1387 = vsel %vm1385, %v1377, 0
        %v1390 = vsel %vm1385, %v1378, 0
        %v1393 = vsel %vm1385, %v1379, 0
        %v1396 = vsel %vm1385, %v1380, 0
        %v1399 = vsel %vm1385, %v1381, 0
        %v1402 = vsel %vm1385, %v1382, 0
        %v1405 = vsel %vm1385, %v1383, 0
        %v1408 = vsel %vm1385, %v1384, 0
        %vm1410 = vcmask 1043456
        %v1412 = vsel %vm1410, %v1351, 0
        %1414 = vmatpush.bf16.msra.mxu0 0
        %1415 = vmatpush.bf16.msra.mxu0 0
        %1416 = vmatpush.bf16.msra.mxu0 0
        %1417 = vmatpush.bf16.msra.mxu0 0
        %1418 = vmatpush.bf16.msra.mxu0 0
        %1419 = vmatpush.bf16.msra.mxu0 0
        %1420 = vmatpush.bf16.msra.mxu0 0
        %1421 = vmatpush.bf16.msra.mxu0 %v1412
        %1422 = vmatmul.bf16.gmra.mxu0 %v1387
        %v1423 = vpop.f32.mrf.mxu0
        %v1424 = vadd.f32 %v1353, %v1423
        %v1425 = vpop.f32.mrf.mxu0
        %v1426 = vadd.f32 %v1354, %v1425
        %1427 = vmatmul.bf16.gmra.mxu0 %v1390
        %v1428 = vpop.f32.mrf.mxu0
        %v1429 = vadd.f32 %v1355, %v1428
        %v1430 = vpop.f32.mrf.mxu0
        %v1431 = vadd.f32 %v1356, %v1430
        %1432 = vmatmul.bf16.gmra.mxu0 %v1393
        %v1433 = vpop.f32.mrf.mxu0
        %v1434 = vadd.f32 %v1357, %v1433
        %v1435 = vpop.f32.mrf.mxu0
        %v1436 = vadd.f32 %v1358, %v1435
        %1437 = vmatmul.bf16.gmra.mxu0 %v1396
        %v1438 = vpop.f32.mrf.mxu0
        %v1439 = vadd.f32 %v1359, %v1438
        %v1440 = vpop.f32.mrf.mxu0
        %v1441 = vadd.f32 %v1360, %v1440
        %1442 = vmatmul.bf16.gmra.mxu0 %v1399
        %v1443 = vpop.f32.mrf.mxu0
        %v1444 = vadd.f32 %v1361, %v1443
        %v1445 = vpop.f32.mrf.mxu0
        %v1446 = vadd.f32 %v1362, %v1445
        %1447 = vmatmul.bf16.gmra.mxu0 %v1402
        %v1448 = vpop.f32.mrf.mxu0
        %v1449 = vadd.f32 %v1363, %v1448
        %v1450 = vpop.f32.mrf.mxu0
        %v1451 = vadd.f32 %v1364, %v1450
        %1452 = vmatmul.bf16.gmra.mxu0 %v1405
        %v1453 = vpop.f32.mrf.mxu0
        %v1454 = vadd.f32 %v1365, %v1453
        %v1455 = vpop.f32.mrf.mxu0
        %v1456 = vadd.f32 %v1366, %v1455
        %1457 = vmatmul.bf16.gmra.mxu0 %v1408
        %v1458 = vpop.f32.mrf.mxu0
        %v1459 = vadd.f32 %v1367, %v1458
        %v1460 = vpop.f32.mrf.mxu0
        %v1461 = vadd.f32 %v1368, %v1460
        %1462 = vdwg.mxu0
        %1463 = vxpose.xlu0.c.b16.start [1/8] %v1350, 128
        %1464 = vxpose.xlu0.c.b16.cont [2/8] 0, 128
        %1465 = vxpose.xlu0.c.b16.cont [3/8] 0, 128
        %1466 = vxpose.xlu0.c.b16.cont [4/8] 0, 128
        %1467 = vxpose.xlu0.c.b16.cont [5/8] 0, 128
        %1468 = vxpose.xlu0.c.b16.cont [6/8] 0, 128
        %1469 = vxpose.xlu0.c.b16.cont [7/8] 0, 128
        %1470 = vxpose.xlu0.c.b16.end [8/8] 0, 128
        %v1471 = vpop.trf.xlu0
        %v1472 = vpop.trf.xlu0
        %v1473 = vpop.trf.xlu0
        %v1474 = vpop.trf.xlu0
        %v1475 = vpop.trf.xlu0
        %v1476 = vpop.trf.xlu0
        %v1477 = vpop.trf.xlu0
        %v1478 = vpop.trf.xlu0
        %v1480 = vsel %vm1385, %v1471, 0
        %v1483 = vsel %vm1385, %v1472, 0
        %v1486 = vsel %vm1385, %v1473, 0
        %v1489 = vsel %vm1385, %v1474, 0
        %v1492 = vsel %vm1385, %v1475, 0
        %v1495 = vsel %vm1385, %v1476, 0
        %v1498 = vsel %vm1385, %v1477, 0
        %v1501 = vsel %vm1385, %v1478, 0
        %v1504 = vsel %vm1410, %v1352, 0
        %1506 = vmatpush.bf16.msra.mxu0 0
        %1507 = vmatpush.bf16.msra.mxu0 0
        %1508 = vmatpush.bf16.msra.mxu0 0
        %1509 = vmatpush.bf16.msra.mxu0 0
        %1510 = vmatpush.bf16.msra.mxu0 0
        %1511 = vmatpush.bf16.msra.mxu0 0
        %1512 = vmatpush.bf16.msra.mxu0 0
        %1513 = vmatpush.bf16.msra.mxu0 %v1504
        %1514 = vmatmul.bf16.gmra.mxu0 %v1480
        %v1515 = vpop.f32.mrf.mxu0
        %v1516 = vadd.f32 %v1353, %v1515
        %v1517 = vpop.f32.mrf.mxu0
        %v1518 = vadd.f32 %v1354, %v1517
        %1519 = vmatmul.bf16.gmra.mxu0 %v1483
        %v1520 = vpop.f32.mrf.mxu0
        %v1521 = vadd.f32 %v1355, %v1520
        %v1522 = vpop.f32.mrf.mxu0
        %v1523 = vadd.f32 %v1356, %v1522
        %1524 = vmatmul.bf16.gmra.mxu0 %v1486
        %v1525 = vpop.f32.mrf.mxu0
        %v1526 = vadd.f32 %v1357, %v1525
        %v1527 = vpop.f32.mrf.mxu0
        %v1528 = vadd.f32 %v1358, %v1527
        %1529 = vmatmul.bf16.gmra.mxu0 %v1489
        %v1530 = vpop.f32.mrf.mxu0
        %v1531 = vadd.f32 %v1359, %v1530
        %v1532 = vpop.f32.mrf.mxu0
        %v1533 = vadd.f32 %v1360, %v1532
        %1534 = vmatmul.bf16.gmra.mxu0 %v1492
        %v1535 = vpop.f32.mrf.mxu0
        %v1536 = vadd.f32 %v1361, %v1535
        %v1537 = vpop.f32.mrf.mxu0
        %v1538 = vadd.f32 %v1362, %v1537
        %1539 = vmatmul.bf16.gmra.mxu0 %v1495
        %v1540 = vpop.f32.mrf.mxu0
        %v1541 = vadd.f32 %v1363, %v1540
        %v1542 = vpop.f32.mrf.mxu0
        %v1543 = vadd.f32 %v1364, %v1542
        %1544 = vmatmul.bf16.gmra.mxu0 %v1498
        %v1545 = vpop.f32.mrf.mxu0
        %v1546 = vadd.f32 %v1365, %v1545
        %v1547 = vpop.f32.mrf.mxu0
        %v1548 = vadd.f32 %v1366, %v1547
        %1549 = vmatmul.bf16.gmra.mxu0 %v1501
        %v1550 = vpop.f32.mrf.mxu0
        %v1551 = vadd.f32 %v1367, %v1550
        %v1552 = vpop.f32.mrf.mxu0
        %v1553 = vadd.f32 %v1368, %v1552
        %1554 = vdwg.mxu0
        %1555 = vmax.xlane.f32.xlu0 %v1424
        %v1556 = vpop.xlane.xlu0 %1555
        %1557 = vmax.xlane.f32.xlu0 %v1426
        %v1558 = vpop.xlane.xlu0 %1557
        %1559 = vmax.xlane.f32.xlu0 %v1429
        %v1560 = vpop.xlane.xlu0 %1559
        %1561 = vmax.xlane.f32.xlu0 %v1431
        %v1562 = vpop.xlane.xlu0 %1561
        %1563 = vmax.xlane.f32.xlu0 %v1434
        %v1564 = vpop.xlane.xlu0 %1563
        %1565 = vmax.xlane.f32.xlu0 %v1436
        %v1566 = vpop.xlane.xlu0 %1565
        %1567 = vmax.xlane.f32.xlu0 %v1439
        %v1568 = vpop.xlane.xlu0 %1567
        %1569 = vmax.xlane.f32.xlu0 %v1441
        %v1570 = vpop.xlane.xlu0 %1569
        %1571 = vmax.xlane.f32.xlu0 %v1444
        %v1572 = vpop.xlane.xlu0 %1571
        %1573 = vmax.xlane.f32.xlu0 %v1446
        %v1574 = vpop.xlane.xlu0 %1573
        %1575 = vmax.xlane.f32.xlu0 %v1449
        %v1576 = vpop.xlane.xlu0 %1575
        %1577 = vmax.xlane.f32.xlu0 %v1451
        %v1578 = vpop.xlane.xlu0 %1577
        %1579 = vmax.xlane.f32.xlu0 %v1454
        %v1580 = vpop.xlane.xlu0 %1579
        %1581 = vmax.xlane.f32.xlu0 %v1456
        %v1582 = vpop.xlane.xlu0 %1581
        %1583 = vmax.xlane.f32.xlu0 %v1459
        %v1584 = vpop.xlane.xlu0 %1583
        %1585 = vmax.xlane.f32.xlu0 %v1461
        %v1586 = vpop.xlane.xlu0 %1585
        %1587 = vmax.xlane.f32.xlu0 %v1516
        %v1588 = vpop.xlane.xlu0 %1587
        %1589 = vmax.xlane.f32.xlu0 %v1518
        %v1590 = vpop.xlane.xlu0 %1589
        %1591 = vmax.xlane.f32.xlu0 %v1521
        %v1592 = vpop.xlane.xlu0 %1591
        %1593 = vmax.xlane.f32.xlu0 %v1523
        %v1594 = vpop.xlane.xlu0 %1593
        %1595 = vmax.xlane.f32.xlu0 %v1526
        %v1596 = vpop.xlane.xlu0 %1595
        %1597 = vmax.xlane.f32.xlu0 %v1528
        %v1598 = vpop.xlane.xlu0 %1597
        %1599 = vmax.xlane.f32.xlu0 %v1531
        %v1600 = vpop.xlane.xlu0 %1599
        %1601 = vmax.xlane.f32.xlu0 %v1533
        %v1602 = vpop.xlane.xlu0 %1601
        %1603 = vmax.xlane.f32.xlu0 %v1536
        %v1604 = vpop.xlane.xlu0 %1603
        %1605 = vmax.xlane.f32.xlu0 %v1538
        %v1606 = vpop.xlane.xlu0 %1605
        %1607 = vmax.xlane.f32.xlu0 %v1541
        %v1608 = vpop.xlane.xlu0 %1607
        %1609 = vmax.xlane.f32.xlu0 %v1543
        %v1610 = vpop.xlane.xlu0 %1609
        %1611 = vmax.xlane.f32.xlu0 %v1546
        %v1612 = vpop.xlane.xlu0 %1611
        %1613 = vmax.xlane.f32.xlu0 %v1548
        %v1614 = vpop.xlane.xlu0 %1613
        %1615 = vmax.xlane.f32.xlu0 %v1551
        %v1616 = vpop.xlane.xlu0 %1615
        %1617 = vmax.xlane.f32.xlu0 %v1553
        %v1618 = vpop.xlane.xlu0 %1617
        %v1619 = vsub.f32 %v1424, %v1556
        %v1620 = vsub.f32 %v1426, %v1558
        %v1621 = vsub.f32 %v1429, %v1560
        %v1622 = vsub.f32 %v1431, %v1562
        %v1623 = vsub.f32 %v1434, %v1564
        %v1624 = vsub.f32 %v1436, %v1566
        %v1625 = vsub.f32 %v1439, %v1568
        %v1626 = vsub.f32 %v1441, %v1570
        %v1627 = vsub.f32 %v1444, %v1572
        %v1628 = vsub.f32 %v1446, %v1574
        %v1629 = vsub.f32 %v1449, %v1576
        %v1630 = vsub.f32 %v1451, %v1578
        %v1631 = vsub.f32 %v1454, %v1580
        %v1632 = vsub.f32 %v1456, %v1582
        %v1633 = vsub.f32 %v1459, %v1584
        %v1634 = vsub.f32 %v1461, %v1586
        %v1635 = vsub.f32 %v1516, %v1588
        %v1636 = vsub.f32 %v1518, %v1590
        %v1637 = vsub.f32 %v1521, %v1592
        %v1638 = vsub.f32 %v1523, %v1594
        %v1639 = vsub.f32 %v1526, %v1596
        %v1640 = vsub.f32 %v1528, %v1598
        %v1641 = vsub.f32 %v1531, %v1600
        %v1642 = vsub.f32 %v1533, %v1602
        %v1643 = vsub.f32 %v1536, %v1604
        %v1644 = vsub.f32 %v1538, %v1606
        %v1645 = vsub.f32 %v1541, %v1608
        %v1646 = vsub.f32 %v1543, %v1610
        %v1647 = vsub.f32 %v1546, %v1612
        %v1648 = vsub.f32 %v1548, %v1614
        %v1649 = vsub.f32 %v1551, %v1616
        %v1650 = vsub.f32 %v1553, %v1618
        %v1651 = vmul.f32 %v1619, 1.442695
        %v1652 = vpow.pop %v1651
        %v1653 = vmul.f32 %v1620, 1.442695
        %v1654 = vpow.pop %v1653
        %v1655 = vmul.f32 %v1621, 1.442695
        %v1656 = vpow.pop %v1655
        %v1657 = vmul.f32 %v1622, 1.442695
        %v1658 = vpow.pop %v1657
        %v1659 = vmul.f32 %v1623, 1.442695
        %v1660 = vpow.pop %v1659
        %v1661 = vmul.f32 %v1624, 1.442695
        %v1662 = vpow.pop %v1661
        %v1663 = vmul.f32 %v1625, 1.442695
        %v1664 = vpow.pop %v1663
        %v1665 = vmul.f32 %v1626, 1.442695
        %v1666 = vpow.pop %v1665
        %v1667 = vmul.f32 %v1627, 1.442695
        %v1668 = vpow.pop %v1667
        %v1669 = vmul.f32 %v1628, 1.442695
        %v1670 = vpow.pop %v1669
        %v1671 = vmul.f32 %v1629, 1.442695
        %v1672 = vpow.pop %v1671
        %v1673 = vmul.f32 %v1630, 1.442695
        %v1674 = vpow.pop %v1673
        %v1675 = vmul.f32 %v1631, 1.442695
        %v1676 = vpow.pop %v1675
        %v1677 = vmul.f32 %v1632, 1.442695
        %v1678 = vpow.pop %v1677
        %v1679 = vmul.f32 %v1633, 1.442695
        %v1680 = vpow.pop %v1679
        %v1681 = vmul.f32 %v1634, 1.442695
        %v1682 = vpow.pop %v1681
        %v1683 = vmul.f32 %v1635, 1.442695
        %v1684 = vpow.pop %v1683
        %v1685 = vmul.f32 %v1636, 1.442695
        %v1686 = vpow.pop %v1685
        %v1687 = vmul.f32 %v1637, 1.442695
        %v1688 = vpow.pop %v1687
        %v1689 = vmul.f32 %v1638, 1.442695
        %v1690 = vpow.pop %v1689
        %v1691 = vmul.f32 %v1639, 1.442695
        %v1692 = vpow.pop %v1691
        %v1693 = vmul.f32 %v1640, 1.442695
        %v1694 = vpow.pop %v1693
        %v1695 = vmul.f32 %v1641, 1.442695
        %v1696 = vpow.pop %v1695
        %v1697 = vmul.f32 %v1642, 1.442695
        %v1698 = vpow.pop %v1697
        %v1699 = vmul.f32 %v1643, 1.442695
        %v1700 = vpow.pop %v1699
        %v1701 = vmul.f32 %v1644, 1.442695
        %v1702 = vpow.pop %v1701
        %v1703 = vmul.f32 %v1645, 1.442695
        %v1704 = vpow.pop %v1703
        %v1705 = vmul.f32 %v1646, 1.442695
        %v1706 = vpow.pop %v1705
        %v1707 = vmul.f32 %v1647, 1.442695
        %v1708 = vpow.pop %v1707
        %v1709 = vmul.f32 %v1648, 1.442695
        %v1710 = vpow.pop %v1709
        %v1711 = vmul.f32 %v1649, 1.442695
        %v1712 = vpow.pop %v1711
        %v1713 = vmul.f32 %v1650, 1.442695
        %v1714 = vpow.pop %v1713
        %1715 = vadd.xlane.f32.xlu0 %v1652
        %v1716 = vpop.xlane.xlu0 %1715
        %1717 = vadd.xlane.f32.xlu0 %v1654
        %v1718 = vpop.xlane.xlu0 %1717
        %1719 = vadd.xlane.f32.xlu0 %v1656
        %v1720 = vpop.xlane.xlu0 %1719
        %1721 = vadd.xlane.f32.xlu0 %v1658
        %v1722 = vpop.xlane.xlu0 %1721
        %1723 = vadd.xlane.f32.xlu0 %v1660
        %v1724 = vpop.xlane.xlu0 %1723
        %1725 = vadd.xlane.f32.xlu0 %v1662
        %v1726 = vpop.xlane.xlu0 %1725
        %1727 = vadd.xlane.f32.xlu0 %v1664
        %v1728 = vpop.xlane.xlu0 %1727
        %1729 = vadd.xlane.f32.xlu0 %v1666
        %v1730 = vpop.xlane.xlu0 %1729
        %1731 = vadd.xlane.f32.xlu0 %v1668
        %v1732 = vpop.xlane.xlu0 %1731
        %1733 = vadd.xlane.f32.xlu0 %v1670
        %v1734 = vpop.xlane.xlu0 %1733
        %1735 = vadd.xlane.f32.xlu0 %v1672
        %v1736 = vpop.xlane.xlu0 %1735
        %1737 = vadd.xlane.f32.xlu0 %v1674
        %v1738 = vpop.xlane.xlu0 %1737
        %1739 = vadd.xlane.f32.xlu0 %v1676
        %v1740 = vpop.xlane.xlu0 %1739
        %1741 = vadd.xlane.f32.xlu0 %v1678
        %v1742 = vpop.xlane.xlu0 %1741
        %1743 = vadd.xlane.f32.xlu0 %v1680
        %v1744 = vpop.xlane.xlu0 %1743
        %1745 = vadd.xlane.f32.xlu0 %v1682
        %v1746 = vpop.xlane.xlu0 %1745
        %1747 = vadd.xlane.f32.xlu0 %v1684
        %v1748 = vpop.xlane.xlu0 %1747
        %1749 = vadd.xlane.f32.xlu0 %v1686
        %v1750 = vpop.xlane.xlu0 %1749
        %1751 = vadd.xlane.f32.xlu0 %v1688
        %v1752 = vpop.xlane.xlu0 %1751
        %1753 = vadd.xlane.f32.xlu0 %v1690
        %v1754 = vpop.xlane.xlu0 %1753
        %1755 = vadd.xlane.f32.xlu0 %v1692
        %v1756 = vpop.xlane.xlu0 %1755
        %1757 = vadd.xlane.f32.xlu0 %v1694
        %v1758 = vpop.xlane.xlu0 %1757
        %1759 = vadd.xlane.f32.xlu0 %v1696
        %v1760 = vpop.xlane.xlu0 %1759
        %1761 = vadd.xlane.f32.xlu0 %v1698
        %v1762 = vpop.xlane.xlu0 %1761
        %1763 = vadd.xlane.f32.xlu0 %v1700
        %v1764 = vpop.xlane.xlu0 %1763
        %1765 = vadd.xlane.f32.xlu0 %v1702
        %v1766 = vpop.xlane.xlu0 %1765
        %1767 = vadd.xlane.f32.xlu0 %v1704
        %v1768 = vpop.xlane.xlu0 %1767
        %1769 = vadd.xlane.f32.xlu0 %v1706
        %v1770 = vpop.xlane.xlu0 %1769
        %1771 = vadd.xlane.f32.xlu0 %v1708
        %v1772 = vpop.xlane.xlu0 %1771
        %1773 = vadd.xlane.f32.xlu0 %v1710
        %v1774 = vpop.xlane.xlu0 %1773
        %1775 = vadd.xlane.f32.xlu0 %v1712
        %v1776 = vpop.xlane.xlu0 %1775
        %1777 = vadd.xlane.f32.xlu0 %v1714
        %v1778 = vpop.xlane.xlu0 %1777
        %v1779 = vrcp.pop %v1716
        %v1780 = vrcp.pop %v1718
        %v1781 = vrcp.pop %v1720
        %v1782 = vrcp.pop %v1722
        %v1783 = vrcp.pop %v1724
        %v1784 = vrcp.pop %v1726
        %v1785 = vrcp.pop %v1728
        %v1786 = vrcp.pop %v1730
        %v1787 = vrcp.pop %v1732
        %v1788 = vrcp.pop %v1734
        %v1789 = vrcp.pop %v1736
        %v1790 = vrcp.pop %v1738
        %v1791 = vrcp.pop %v1740
        %v1792 = vrcp.pop %v1742
        %v1793 = vrcp.pop %v1744
        %v1794 = vrcp.pop %v1746
        %v1795 = vrcp.pop %v1748
        %v1796 = vrcp.pop %v1750
        %v1797 = vrcp.pop %v1752
        %v1798 = vrcp.pop %v1754
        %v1799 = vrcp.pop %v1756
        %v1800 = vrcp.pop %v1758
        %v1801 = vrcp.pop %v1760
        %v1802 = vrcp.pop %v1762
        %v1803 = vrcp.pop %v1764
        %v1804 = vrcp.pop %v1766
        %v1805 = vrcp.pop %v1768
        %v1806 = vrcp.pop %v1770
        %v1807 = vrcp.pop %v1772
        %v1808 = vrcp.pop %v1774
        %v1809 = vrcp.pop %v1776
        %v1810 = vrcp.pop %v1778
        %v1811 = vmul.f32 %v1652, %v1779
        %v1812 = vmul.f32 %v1654, %v1780
        %v1813 = vmul.f32 %v1656, %v1781
        %v1814 = vmul.f32 %v1658, %v1782
        %v1815 = vmul.f32 %v1660, %v1783
        %v1816 = vmul.f32 %v1662, %v1784
        %v1817 = vmul.f32 %v1664, %v1785
        %v1818 = vmul.f32 %v1666, %v1786
        %v1819 = vmul.f32 %v1668, %v1787
        %v1820 = vmul.f32 %v1670, %v1788
        %v1821 = vmul.f32 %v1672, %v1789
        %v1822 = vmul.f32 %v1674, %v1790
        %v1823 = vmul.f32 %v1676, %v1791
        %v1824 = vmul.f32 %v1678, %v1792
        %v1825 = vmul.f32 %v1680, %v1793
        %v1826 = vmul.f32 %v1682, %v1794
        %v1827 = vmul.f32 %v1684, %v1795
        %v1828 = vmul.f32 %v1686, %v1796
        %v1829 = vmul.f32 %v1688, %v1797
        %v1830 = vmul.f32 %v1690, %v1798
        %v1831 = vmul.f32 %v1692, %v1799
        %v1832 = vmul.f32 %v1694, %v1800
        %v1833 = vmul.f32 %v1696, %v1801
        %v1834 = vmul.f32 %v1698, %v1802
        %v1835 = vmul.f32 %v1700, %v1803
        %v1836 = vmul.f32 %v1702, %v1804
        %v1837 = vmul.f32 %v1704, %v1805
        %v1838 = vmul.f32 %v1706, %v1806
        %v1839 = vmul.f32 %v1708, %v1807
        %v1840 = vmul.f32 %v1710, %v1808
        %v1841 = vmul.f32 %v1712, %v1809
        %v1842 = vmul.f32 %v1714, %v1810
        %v1843 = vpack.c.bf16 %v1811, %v1811
        %v1844 = vpack.c.bf16 %v1812, %v1812
        %v1845 = vpack.c.bf16 %v1813, %v1813
        %v1846 = vpack.c.bf16 %v1814, %v1814
        %v1847 = vpack.c.bf16 %v1815, %v1815
        %v1848 = vpack.c.bf16 %v1816, %v1816
        %v1849 = vpack.c.bf16 %v1817, %v1817
        %v1850 = vpack.c.bf16 %v1818, %v1818
        %v1851 = vpack.c.bf16 %v1819, %v1819
        %v1852 = vpack.c.bf16 %v1820, %v1820
        %v1853 = vpack.c.bf16 %v1821, %v1821
        %v1854 = vpack.c.bf16 %v1822, %v1822
        %v1855 = vpack.c.bf16 %v1823, %v1823
        %v1856 = vpack.c.bf16 %v1824, %v1824
        %v1857 = vpack.c.bf16 %v1825, %v1825
        %v1858 = vpack.c.bf16 %v1826, %v1826
        %v1859 = vpack.c.bf16 %v1827, %v1827
        %v1860 = vpack.c.bf16 %v1828, %v1828
        %v1861 = vpack.c.bf16 %v1829, %v1829
        %v1862 = vpack.c.bf16 %v1830, %v1830
        %v1863 = vpack.c.bf16 %v1831, %v1831
        %v1864 = vpack.c.bf16 %v1832, %v1832
        %v1865 = vpack.c.bf16 %v1833, %v1833
        %v1866 = vpack.c.bf16 %v1834, %v1834
        %v1867 = vpack.c.bf16 %v1835, %v1835
        %v1868 = vpack.c.bf16 %v1836, %v1836
        %v1869 = vpack.c.bf16 %v1837, %v1837
        %v1870 = vpack.c.bf16 %v1838, %v1838
        %v1871 = vpack.c.bf16 %v1839, %v1839
        %v1872 = vpack.c.bf16 %v1840, %v1840
        %v1873 = vpack.c.bf16 %v1841, %v1841
        %v1874 = vpack.c.bf16 %v1842, %v1842
        %v1875 = vpack.c.bf16 %v1345, %v1345
        %v1876 = vpack.c.bf16 %v1347, %v1347
        %v1893 = vunpack.c.l.b16 %v1843
        %v1894 = vunpack.c.l.b16 %v1844
        %v1895 = vunpack.c.l.b16 %v1845
        %v1896 = vunpack.c.l.b16 %v1846
        %v1897 = vunpack.c.l.b16 %v1847
        %v1898 = vunpack.c.l.b16 %v1848
        %v1899 = vunpack.c.l.b16 %v1849
        %v1900 = vunpack.c.l.b16 %v1850
        %v1901 = vunpack.c.l.b16 %v1851
        %v1902 = vunpack.c.l.b16 %v1852
        %v1903 = vunpack.c.l.b16 %v1853
        %v1904 = vunpack.c.l.b16 %v1854
        %v1905 = vunpack.c.l.b16 %v1855
        %v1906 = vunpack.c.l.b16 %v1856
        %v1907 = vunpack.c.l.b16 %v1857
        %v1908 = vunpack.c.l.b16 %v1858
        %v1909 = vpack.c.b16 %v1894, %v1893
        %v1910 = vpack.c.b16 %v1896, %v1895
        %v1911 = vpack.c.b16 %v1898, %v1897
        %v1912 = vpack.c.b16 %v1900, %v1899
        %v1913 = vpack.c.b16 %v1902, %v1901
        %v1914 = vpack.c.b16 %v1904, %v1903
        %v1915 = vpack.c.b16 %v1906, %v1905
        %v1916 = vpack.c.b16 %v1908, %v1907
        %1925 = vmatpush.bf16.xpose.msra.mxu0 %v1916
        %1926 = vmatpush.bf16.xpose.msra.mxu0 %v1915
        %1927 = vmatpush.bf16.xpose.msra.mxu0 %v1914
        %1928 = vmatpush.bf16.xpose.msra.mxu0 %v1913
        %1929 = vmatpush.bf16.xpose.msra.mxu0 %v1912
        %1930 = vmatpush.bf16.xpose.msra.mxu0 %v1911
        %1931 = vmatpush.bf16.xpose.msra.mxu0 %v1910
        %1932 = vmatpush.bf16.xpose.msra.mxu0 %v1909
        %1933 = vmatmul.bf16.gmra.mxu0 %v1875
        %v1934 = vpop.f32.mrf.mxu0
        %v1935 = vadd.f32 0.0, %v1934
        %v1936 = vpop.f32.mrf.mxu0
        %1937 = vdwg.mxu0
        %v1954 = vunpack.c.l.b16 %v1859
        %v1955 = vunpack.c.l.b16 %v1860
        %v1956 = vunpack.c.l.b16 %v1861
        %v1957 = vunpack.c.l.b16 %v1862
        %v1958 = vunpack.c.l.b16 %v1863
        %v1959 = vunpack.c.l.b16 %v1864
        %v1960 = vunpack.c.l.b16 %v1865
        %v1961 = vunpack.c.l.b16 %v1866
        %v1962 = vunpack.c.l.b16 %v1867
        %v1963 = vunpack.c.l.b16 %v1868
        %v1964 = vunpack.c.l.b16 %v1869
        %v1965 = vunpack.c.l.b16 %v1870
        %v1966 = vunpack.c.l.b16 %v1871
        %v1967 = vunpack.c.l.b16 %v1872
        %v1968 = vunpack.c.l.b16 %v1873
        %v1969 = vunpack.c.l.b16 %v1874
        %v1970 = vpack.c.b16 %v1955, %v1954
        %v1971 = vpack.c.b16 %v1957, %v1956
        %v1972 = vpack.c.b16 %v1959, %v1958
        %v1973 = vpack.c.b16 %v1961, %v1960
        %v1974 = vpack.c.b16 %v1963, %v1962
        %v1975 = vpack.c.b16 %v1965, %v1964
        %v1976 = vpack.c.b16 %v1967, %v1966
        %v1977 = vpack.c.b16 %v1969, %v1968
        %1986 = vmatpush.bf16.xpose.msra.mxu0 %v1977
        %1987 = vmatpush.bf16.xpose.msra.mxu0 %v1976
        %1988 = vmatpush.bf16.xpose.msra.mxu0 %v1975
        %1989 = vmatpush.bf16.xpose.msra.mxu0 %v1974
        %1990 = vmatpush.bf16.xpose.msra.mxu0 %v1973
        %1991 = vmatpush.bf16.xpose.msra.mxu0 %v1972
        %1992 = vmatpush.bf16.xpose.msra.mxu0 %v1971
        %1993 = vmatpush.bf16.xpose.msra.mxu0 %v1970
        %1994 = vmatmul.bf16.gmra.mxu0 %v1876
        %v1995 = vpop.f32.mrf.mxu0
        %v1996 = vadd.f32 0.0, %v1995
        %v1997 = vpop.f32.mrf.mxu0
        %1998 = vdwg.mxu0
        %v1999 = vpack.c.bf16 %v1996, %v1935
        %v2000 = vld [vmem:[%s6] sm:$0xff]
        %v2001 = vld [vmem:[%s6 + $0x8] sm:$0xff]
        %v2002 = vpack.c.bf16 %v2001, %v2000
        %v2004 = vsel %vm1315, %v2002, 0
        %2006 = vmatpush.bf16.msra.mxu0 0
        %2007 = vmatpush.bf16.msra.mxu0 0
        %2008 = vmatpush.bf16.msra.mxu0 0
        %2009 = vmatpush.bf16.msra.mxu0 0
        %2010 = vmatpush.bf16.msra.mxu0 0
        %2011 = vmatpush.bf16.msra.mxu0 0
        %2012 = vmatpush.bf16.msra.mxu0 0
        %2013 = vmatpush.bf16.msra.mxu0 %v1999
        %2014 = vmatmul.bf16.gmra.mxu0 %v2004
        %v2015 = vpop.f32.mrf.mxu0
        %v2016 = vadd.f32 0.0, %v2015
        %v2017 = vpop.f32.mrf.mxu0
        %v2018 = vadd.f32 0.0, %v2017
        %2019 = vdwg.mxu0
        %v2020 = vadd.f32 %v576, %v2016
        %v2021 = vadd.f32 %v578, %v2018
        %v2022 = vld [vmem:[%s9] sm:$0xff]
        %v2023 = vld [vmem:[%s10] sm:$0xff]
        %v2024 = vrot.slane %v2020, 4
        %v2025 = vadd.f32 %v2020, %v2024
        %v2026 = vrot.slane %v2025, 2
        %v2027 = vadd.f32 %v2025, %v2026
        %v2028 = vrot.slane %v2027, 1
        %v2029 = vadd.f32 %v2027, %v2028
        %v2030 = vand.u32 %v542, 4294901760
        %2031 = vmatpush.msra.mxu0 %v2030
        %v2032 = vand.u32 %v541, 4294901760
        %2033 = vmatpush.msra.mxu0 %v2032
        %v2034 = vand.u32 %v540, 4294901760
        %2035 = vmatpush.msra.mxu0 %v2034
        %v2036 = vand.u32 %v539, 4294901760
        %2037 = vmatpush.msra.mxu0 %v2036
        %v2038 = vand.u32 %v538, 4294901760
        %2039 = vmatpush.msra.mxu0 %v2038
        %v2040 = vand.u32 %v537, 4294901760
        %2041 = vmatpush.msra.mxu0 %v2040
        %v2042 = vand.u32 %v536, 4294901760
        %2043 = vmatpush.msra.mxu0 %v2042
        %v2044 = vand.u32 %v535, 4294901760
        %2045 = vmatpush.msra.mxu0 %v2044
        %v2046 = vand.u32 %v534, 4294901760
        %2047 = vmatpush.msra.mxu0 %v2046
        %v2048 = vand.u32 %v533, 4294901760
        %2049 = vmatpush.msra.mxu0 %v2048
        %v2050 = vand.u32 %v532, 4294901760
        %2051 = vmatpush.msra.mxu0 %v2050
        %v2052 = vand.u32 %v531, 4294901760
        %2053 = vmatpush.msra.mxu0 %v2052
        %v2054 = vand.u32 %v530, 4294901760
        %2055 = vmatpush.msra.mxu0 %v2054
        %v2056 = vand.u32 %v529, 4294901760
        %2057 = vmatpush.msra.mxu0 %v2056
        %v2058 = vand.u32 %v528, 4294901760
        %2059 = vmatpush.msra.mxu0 %v2058
        %v2060 = vand.u32 %v527, 4294901760
        %2061 = vmatpush.msra.mxu0 %v2060
        %v2062 = vand.u32 %v2029, 4294901760
        %v2063 = vsub.f32 %v2029, %v2062
        %v2064 = vand.u32 %v2063, 4294901760
        %v2065 = vsub.f32 %v2063, %v2064
        %v2066 = vand.u32 %v2065, 4294901760
        %2067 = vmatmul.f32.gmra.mxu0 %v2066
        %v2068 = vpop.f32.mrf.mxu0
        %v2069 = vadd.f32 0.0, %v2068
        %2070 = vdwg.mxu0
        %v2071 = vand.u32 %v542, 4294901760
        %v2072 = vsub.f32 %v542, %v2071
        %v2073 = vand.u32 %v2072, 4294901760
        %v2074 = vsub.f32 %v2072, %v2073
        %v2075 = vand.u32 %v2074, 4294901760
        %2076 = vmatpush.msra.mxu0 %v2075
        %v2077 = vand.u32 %v541, 4294901760
        %v2078 = vsub.f32 %v541, %v2077
        %v2079 = vand.u32 %v2078, 4294901760
        %v2080 = vsub.f32 %v2078, %v2079
        %v2081 = vand.u32 %v2080, 4294901760
        %2082 = vmatpush.msra.mxu0 %v2081
        %v2083 = vand.u32 %v540, 4294901760
        %v2084 = vsub.f32 %v540, %v2083
        %v2085 = vand.u32 %v2084, 4294901760
        %v2086 = vsub.f32 %v2084, %v2085
        %v2087 = vand.u32 %v2086, 4294901760
        %2088 = vmatpush.msra.mxu0 %v2087
        %v2089 = vand.u32 %v539, 4294901760
        %v2090 = vsub.f32 %v539, %v2089
        %v2091 = vand.u32 %v2090, 4294901760
        %v2092 = vsub.f32 %v2090, %v2091
        %v2093 = vand.u32 %v2092, 4294901760
        %2094 = vmatpush.msra.mxu0 %v2093
        %v2095 = vand.u32 %v538, 4294901760
        %v2096 = vsub.f32 %v538, %v2095
        %v2097 = vand.u32 %v2096, 4294901760
        %v2098 = vsub.f32 %v2096, %v2097
        %v2099 = vand.u32 %v2098, 4294901760
        %2100 = vmatpush.msra.mxu0 %v2099
        %v2101 = vand.u32 %v537, 4294901760
        %v2102 = vsub.f32 %v537, %v2101
        %v2103 = vand.u32 %v2102, 4294901760
        %v2104 = vsub.f32 %v2102, %v2103
        %v2105 = vand.u32 %v2104, 4294901760
        %2106 = vmatpush.msra.mxu0 %v2105
        %v2107 = vand.u32 %v536, 4294901760
        %v2108 = vsub.f32 %v536, %v2107
        %v2109 = vand.u32 %v2108, 4294901760
        %v2110 = vsub.f32 %v2108, %v2109
        %v2111 = vand.u32 %v2110, 4294901760
        %2112 = vmatpush.msra.mxu0 %v2111
        %v2113 = vand.u32 %v535, 4294901760
        %v2114 = vsub.f32 %v535, %v2113
        %v2115 = vand.u32 %v2114, 4294901760
        %v2116 = vsub.f32 %v2114, %v2115
        %v2117 = vand.u32 %v2116, 4294901760
        %2118 = vmatpush.msra.mxu0 %v2117
        %v2119 = vand.u32 %v534, 4294901760
        %v2120 = vsub.f32 %v534, %v2119
        %v2121 = vand.u32 %v2120, 4294901760
        %v2122 = vsub.f32 %v2120, %v2121
        %v2123 = vand.u32 %v2122, 4294901760
        %2124 = vmatpush.msra.mxu0 %v2123
        %v2125 = vand.u32 %v533, 4294901760
        %v2126 = vsub.f32 %v533, %v2125
        %v2127 = vand.u32 %v2126, 4294901760
        %v2128 = vsub.f32 %v2126, %v2127
        %v2129 = vand.u32 %v2128, 4294901760
        %2130 = vmatpush.msra.mxu0 %v2129
        %v2131 = vand.u32 %v532, 4294901760
        %v2132 = vsub.f32 %v532, %v2131
        %v2133 = vand.u32 %v2132, 4294901760
        %v2134 = vsub.f32 %v2132, %v2133
        %v2135 = vand.u32 %v2134, 4294901760
        %2136 = vmatpush.msra.mxu0 %v2135
        %v2137 = vand.u32 %v531, 4294901760
        %v2138 = vsub.f32 %v531, %v2137
        %v2139 = vand.u32 %v2138, 4294901760
        %v2140 = vsub.f32 %v2138, %v2139
        %v2141 = vand.u32 %v2140, 4294901760
        %2142 = vmatpush.msra.mxu0 %v2141
        %v2143 = vand.u32 %v530, 4294901760
        %v2144 = vsub.f32 %v530, %v2143
        %v2145 = vand.u32 %v2144, 4294901760
        %v2146 = vsub.f32 %v2144, %v2145
        %v2147 = vand.u32 %v2146, 4294901760
        %2148 = vmatpush.msra.mxu0 %v2147
        %v2149 = vand.u32 %v529, 4294901760
        %v2150 = vsub.f32 %v529, %v2149
        %v2151 = vand.u32 %v2150, 4294901760
        %v2152 = vsub.f32 %v2150, %v2151
        %v2153 = vand.u32 %v2152, 4294901760
        %2154 = vmatpush.msra.mxu0 %v2153
        %v2155 = vand.u32 %v528, 4294901760
        %v2156 = vsub.f32 %v528, %v2155
        %v2157 = vand.u32 %v2156, 4294901760
        %v2158 = vsub.f32 %v2156, %v2157
        %v2159 = vand.u32 %v2158, 4294901760
        %2160 = vmatpush.msra.mxu0 %v2159
        %v2161 = vand.u32 %v527, 4294901760
        %v2162 = vsub.f32 %v527, %v2161
        %v2163 = vand.u32 %v2162, 4294901760
        %v2164 = vsub.f32 %v2162, %v2163
        %v2165 = vand.u32 %v2164, 4294901760
        %2166 = vmatpush.msra.mxu0 %v2165
        %v2167 = vand.u32 %v2029, 4294901760
        %2168 = vmatmul.f32.gmra.mxu0 %v2167
        %v2169 = vpop.f32.mrf.mxu0
        %v2170 = vadd.f32 %v2069, %v2169
        %2171 = vdwg.mxu0
        %v2172 = vand.u32 %v542, 4294901760
        %v2173 = vsub.f32 %v542, %v2172
        %2174 = vmatpush.msra.mxu0 %v2173
        %v2175 = vand.u32 %v541, 4294901760
        %v2176 = vsub.f32 %v541, %v2175
        %2177 = vmatpush.msra.mxu0 %v2176
        %v2178 = vand.u32 %v540, 4294901760
        %v2179 = vsub.f32 %v540, %v2178
        %2180 = vmatpush.msra.mxu0 %v2179
        %v2181 = vand.u32 %v539, 4294901760
        %v2182 = vsub.f32 %v539, %v2181
        %2183 = vmatpush.msra.mxu0 %v2182
        %v2184 = vand.u32 %v538, 4294901760
        %v2185 = vsub.f32 %v538, %v2184
        %2186 = vmatpush.msra.mxu0 %v2185
        %v2187 = vand.u32 %v537, 4294901760
        %v2188 = vsub.f32 %v537, %v2187
        %2189 = vmatpush.msra.mxu0 %v2188
        %v2190 = vand.u32 %v536, 4294901760
        %v2191 = vsub.f32 %v536, %v2190
        %2192 = vmatpush.msra.mxu0 %v2191
        %v2193 = vand.u32 %v535, 4294901760
        %v2194 = vsub.f32 %v535, %v2193
        %2195 = vmatpush.msra.mxu0 %v2194
        %v2196 = vand.u32 %v534, 4294901760
        %v2197 = vsub.f32 %v534, %v2196
        %2198 = vmatpush.msra.mxu0 %v2197
        %v2199 = vand.u32 %v533, 4294901760
        %v2200 = vsub.f32 %v533, %v2199
        %2201 = vmatpush.msra.mxu0 %v2200
        %v2202 = vand.u32 %v532, 4294901760
        %v2203 = vsub.f32 %v532, %v2202
        %2204 = vmatpush.msra.mxu0 %v2203
        %v2205 = vand.u32 %v531, 4294901760
        %v2206 = vsub.f32 %v531, %v2205
        %2207 = vmatpush.msra.mxu0 %v2206
        %v2208 = vand.u32 %v530, 4294901760
        %v2209 = vsub.f32 %v530, %v2208
        %2210 = vmatpush.msra.mxu0 %v2209
        %v2211 = vand.u32 %v529, 4294901760
        %v2212 = vsub.f32 %v529, %v2211
        %2213 = vmatpush.msra.mxu0 %v2212
        %v2214 = vand.u32 %v528, 4294901760
        %v2215 = vsub.f32 %v528, %v2214
        %2216 = vmatpush.msra.mxu0 %v2215
        %v2217 = vand.u32 %v527, 4294901760
        %v2218 = vsub.f32 %v527, %v2217
        %2219 = vmatpush.msra.mxu0 %v2218
        %v2220 = vand.u32 %v2029, 4294901760
        %v2221 = vsub.f32 %v2029, %v2220
        %2222 = vmatmul.f32.gmra.mxu0 %v2221
        %v2223 = vpop.f32.mrf.mxu0
        %v2224 = vadd.f32 %v2170, %v2223
        %2225 = vdwg.mxu0
        %v2226 = vand.u32 %v542, 4294901760
        %2227 = vmatpush.msra.mxu0 %v2226
        %v2228 = vand.u32 %v541, 4294901760
        %2229 = vmatpush.msra.mxu0 %v2228
        %v2230 = vand.u32 %v540, 4294901760
        %2231 = vmatpush.msra.mxu0 %v2230
        %v2232 = vand.u32 %v539, 4294901760
        %2233 = vmatpush.msra.mxu0 %v2232
        %v2234 = vand.u32 %v538, 4294901760
        %2235 = vmatpush.msra.mxu0 %v2234
        %v2236 = vand.u32 %v537, 4294901760
        %2237 = vmatpush.msra.mxu0 %v2236
        %v2238 = vand.u32 %v536, 4294901760
        %2239 = vmatpush.msra.mxu0 %v2238
        %v2240 = vand.u32 %v535, 4294901760
        %2241 = vmatpush.msra.mxu0 %v2240
        %v2242 = vand.u32 %v534, 4294901760
        %2243 = vmatpush.msra.mxu0 %v2242
        %v2244 = vand.u32 %v533, 4294901760
        %2245 = vmatpush.msra.mxu0 %v2244
        %v2246 = vand.u32 %v532, 4294901760
        %2247 = vmatpush.msra.mxu0 %v2246
        %v2248 = vand.u32 %v531, 4294901760
        %2249 = vmatpush.msra.mxu0 %v2248
        %v2250 = vand.u32 %v530, 4294901760
        %2251 = vmatpush.msra.mxu0 %v2250
        %v2252 = vand.u32 %v529, 4294901760
        %2253 = vmatpush.msra.mxu0 %v2252
        %v2254 = vand.u32 %v528, 4294901760
        %2255 = vmatpush.msra.mxu0 %v2254
        %v2256 = vand.u32 %v527, 4294901760
        %2257 = vmatpush.msra.mxu0 %v2256
        %v2258 = vand.u32 %v2029, 4294901760
        %v2259 = vsub.f32 %v2029, %v2258
        %v2260 = vand.u32 %v2259, 4294901760
        %2261 = vmatmul.f32.gmra.mxu0 %v2260
        %v2262 = vpop.f32.mrf.mxu0
        %v2263 = vadd.f32 %v2224, %v2262
        %2264 = vdwg.mxu0
        %v2265 = vand.u32 %v542, 4294901760
        %v2266 = vsub.f32 %v542, %v2265
        %v2267 = vand.u32 %v2266, 4294901760
        %2268 = vmatpush.msra.mxu0 %v2267
        %v2269 = vand.u32 %v541, 4294901760
        %v2270 = vsub.f32 %v541, %v2269
        %v2271 = vand.u32 %v2270, 4294901760
        %2272 = vmatpush.msra.mxu0 %v2271
        %v2273 = vand.u32 %v540, 4294901760
        %v2274 = vsub.f32 %v540, %v2273
        %v2275 = vand.u32 %v2274, 4294901760
        %2276 = vmatpush.msra.mxu0 %v2275
        %v2277 = vand.u32 %v539, 4294901760
        %v2278 = vsub.f32 %v539, %v2277
        %v2279 = vand.u32 %v2278, 4294901760
        %2280 = vmatpush.msra.mxu0 %v2279
        %v2281 = vand.u32 %v538, 4294901760
        %v2282 = vsub.f32 %v538, %v2281
        %v2283 = vand.u32 %v2282, 4294901760
        %2284 = vmatpush.msra.mxu0 %v2283
        %v2285 = vand.u32 %v537, 4294901760
        %v2286 = vsub.f32 %v537, %v2285
        %v2287 = vand.u32 %v2286, 4294901760
        %2288 = vmatpush.msra.mxu0 %v2287
        %v2289 = vand.u32 %v536, 4294901760
        %v2290 = vsub.f32 %v536, %v2289
        %v2291 = vand.u32 %v2290, 4294901760
        %2292 = vmatpush.msra.mxu0 %v2291
        %v2293 = vand.u32 %v535, 4294901760
        %v2294 = vsub.f32 %v535, %v2293
        %v2295 = vand.u32 %v2294, 4294901760
        %2296 = vmatpush.msra.mxu0 %v2295
        %v2297 = vand.u32 %v534, 4294901760
        %v2298 = vsub.f32 %v534, %v2297
        %v2299 = vand.u32 %v2298, 4294901760
        %2300 = vmatpush.msra.mxu0 %v2299
        %v2301 = vand.u32 %v533, 4294901760
        %v2302 = vsub.f32 %v533, %v2301
        %v2303 = vand.u32 %v2302, 4294901760
        %2304 = vmatpush.msra.mxu0 %v2303
        %v2305 = vand.u32 %v532, 4294901760
        %v2306 = vsub.f32 %v532, %v2305
        %v2307 = vand.u32 %v2306, 4294901760
        %2308 = vmatpush.msra.mxu0 %v2307
        %v2309 = vand.u32 %v531, 4294901760
        %v2310 = vsub.f32 %v531, %v2309
        %v2311 = vand.u32 %v2310, 4294901760
        %2312 = vmatpush.msra.mxu0 %v2311
        %v2313 = vand.u32 %v530, 4294901760
        %v2314 = vsub.f32 %v530, %v2313
        %v2315 = vand.u32 %v2314, 4294901760
        %2316 = vmatpush.msra.mxu0 %v2315
        %v2317 = vand.u32 %v529, 4294901760
        %v2318 = vsub.f32 %v529, %v2317
        %v2319 = vand.u32 %v2318, 4294901760
        %2320 = vmatpush.msra.mxu0 %v2319
        %v2321 = vand.u32 %v528, 4294901760
        %v2322 = vsub.f32 %v528, %v2321
        %v2323 = vand.u32 %v2322, 4294901760
        %2324 = vmatpush.msra.mxu0 %v2323
        %v2325 = vand.u32 %v527, 4294901760
        %v2326 = vsub.f32 %v527, %v2325
        %v2327 = vand.u32 %v2326, 4294901760
        %2328 = vmatpush.msra.mxu0 %v2327
        %v2329 = vand.u32 %v2029, 4294901760
        %2330 = vmatmul.f32.gmra.mxu0 %v2329
        %v2331 = vpop.f32.mrf.mxu0
        %v2332 = vadd.f32 %v2263, %v2331
        %2333 = vdwg.mxu0
        %v2334 = vand.u32 %v542, 4294901760
        %2335 = vmatpush.msra.mxu0 %v2334
        %v2336 = vand.u32 %v541, 4294901760
        %2337 = vmatpush.msra.mxu0 %v2336
        %v2338 = vand.u32 %v540, 4294901760
        %2339 = vmatpush.msra.mxu0 %v2338
        %v2340 = vand.u32 %v539, 4294901760
        %2341 = vmatpush.msra.mxu0 %v2340
        %v2342 = vand.u32 %v538, 4294901760
        %2343 = vmatpush.msra.mxu0 %v2342
        %v2344 = vand.u32 %v537, 4294901760
        %2345 = vmatpush.msra.mxu0 %v2344
        %v2346 = vand.u32 %v536, 4294901760
        %2347 = vmatpush.msra.mxu0 %v2346
        %v2348 = vand.u32 %v535, 4294901760
        %2349 = vmatpush.msra.mxu0 %v2348
        %v2350 = vand.u32 %v534, 4294901760
        %2351 = vmatpush.msra.mxu0 %v2350
        %v2352 = vand.u32 %v533, 4294901760
        %2353 = vmatpush.msra.mxu0 %v2352
        %v2354 = vand.u32 %v532, 4294901760
        %2355 = vmatpush.msra.mxu0 %v2354
        %v2356 = vand.u32 %v531, 4294901760
        %2357 = vmatpush.msra.mxu0 %v2356
        %v2358 = vand.u32 %v530, 4294901760
        %2359 = vmatpush.msra.mxu0 %v2358
        %v2360 = vand.u32 %v529, 4294901760
        %2361 = vmatpush.msra.mxu0 %v2360
        %v2362 = vand.u32 %v528, 4294901760
        %2363 = vmatpush.msra.mxu0 %v2362
        %v2364 = vand.u32 %v527, 4294901760
        %2365 = vmatpush.msra.mxu0 %v2364
        %v2366 = vand.u32 %v2029, 4294901760
        %2367 = vmatmul.f32.gmra.mxu0 %v2366
        %v2368 = vpop.f32.mrf.mxu0
        %v2369 = vadd.f32 %v2332, %v2368
        %2370 = vdwg.mxu0
        %v2371 = vmul.f32 %v2369, 0.001953125
        %v2372 = vperm.slane %v2371, 0
        %v2373 = vsub.f32 %v2020, %v2372
        %v2374 = vmul.f32 %v2373, %v2373
        %v2375 = vrot.slane %v2374, 4
        %v2376 = vadd.f32 %v2374, %v2375
        %v2377 = vrot.slane %v2376, 2
        %v2378 = vadd.f32 %v2376, %v2377
        %v2379 = vrot.slane %v2378, 1
        %v2380 = vadd.f32 %v2378, %v2379
        %v2381 = vand.u32 %v542, 4294901760
        %2382 = vmatpush.msra.mxu0 %v2381
        %v2383 = vand.u32 %v541, 4294901760
        %2384 = vmatpush.msra.mxu0 %v2383
        %v2385 = vand.u32 %v540, 4294901760
        %2386 = vmatpush.msra.mxu0 %v2385
        %v2387 = vand.u32 %v539, 4294901760
        %2388 = vmatpush.msra.mxu0 %v2387
        %v2389 = vand.u32 %v538, 4294901760
        %2390 = vmatpush.msra.mxu0 %v2389
        %v2391 = vand.u32 %v537, 4294901760
        %2392 = vmatpush.msra.mxu0 %v2391
        %v2393 = vand.u32 %v536, 4294901760
        %2394 = vmatpush.msra.mxu0 %v2393
        %v2395 = vand.u32 %v535, 4294901760
        %2396 = vmatpush.msra.mxu0 %v2395
        %v2397 = vand.u32 %v534, 4294901760
        %2398 = vmatpush.msra.mxu0 %v2397
        %v2399 = vand.u32 %v533, 4294901760
        %2400 = vmatpush.msra.mxu0 %v2399
        %v2401 = vand.u32 %v532, 4294901760
        %2402 = vmatpush.msra.mxu0 %v2401
        %v2403 = vand.u32 %v531, 4294901760
        %2404 = vmatpush.msra.mxu0 %v2403
        %v2405 = vand.u32 %v530, 4294901760
        %2406 = vmatpush.msra.mxu0 %v2405
        %v2407 = vand.u32 %v529, 4294901760
        %2408 = vmatpush.msra.mxu0 %v2407
        %v2409 = vand.u32 %v528, 4294901760
        %2410 = vmatpush.msra.mxu0 %v2409
        %v2411 = vand.u32 %v527, 4294901760
        %2412 = vmatpush.msra.mxu0 %v2411
        %v2413 = vand.u32 %v2380, 4294901760
        %v2414 = vsub.f32 %v2380, %v2413
        %v2415 = vand.u32 %v2414, 4294901760
        %v2416 = vsub.f32 %v2414, %v2415
        %v2417 = vand.u32 %v2416, 4294901760
        %2418 = vmatmul.f32.gmra.mxu0 %v2417
        %v2419 = vpop.f32.mrf.mxu0
        %v2420 = vadd.f32 0.0, %v2419
        %2421 = vdwg.mxu0
        %v2422 = vand.u32 %v542, 4294901760
        %v2423 = vsub.f32 %v542, %v2422
        %v2424 = vand.u32 %v2423, 4294901760
        %v2425 = vsub.f32 %v2423, %v2424
        %v2426 = vand.u32 %v2425, 4294901760
        %2427 = vmatpush.msra.mxu0 %v2426
        %v2428 = vand.u32 %v541, 4294901760
        %v2429 = vsub.f32 %v541, %v2428
        %v2430 = vand.u32 %v2429, 4294901760
        %v2431 = vsub.f32 %v2429, %v2430
        %v2432 = vand.u32 %v2431, 4294901760
        %2433 = vmatpush.msra.mxu0 %v2432
        %v2434 = vand.u32 %v540, 4294901760
        %v2435 = vsub.f32 %v540, %v2434
        %v2436 = vand.u32 %v2435, 4294901760
        %v2437 = vsub.f32 %v2435, %v2436
        %v2438 = vand.u32 %v2437, 4294901760
        %2439 = vmatpush.msra.mxu0 %v2438
        %v2440 = vand.u32 %v539, 4294901760
        %v2441 = vsub.f32 %v539, %v2440
        %v2442 = vand.u32 %v2441, 4294901760
        %v2443 = vsub.f32 %v2441, %v2442
        %v2444 = vand.u32 %v2443, 4294901760
        %2445 = vmatpush.msra.mxu0 %v2444
        %v2446 = vand.u32 %v538, 4294901760
        %v2447 = vsub.f32 %v538, %v2446
        %v2448 = vand.u32 %v2447, 4294901760
        %v2449 = vsub.f32 %v2447, %v2448
        %v2450 = vand.u32 %v2449, 4294901760
        %2451 = vmatpush.msra.mxu0 %v2450
        %v2452 = vand.u32 %v537, 4294901760
        %v2453 = vsub.f32 %v537, %v2452
        %v2454 = vand.u32 %v2453, 4294901760
        %v2455 = vsub.f32 %v2453, %v2454
        %v2456 = vand.u32 %v2455, 4294901760
        %2457 = vmatpush.msra.mxu0 %v2456
        %v2458 = vand.u32 %v536, 4294901760
        %v2459 = vsub.f32 %v536, %v2458
        %v2460 = vand.u32 %v2459, 4294901760
        %v2461 = vsub.f32 %v2459, %v2460
        %v2462 = vand.u32 %v2461, 4294901760
        %2463 = vmatpush.msra.mxu0 %v2462
        %v2464 = vand.u32 %v535, 4294901760
        %v2465 = vsub.f32 %v535, %v2464
        %v2466 = vand.u32 %v2465, 4294901760
        %v2467 = vsub.f32 %v2465, %v2466
        %v2468 = vand.u32 %v2467, 4294901760
        %2469 = vmatpush.msra.mxu0 %v2468
        %v2470 = vand.u32 %v534, 4294901760
        %v2471 = vsub.f32 %v534, %v2470
        %v2472 = vand.u32 %v2471, 4294901760
        %v2473 = vsub.f32 %v2471, %v2472
        %v2474 = vand.u32 %v2473, 4294901760
        %2475 = vmatpush.msra.mxu0 %v2474
        %v2476 = vand.u32 %v533, 4294901760
        %v2477 = vsub.f32 %v533, %v2476
        %v2478 = vand.u32 %v2477, 4294901760
        %v2479 = vsub.f32 %v2477, %v2478
        %v2480 = vand.u32 %v2479, 4294901760
        %2481 = vmatpush.msra.mxu0 %v2480
        %v2482 = vand.u32 %v532, 4294901760
        %v2483 = vsub.f32 %v532, %v2482
        %v2484 = vand.u32 %v2483, 4294901760
        %v2485 = vsub.f32 %v2483, %v2484
        %v2486 = vand.u32 %v2485, 4294901760
        %2487 = vmatpush.msra.mxu0 %v2486
        %v2488 = vand.u32 %v531, 4294901760
        %v2489 = vsub.f32 %v531, %v2488
        %v2490 = vand.u32 %v2489, 4294901760
        %v2491 = vsub.f32 %v2489, %v2490
        %v2492 = vand.u32 %v2491, 4294901760
        %2493 = vmatpush.msra.mxu0 %v2492
        %v2494 = vand.u32 %v530, 4294901760
        %v2495 = vsub.f32 %v530, %v2494
        %v2496 = vand.u32 %v2495, 4294901760
        %v2497 = vsub.f32 %v2495, %v2496
        %v2498 = vand.u32 %v2497, 4294901760
        %2499 = vmatpush.msra.mxu0 %v2498
        %v2500 = vand.u32 %v529, 4294901760
        %v2501 = vsub.f32 %v529, %v2500
        %v2502 = vand.u32 %v2501, 4294901760
        %v2503 = vsub.f32 %v2501, %v2502
        %v2504 = vand.u32 %v2503, 4294901760
        %2505 = vmatpush.msra.mxu0 %v2504
        %v2506 = vand.u32 %v528, 4294901760
        %v2507 = vsub.f32 %v528, %v2506
        %v2508 = vand.u32 %v2507, 4294901760
        %v2509 = vsub.f32 %v2507, %v2508
        %v2510 = vand.u32 %v2509, 4294901760
        %2511 = vmatpush.msra.mxu0 %v2510
        %v2512 = vand.u32 %v527, 4294901760
        %v2513 = vsub.f32 %v527, %v2512
        %v2514 = vand.u32 %v2513, 4294901760
        %v2515 = vsub.f32 %v2513, %v2514
        %v2516 = vand.u32 %v2515, 4294901760
        %2517 = vmatpush.msra.mxu0 %v2516
        %v2518 = vand.u32 %v2380, 4294901760
        %2519 = vmatmul.f32.gmra.mxu0 %v2518
        %v2520 = vpop.f32.mrf.mxu0
        %v2521 = vadd.f32 %v2420, %v2520
        %2522 = vdwg.mxu0
        %v2523 = vand.u32 %v542, 4294901760
        %v2524 = vsub.f32 %v542, %v2523
        %2525 = vmatpush.msra.mxu0 %v2524
        %v2526 = vand.u32 %v541, 4294901760
        %v2527 = vsub.f32 %v541, %v2526
        %2528 = vmatpush.msra.mxu0 %v2527
        %v2529 = vand.u32 %v540, 4294901760
        %v2530 = vsub.f32 %v540, %v2529
        %2531 = vmatpush.msra.mxu0 %v2530
        %v2532 = vand.u32 %v539, 4294901760
        %v2533 = vsub.f32 %v539, %v2532
        %2534 = vmatpush.msra.mxu0 %v2533
        %v2535 = vand.u32 %v538, 4294901760
        %v2536 = vsub.f32 %v538, %v2535
        %2537 = vmatpush.msra.mxu0 %v2536
        %v2538 = vand.u32 %v537, 4294901760
        %v2539 = vsub.f32 %v537, %v2538
        %2540 = vmatpush.msra.mxu0 %v2539
        %v2541 = vand.u32 %v536, 4294901760
        %v2542 = vsub.f32 %v536, %v2541
        %2543 = vmatpush.msra.mxu0 %v2542
        %v2544 = vand.u32 %v535, 4294901760
        %v2545 = vsub.f32 %v535, %v2544
        %2546 = vmatpush.msra.mxu0 %v2545
        %v2547 = vand.u32 %v534, 4294901760
        %v2548 = vsub.f32 %v534, %v2547
        %2549 = vmatpush.msra.mxu0 %v2548
        %v2550 = vand.u32 %v533, 4294901760
        %v2551 = vsub.f32 %v533, %v2550
        %2552 = vmatpush.msra.mxu0 %v2551
        %v2553 = vand.u32 %v532, 4294901760
        %v2554 = vsub.f32 %v532, %v2553
        %2555 = vmatpush.msra.mxu0 %v2554
        %v2556 = vand.u32 %v531, 4294901760
        %v2557 = vsub.f32 %v531, %v2556
        %2558 = vmatpush.msra.mxu0 %v2557
        %v2559 = vand.u32 %v530, 4294901760
        %v2560 = vsub.f32 %v530, %v2559
        %2561 = vmatpush.msra.mxu0 %v2560
        %v2562 = vand.u32 %v529, 4294901760
        %v2563 = vsub.f32 %v529, %v2562
        %2564 = vmatpush.msra.mxu0 %v2563
        %v2565 = vand.u32 %v528, 4294901760
        %v2566 = vsub.f32 %v528, %v2565
        %2567 = vmatpush.msra.mxu0 %v2566
        %v2568 = vand.u32 %v527, 4294901760
        %v2569 = vsub.f32 %v527, %v2568
        %2570 = vmatpush.msra.mxu0 %v2569
        %v2571 = vand.u32 %v2380, 4294901760
        %v2572 = vsub.f32 %v2380, %v2571
        %2573 = vmatmul.f32.gmra.mxu0 %v2572
        %v2574 = vpop.f32.mrf.mxu0
        %v2575 = vadd.f32 %v2521, %v2574
        %2576 = vdwg.mxu0
        %v2577 = vand.u32 %v542, 4294901760
        %2578 = vmatpush.msra.mxu0 %v2577
        %v2579 = vand.u32 %v541, 4294901760
        %2580 = vmatpush.msra.mxu0 %v2579
        %v2581 = vand.u32 %v540, 4294901760
        %2582 = vmatpush.msra.mxu0 %v2581
        %v2583 = vand.u32 %v539, 4294901760
        %2584 = vmatpush.msra.mxu0 %v2583
        %v2585 = vand.u32 %v538, 4294901760
        %2586 = vmatpush.msra.mxu0 %v2585
        %v2587 = vand.u32 %v537, 4294901760
        %2588 = vmatpush.msra.mxu0 %v2587
        %v2589 = vand.u32 %v536, 4294901760
        %2590 = vmatpush.msra.mxu0 %v2589
        %v2591 = vand.u32 %v535, 4294901760
        %2592 = vmatpush.msra.mxu0 %v2591
        %v2593 = vand.u32 %v534, 4294901760
        %2594 = vmatpush.msra.mxu0 %v2593
        %v2595 = vand.u32 %v533, 4294901760
        %2596 = vmatpush.msra.mxu0 %v2595
        %v2597 = vand.u32 %v532, 4294901760
        %2598 = vmatpush.msra.mxu0 %v2597
        %v2599 = vand.u32 %v531, 4294901760
        %2600 = vmatpush.msra.mxu0 %v2599
        %v2601 = vand.u32 %v530, 4294901760
        %2602 = vmatpush.msra.mxu0 %v2601
        %v2603 = vand.u32 %v529, 4294901760
        %2604 = vmatpush.msra.mxu0 %v2603
        %v2605 = vand.u32 %v528, 4294901760
        %2606 = vmatpush.msra.mxu0 %v2605
        %v2607 = vand.u32 %v527, 4294901760
        %2608 = vmatpush.msra.mxu0 %v2607
        %v2609 = vand.u32 %v2380, 4294901760
        %v2610 = vsub.f32 %v2380, %v2609
        %v2611 = vand.u32 %v2610, 4294901760
        %2612 = vmatmul.f32.gmra.mxu0 %v2611
        %v2613 = vpop.f32.mrf.mxu0
        %v2614 = vadd.f32 %v2575, %v2613
        %2615 = vdwg.mxu0
        %v2616 = vand.u32 %v542, 4294901760
        %v2617 = vsub.f32 %v542, %v2616
        %v2618 = vand.u32 %v2617, 4294901760
        %2619 = vmatpush.msra.mxu0 %v2618
        %v2620 = vand.u32 %v541, 4294901760
        %v2621 = vsub.f32 %v541, %v2620
        %v2622 = vand.u32 %v2621, 4294901760
        %2623 = vmatpush.msra.mxu0 %v2622
        %v2624 = vand.u32 %v540, 4294901760
        %v2625 = vsub.f32 %v540, %v2624
        %v2626 = vand.u32 %v2625, 4294901760
        %2627 = vmatpush.msra.mxu0 %v2626
        %v2628 = vand.u32 %v539, 4294901760
        %v2629 = vsub.f32 %v539, %v2628
        %v2630 = vand.u32 %v2629, 4294901760
        %2631 = vmatpush.msra.mxu0 %v2630
        %v2632 = vand.u32 %v538, 4294901760
        %v2633 = vsub.f32 %v538, %v2632
        %v2634 = vand.u32 %v2633, 4294901760
        %2635 = vmatpush.msra.mxu0 %v2634
        %v2636 = vand.u32 %v537, 4294901760
        %v2637 = vsub.f32 %v537, %v2636
        %v2638 = vand.u32 %v2637, 4294901760
        %2639 = vmatpush.msra.mxu0 %v2638
        %v2640 = vand.u32 %v536, 4294901760
        %v2641 = vsub.f32 %v536, %v2640
        %v2642 = vand.u32 %v2641, 4294901760
        %2643 = vmatpush.msra.mxu0 %v2642
        %v2644 = vand.u32 %v535, 4294901760
        %v2645 = vsub.f32 %v535, %v2644
        %v2646 = vand.u32 %v2645, 4294901760
        %2647 = vmatpush.msra.mxu0 %v2646
        %v2648 = vand.u32 %v534, 4294901760
        %v2649 = vsub.f32 %v534, %v2648
        %v2650 = vand.u32 %v2649, 4294901760
        %2651 = vmatpush.msra.mxu0 %v2650
        %v2652 = vand.u32 %v533, 4294901760
        %v2653 = vsub.f32 %v533, %v2652
        %v2654 = vand.u32 %v2653, 4294901760
        %2655 = vmatpush.msra.mxu0 %v2654
        %v2656 = vand.u32 %v532, 4294901760
        %v2657 = vsub.f32 %v532, %v2656
        %v2658 = vand.u32 %v2657, 4294901760
        %2659 = vmatpush.msra.mxu0 %v2658
        %v2660 = vand.u32 %v531, 4294901760
        %v2661 = vsub.f32 %v531, %v2660
        %v2662 = vand.u32 %v2661, 4294901760
        %2663 = vmatpush.msra.mxu0 %v2662
        %v2664 = vand.u32 %v530, 4294901760
        %v2665 = vsub.f32 %v530, %v2664
        %v2666 = vand.u32 %v2665, 4294901760
        %2667 = vmatpush.msra.mxu0 %v2666
        %v2668 = vand.u32 %v529, 4294901760
        %v2669 = vsub.f32 %v529, %v2668
        %v2670 = vand.u32 %v2669, 4294901760
        %2671 = vmatpush.msra.mxu0 %v2670
        %v2672 = vand.u32 %v528, 4294901760
        %v2673 = vsub.f32 %v528, %v2672
        %v2674 = vand.u32 %v2673, 4294901760
        %2675 = vmatpush.msra.mxu0 %v2674
        %v2676 = vand.u32 %v527, 4294901760
        %v2677 = vsub.f32 %v527, %v2676
        %v2678 = vand.u32 %v2677, 4294901760
        %2679 = vmatpush.msra.mxu0 %v2678
        %v2680 = vand.u32 %v2380, 4294901760
        %2681 = vmatmul.f32.gmra.mxu0 %v2680
        %v2682 = vpop.f32.mrf.mxu0
        %v2683 = vadd.f32 %v2614, %v2682
        %2684 = vdwg.mxu0
        %v2685 = vand.u32 %v542, 4294901760
        %2686 = vmatpush.msra.mxu0 %v2685
        %v2687 = vand.u32 %v541, 4294901760
        %2688 = vmatpush.msra.mxu0 %v2687
        %v2689 = vand.u32 %v540, 4294901760
        %2690 = vmatpush.msra.mxu0 %v2689
        %v2691 = vand.u32 %v539, 4294901760
        %2692 = vmatpush.msra.mxu0 %v2691
        %v2693 = vand.u32 %v538, 4294901760
        %2694 = vmatpush.msra.mxu0 %v2693
        %v2695 = vand.u32 %v537, 4294901760
        %2696 = vmatpush.msra.mxu0 %v2695
        %v2697 = vand.u32 %v536, 4294901760
        %2698 = vmatpush.msra.mxu0 %v2697
        %v2699 = vand.u32 %v535, 4294901760
        %2700 = vmatpush.msra.mxu0 %v2699
        %v2701 = vand.u32 %v534, 4294901760
        %2702 = vmatpush.msra.mxu0 %v2701
        %v2703 = vand.u32 %v533, 4294901760
        %2704 = vmatpush.msra.mxu0 %v2703
        %v2705 = vand.u32 %v532, 4294901760
        %2706 = vmatpush.msra.mxu0 %v2705
        %v2707 = vand.u32 %v531, 4294901760
        %2708 = vmatpush.msra.mxu0 %v2707
        %v2709 = vand.u32 %v530, 4294901760
        %2710 = vmatpush.msra.mxu0 %v2709
        %v2711 = vand.u32 %v529, 4294901760
        %2712 = vmatpush.msra.mxu0 %v2711
        %v2713 = vand.u32 %v528, 4294901760
        %2714 = vmatpush.msra.mxu0 %v2713
        %v2715 = vand.u32 %v527, 4294901760
        %2716 = vmatpush.msra.mxu0 %v2715
        %v2717 = vand.u32 %v2380, 4294901760
        %2718 = vmatmul.f32.gmra.mxu0 %v2717
        %v2719 = vpop.f32.mrf.mxu0
        %v2720 = vadd.f32 %v2683, %v2719
        %2721 = vdwg.mxu0
        %v2722 = vmul.f32 %v2720, 0.001953125
        %v2723 = vadd.f32 %v2722, 1e-05
        %v2724 = vrsqrt.pop %v2723
        %v2725 = vmul.f32 %v2724, %v2723
        %v2726 = vmul.f32 %v2725, %v2724
        %v2727 = vmul.f32 0.5, %v2726
        %v2728 = vsub.f32 1.5, %v2727
        %v2729 = vmul.f32 %v2724, %v2728
        %vm2730 = vweird.f32 %v2723
        %vm2731 = vweird.f32 %v2724
        %vm2732 = vmor %vm2730, %vm2731
        %v2733 = vsel %vm2732, %v2724, %v2729
        %v2734 = vperm.slane %v2733, 0
        %v2735 = vmul.f32 %v2373, %v2734
        %v2736 = vmul.f32 %v2735, %v2022
        %v2737 = vadd.f32 %v2736, %v2023
        %v2738 = vld [vmem:[%s11] sm:$0xff]
        %v2739 = vld [vmem:[%s12] sm:$0xff]
        %v2740 = vrot.slane %v2021, 4
        %v2741 = vadd.f32 %v2021, %v2740
        %v2742 = vrot.slane %v2741, 2
        %v2743 = vadd.f32 %v2741, %v2742
        %v2744 = vrot.slane %v2743, 1
        %v2745 = vadd.f32 %v2743, %v2744
        %v2746 = vand.u32 %v542, 4294901760
        %2747 = vmatpush.msra.mxu0 %v2746
        %v2748 = vand.u32 %v541, 4294901760
        %2749 = vmatpush.msra.mxu0 %v2748
        %v2750 = vand.u32 %v540, 4294901760
        %2751 = vmatpush.msra.mxu0 %v2750
        %v2752 = vand.u32 %v539, 4294901760
        %2753 = vmatpush.msra.mxu0 %v2752
        %v2754 = vand.u32 %v538, 4294901760
        %2755 = vmatpush.msra.mxu0 %v2754
        %v2756 = vand.u32 %v537, 4294901760
        %2757 = vmatpush.msra.mxu0 %v2756
        %v2758 = vand.u32 %v536, 4294901760
        %2759 = vmatpush.msra.mxu0 %v2758
        %v2760 = vand.u32 %v535, 4294901760
        %2761 = vmatpush.msra.mxu0 %v2760
        %v2762 = vand.u32 %v534, 4294901760
        %2763 = vmatpush.msra.mxu0 %v2762
        %v2764 = vand.u32 %v533, 4294901760
        %2765 = vmatpush.msra.mxu0 %v2764
        %v2766 = vand.u32 %v532, 4294901760
        %2767 = vmatpush.msra.mxu0 %v2766
        %v2768 = vand.u32 %v531, 4294901760
        %2769 = vmatpush.msra.mxu0 %v2768
        %v2770 = vand.u32 %v530, 4294901760
        %2771 = vmatpush.msra.mxu0 %v2770
        %v2772 = vand.u32 %v529, 4294901760
        %2773 = vmatpush.msra.mxu0 %v2772
        %v2774 = vand.u32 %v528, 4294901760
        %2775 = vmatpush.msra.mxu0 %v2774
        %v2776 = vand.u32 %v527, 4294901760
        %2777 = vmatpush.msra.mxu0 %v2776
        %v2778 = vand.u32 %v2745, 4294901760
        %v2779 = vsub.f32 %v2745, %v2778
        %v2780 = vand.u32 %v2779, 4294901760
        %v2781 = vsub.f32 %v2779, %v2780
        %v2782 = vand.u32 %v2781, 4294901760
        %2783 = vmatmul.f32.gmra.mxu0 %v2782
        %v2784 = vpop.f32.mrf.mxu0
        %v2785 = vadd.f32 0.0, %v2784
        %2786 = vdwg.mxu0
        %v2787 = vand.u32 %v542, 4294901760
        %v2788 = vsub.f32 %v542, %v2787
        %v2789 = vand.u32 %v2788, 4294901760
        %v2790 = vsub.f32 %v2788, %v2789
        %v2791 = vand.u32 %v2790, 4294901760
        %2792 = vmatpush.msra.mxu0 %v2791
        %v2793 = vand.u32 %v541, 4294901760
        %v2794 = vsub.f32 %v541, %v2793
        %v2795 = vand.u32 %v2794, 4294901760
        %v2796 = vsub.f32 %v2794, %v2795
        %v2797 = vand.u32 %v2796, 4294901760
        %2798 = vmatpush.msra.mxu0 %v2797
        %v2799 = vand.u32 %v540, 4294901760
        %v2800 = vsub.f32 %v540, %v2799
        %v2801 = vand.u32 %v2800, 4294901760
        %v2802 = vsub.f32 %v2800, %v2801
        %v2803 = vand.u32 %v2802, 4294901760
        %2804 = vmatpush.msra.mxu0 %v2803
        %v2805 = vand.u32 %v539, 4294901760
        %v2806 = vsub.f32 %v539, %v2805
        %v2807 = vand.u32 %v2806, 4294901760
        %v2808 = vsub.f32 %v2806, %v2807
        %v2809 = vand.u32 %v2808, 4294901760
        %2810 = vmatpush.msra.mxu0 %v2809
        %v2811 = vand.u32 %v538, 4294901760
        %v2812 = vsub.f32 %v538, %v2811
        %v2813 = vand.u32 %v2812, 4294901760
        %v2814 = vsub.f32 %v2812, %v2813
        %v2815 = vand.u32 %v2814, 4294901760
        %2816 = vmatpush.msra.mxu0 %v2815
        %v2817 = vand.u32 %v537, 4294901760
        %v2818 = vsub.f32 %v537, %v2817
        %v2819 = vand.u32 %v2818, 4294901760
        %v2820 = vsub.f32 %v2818, %v2819
        %v2821 = vand.u32 %v2820, 4294901760
        %2822 = vmatpush.msra.mxu0 %v2821
        %v2823 = vand.u32 %v536, 4294901760
        %v2824 = vsub.f32 %v536, %v2823
        %v2825 = vand.u32 %v2824, 4294901760
        %v2826 = vsub.f32 %v2824, %v2825
        %v2827 = vand.u32 %v2826, 4294901760
        %2828 = vmatpush.msra.mxu0 %v2827
        %v2829 = vand.u32 %v535, 4294901760
        %v2830 = vsub.f32 %v535, %v2829
        %v2831 = vand.u32 %v2830, 4294901760
        %v2832 = vsub.f32 %v2830, %v2831
        %v2833 = vand.u32 %v2832, 4294901760
        %2834 = vmatpush.msra.mxu0 %v2833
        %v2835 = vand.u32 %v534, 4294901760
        %v2836 = vsub.f32 %v534, %v2835
        %v2837 = vand.u32 %v2836, 4294901760
        %v2838 = vsub.f32 %v2836, %v2837
        %v2839 = vand.u32 %v2838, 4294901760
        %2840 = vmatpush.msra.mxu0 %v2839
        %v2841 = vand.u32 %v533, 4294901760
        %v2842 = vsub.f32 %v533, %v2841
        %v2843 = vand.u32 %v2842, 4294901760
        %v2844 = vsub.f32 %v2842, %v2843
        %v2845 = vand.u32 %v2844, 4294901760
        %2846 = vmatpush.msra.mxu0 %v2845
        %v2847 = vand.u32 %v532, 4294901760
        %v2848 = vsub.f32 %v532, %v2847
        %v2849 = vand.u32 %v2848, 4294901760
        %v2850 = vsub.f32 %v2848, %v2849
        %v2851 = vand.u32 %v2850, 4294901760
        %2852 = vmatpush.msra.mxu0 %v2851
        %v2853 = vand.u32 %v531, 4294901760
        %v2854 = vsub.f32 %v531, %v2853
        %v2855 = vand.u32 %v2854, 4294901760
        %v2856 = vsub.f32 %v2854, %v2855
        %v2857 = vand.u32 %v2856, 4294901760
        %2858 = vmatpush.msra.mxu0 %v2857
        %v2859 = vand.u32 %v530, 4294901760
        %v2860 = vsub.f32 %v530, %v2859
        %v2861 = vand.u32 %v2860, 4294901760
        %v2862 = vsub.f32 %v2860, %v2861
        %v2863 = vand.u32 %v2862, 4294901760
        %2864 = vmatpush.msra.mxu0 %v2863
        %v2865 = vand.u32 %v529, 4294901760
        %v2866 = vsub.f32 %v529, %v2865
        %v2867 = vand.u32 %v2866, 4294901760
        %v2868 = vsub.f32 %v2866, %v2867
        %v2869 = vand.u32 %v2868, 4294901760
        %2870 = vmatpush.msra.mxu0 %v2869
        %v2871 = vand.u32 %v528, 4294901760
        %v2872 = vsub.f32 %v528, %v2871
        %v2873 = vand.u32 %v2872, 4294901760
        %v2874 = vsub.f32 %v2872, %v2873
        %v2875 = vand.u32 %v2874, 4294901760
        %2876 = vmatpush.msra.mxu0 %v2875
        %v2877 = vand.u32 %v527, 4294901760
        %v2878 = vsub.f32 %v527, %v2877
        %v2879 = vand.u32 %v2878, 4294901760
        %v2880 = vsub.f32 %v2878, %v2879
        %v2881 = vand.u32 %v2880, 4294901760
        %2882 = vmatpush.msra.mxu0 %v2881
        %v2883 = vand.u32 %v2745, 4294901760
        %2884 = vmatmul.f32.gmra.mxu0 %v2883
        %v2885 = vpop.f32.mrf.mxu0
        %v2886 = vadd.f32 %v2785, %v2885
        %2887 = vdwg.mxu0
        %v2888 = vand.u32 %v542, 4294901760
        %v2889 = vsub.f32 %v542, %v2888
        %2890 = vmatpush.msra.mxu0 %v2889
        %v2891 = vand.u32 %v541, 4294901760
        %v2892 = vsub.f32 %v541, %v2891
        %2893 = vmatpush.msra.mxu0 %v2892
        %v2894 = vand.u32 %v540, 4294901760
        %v2895 = vsub.f32 %v540, %v2894
        %2896 = vmatpush.msra.mxu0 %v2895
        %v2897 = vand.u32 %v539, 4294901760
        %v2898 = vsub.f32 %v539, %v2897
        %2899 = vmatpush.msra.mxu0 %v2898
        %v2900 = vand.u32 %v538, 4294901760
        %v2901 = vsub.f32 %v538, %v2900
        %2902 = vmatpush.msra.mxu0 %v2901
        %v2903 = vand.u32 %v537, 4294901760
        %v2904 = vsub.f32 %v537, %v2903
        %2905 = vmatpush.msra.mxu0 %v2904
        %v2906 = vand.u32 %v536, 4294901760
        %v2907 = vsub.f32 %v536, %v2906
        %2908 = vmatpush.msra.mxu0 %v2907
        %v2909 = vand.u32 %v535, 4294901760
        %v2910 = vsub.f32 %v535, %v2909
        %2911 = vmatpush.msra.mxu0 %v2910
        %v2912 = vand.u32 %v534, 4294901760
        %v2913 = vsub.f32 %v534, %v2912
        %2914 = vmatpush.msra.mxu0 %v2913
        %v2915 = vand.u32 %v533, 4294901760
        %v2916 = vsub.f32 %v533, %v2915
        %2917 = vmatpush.msra.mxu0 %v2916
        %v2918 = vand.u32 %v532, 4294901760
        %v2919 = vsub.f32 %v532, %v2918
        %2920 = vmatpush.msra.mxu0 %v2919
        %v2921 = vand.u32 %v531, 4294901760
        %v2922 = vsub.f32 %v531, %v2921
        %2923 = vmatpush.msra.mxu0 %v2922
        %v2924 = vand.u32 %v530, 4294901760
        %v2925 = vsub.f32 %v530, %v2924
        %2926 = vmatpush.msra.mxu0 %v2925
        %v2927 = vand.u32 %v529, 4294901760
        %v2928 = vsub.f32 %v529, %v2927
        %2929 = vmatpush.msra.mxu0 %v2928
        %v2930 = vand.u32 %v528, 4294901760
        %v2931 = vsub.f32 %v528, %v2930
        %2932 = vmatpush.msra.mxu0 %v2931
        %v2933 = vand.u32 %v527, 4294901760
        %v2934 = vsub.f32 %v527, %v2933
        %2935 = vmatpush.msra.mxu0 %v2934
        %v2936 = vand.u32 %v2745, 4294901760
        %v2937 = vsub.f32 %v2745, %v2936
        %2938 = vmatmul.f32.gmra.mxu0 %v2937
        %v2939 = vpop.f32.mrf.mxu0
        %v2940 = vadd.f32 %v2886, %v2939
        %2941 = vdwg.mxu0
        %v2942 = vand.u32 %v542, 4294901760
        %2943 = vmatpush.msra.mxu0 %v2942
        %v2944 = vand.u32 %v541, 4294901760
        %2945 = vmatpush.msra.mxu0 %v2944
        %v2946 = vand.u32 %v540, 4294901760
        %2947 = vmatpush.msra.mxu0 %v2946
        %v2948 = vand.u32 %v539, 4294901760
        %2949 = vmatpush.msra.mxu0 %v2948
        %v2950 = vand.u32 %v538, 4294901760
        %2951 = vmatpush.msra.mxu0 %v2950
        %v2952 = vand.u32 %v537, 4294901760
        %2953 = vmatpush.msra.mxu0 %v2952
        %v2954 = vand.u32 %v536, 4294901760
        %2955 = vmatpush.msra.mxu0 %v2954
        %v2956 = vand.u32 %v535, 4294901760
        %2957 = vmatpush.msra.mxu0 %v2956
        %v2958 = vand.u32 %v534, 4294901760
        %2959 = vmatpush.msra.mxu0 %v2958
        %v2960 = vand.u32 %v533, 4294901760
        %2961 = vmatpush.msra.mxu0 %v2960
        %v2962 = vand.u32 %v532, 4294901760
        %2963 = vmatpush.msra.mxu0 %v2962
        %v2964 = vand.u32 %v531, 4294901760
        %2965 = vmatpush.msra.mxu0 %v2964
        %v2966 = vand.u32 %v530, 4294901760
        %2967 = vmatpush.msra.mxu0 %v2966
        %v2968 = vand.u32 %v529, 4294901760
        %2969 = vmatpush.msra.mxu0 %v2968
        %v2970 = vand.u32 %v528, 4294901760
        %2971 = vmatpush.msra.mxu0 %v2970
        %v2972 = vand.u32 %v527, 4294901760
        %2973 = vmatpush.msra.mxu0 %v2972
        %v2974 = vand.u32 %v2745, 4294901760
        %v2975 = vsub.f32 %v2745, %v2974
        %v2976 = vand.u32 %v2975, 4294901760
        %2977 = vmatmul.f32.gmra.mxu0 %v2976
        %v2978 = vpop.f32.mrf.mxu0
        %v2979 = vadd.f32 %v2940, %v2978
        %2980 = vdwg.mxu0
        %v2981 = vand.u32 %v542, 4294901760
        %v2982 = vsub.f32 %v542, %v2981
        %v2983 = vand.u32 %v2982, 4294901760
        %2984 = vmatpush.msra.mxu0 %v2983
        %v2985 = vand.u32 %v541, 4294901760
        %v2986 = vsub.f32 %v541, %v2985
        %v2987 = vand.u32 %v2986, 4294901760
        %2988 = vmatpush.msra.mxu0 %v2987
        %v2989 = vand.u32 %v540, 4294901760
        %v2990 = vsub.f32 %v540, %v2989
        %v2991 = vand.u32 %v2990, 4294901760
        %2992 = vmatpush.msra.mxu0 %v2991
        %v2993 = vand.u32 %v539, 4294901760
        %v2994 = vsub.f32 %v539, %v2993
        %v2995 = vand.u32 %v2994, 4294901760
        %2996 = vmatpush.msra.mxu0 %v2995
        %v2997 = vand.u32 %v538, 4294901760
        %v2998 = vsub.f32 %v538, %v2997
        %v2999 = vand.u32 %v2998, 4294901760
        %3000 = vmatpush.msra.mxu0 %v2999
        %v3001 = vand.u32 %v537, 4294901760
        %v3002 = vsub.f32 %v537, %v3001
        %v3003 = vand.u32 %v3002, 4294901760
        %3004 = vmatpush.msra.mxu0 %v3003
        %v3005 = vand.u32 %v536, 4294901760
        %v3006 = vsub.f32 %v536, %v3005
        %v3007 = vand.u32 %v3006, 4294901760
        %3008 = vmatpush.msra.mxu0 %v3007
        %v3009 = vand.u32 %v535, 4294901760
        %v3010 = vsub.f32 %v535, %v3009
        %v3011 = vand.u32 %v3010, 4294901760
        %3012 = vmatpush.msra.mxu0 %v3011
        %v3013 = vand.u32 %v534, 4294901760
        %v3014 = vsub.f32 %v534, %v3013
        %v3015 = vand.u32 %v3014, 4294901760
        %3016 = vmatpush.msra.mxu0 %v3015
        %v3017 = vand.u32 %v533, 4294901760
        %v3018 = vsub.f32 %v533, %v3017
        %v3019 = vand.u32 %v3018, 4294901760
        %3020 = vmatpush.msra.mxu0 %v3019
        %v3021 = vand.u32 %v532, 4294901760
        %v3022 = vsub.f32 %v532, %v3021
        %v3023 = vand.u32 %v3022, 4294901760
        %3024 = vmatpush.msra.mxu0 %v3023
        %v3025 = vand.u32 %v531, 4294901760
        %v3026 = vsub.f32 %v531, %v3025
        %v3027 = vand.u32 %v3026, 4294901760
        %3028 = vmatpush.msra.mxu0 %v3027
        %v3029 = vand.u32 %v530, 4294901760
        %v3030 = vsub.f32 %v530, %v3029
        %v3031 = vand.u32 %v3030, 4294901760
        %3032 = vmatpush.msra.mxu0 %v3031
        %v3033 = vand.u32 %v529, 4294901760
        %v3034 = vsub.f32 %v529, %v3033
        %v3035 = vand.u32 %v3034, 4294901760
        %3036 = vmatpush.msra.mxu0 %v3035
        %v3037 = vand.u32 %v528, 4294901760
        %v3038 = vsub.f32 %v528, %v3037
        %v3039 = vand.u32 %v3038, 4294901760
        %3040 = vmatpush.msra.mxu0 %v3039
        %v3041 = vand.u32 %v527, 4294901760
        %v3042 = vsub.f32 %v527, %v3041
        %v3043 = vand.u32 %v3042, 4294901760
        %3044 = vmatpush.msra.mxu0 %v3043
        %v3045 = vand.u32 %v2745, 4294901760
        %3046 = vmatmul.f32.gmra.mxu0 %v3045
        %v3047 = vpop.f32.mrf.mxu0
        %v3048 = vadd.f32 %v2979, %v3047
        %3049 = vdwg.mxu0
        %v3050 = vand.u32 %v542, 4294901760
        %3051 = vmatpush.msra.mxu0 %v3050
        %v3052 = vand.u32 %v541, 4294901760
        %3053 = vmatpush.msra.mxu0 %v3052
        %v3054 = vand.u32 %v540, 4294901760
        %3055 = vmatpush.msra.mxu0 %v3054
        %v3056 = vand.u32 %v539, 4294901760
        %3057 = vmatpush.msra.mxu0 %v3056
        %v3058 = vand.u32 %v538, 4294901760
        %3059 = vmatpush.msra.mxu0 %v3058
        %v3060 = vand.u32 %v537, 4294901760
        %3061 = vmatpush.msra.mxu0 %v3060
        %v3062 = vand.u32 %v536, 4294901760
        %3063 = vmatpush.msra.mxu0 %v3062
        %v3064 = vand.u32 %v535, 4294901760
        %3065 = vmatpush.msra.mxu0 %v3064
        %v3066 = vand.u32 %v534, 4294901760
        %3067 = vmatpush.msra.mxu0 %v3066
        %v3068 = vand.u32 %v533, 4294901760
        %3069 = vmatpush.msra.mxu0 %v3068
        %v3070 = vand.u32 %v532, 4294901760
        %3071 = vmatpush.msra.mxu0 %v3070
        %v3072 = vand.u32 %v531, 4294901760
        %3073 = vmatpush.msra.mxu0 %v3072
        %v3074 = vand.u32 %v530, 4294901760
        %3075 = vmatpush.msra.mxu0 %v3074
        %v3076 = vand.u32 %v529, 4294901760
        %3077 = vmatpush.msra.mxu0 %v3076
        %v3078 = vand.u32 %v528, 4294901760
        %3079 = vmatpush.msra.mxu0 %v3078
        %v3080 = vand.u32 %v527, 4294901760
        %3081 = vmatpush.msra.mxu0 %v3080
        %v3082 = vand.u32 %v2745, 4294901760
        %3083 = vmatmul.f32.gmra.mxu0 %v3082
        %v3084 = vpop.f32.mrf.mxu0
        %v3085 = vadd.f32 %v3048, %v3084
        %3086 = vdwg.mxu0
        %v3087 = vmul.f32 %v3085, 0.001953125
        %v3088 = vperm.slane %v3087, 0
        %v3089 = vsub.f32 %v2021, %v3088
        %v3090 = vmul.f32 %v3089, %v3089
        %v3091 = vrot.slane %v3090, 4
        %v3092 = vadd.f32 %v3090, %v3091
        %v3093 = vrot.slane %v3092, 2
        %v3094 = vadd.f32 %v3092, %v3093
        %v3095 = vrot.slane %v3094, 1
        %v3096 = vadd.f32 %v3094, %v3095
        %v3097 = vand.u32 %v542, 4294901760
        %3098 = vmatpush.msra.mxu0 %v3097
        %v3099 = vand.u32 %v541, 4294901760
        %3100 = vmatpush.msra.mxu0 %v3099
        %v3101 = vand.u32 %v540, 4294901760
        %3102 = vmatpush.msra.mxu0 %v3101
        %v3103 = vand.u32 %v539, 4294901760
        %3104 = vmatpush.msra.mxu0 %v3103
        %v3105 = vand.u32 %v538, 4294901760
        %3106 = vmatpush.msra.mxu0 %v3105
        %v3107 = vand.u32 %v537, 4294901760
        %3108 = vmatpush.msra.mxu0 %v3107
        %v3109 = vand.u32 %v536, 4294901760
        %3110 = vmatpush.msra.mxu0 %v3109
        %v3111 = vand.u32 %v535, 4294901760
        %3112 = vmatpush.msra.mxu0 %v3111
        %v3113 = vand.u32 %v534, 4294901760
        %3114 = vmatpush.msra.mxu0 %v3113
        %v3115 = vand.u32 %v533, 4294901760
        %3116 = vmatpush.msra.mxu0 %v3115
        %v3117 = vand.u32 %v532, 4294901760
        %3118 = vmatpush.msra.mxu0 %v3117
        %v3119 = vand.u32 %v531, 4294901760
        %3120 = vmatpush.msra.mxu0 %v3119
        %v3121 = vand.u32 %v530, 4294901760
        %3122 = vmatpush.msra.mxu0 %v3121
        %v3123 = vand.u32 %v529, 4294901760
        %3124 = vmatpush.msra.mxu0 %v3123
        %v3125 = vand.u32 %v528, 4294901760
        %3126 = vmatpush.msra.mxu0 %v3125
        %v3127 = vand.u32 %v527, 4294901760
        %3128 = vmatpush.msra.mxu0 %v3127
        %v3129 = vand.u32 %v3096, 4294901760
        %v3130 = vsub.f32 %v3096, %v3129
        %v3131 = vand.u32 %v3130, 4294901760
        %v3132 = vsub.f32 %v3130, %v3131
        %v3133 = vand.u32 %v3132, 4294901760
        %3134 = vmatmul.f32.gmra.mxu0 %v3133
        %v3135 = vpop.f32.mrf.mxu0
        %v3136 = vadd.f32 0.0, %v3135
        %3137 = vdwg.mxu0
        %v3138 = vand.u32 %v542, 4294901760
        %v3139 = vsub.f32 %v542, %v3138
        %v3140 = vand.u32 %v3139, 4294901760
        %v3141 = vsub.f32 %v3139, %v3140
        %v3142 = vand.u32 %v3141, 4294901760
        %3143 = vmatpush.msra.mxu0 %v3142
        %v3144 = vand.u32 %v541, 4294901760
        %v3145 = vsub.f32 %v541, %v3144
        %v3146 = vand.u32 %v3145, 4294901760
        %v3147 = vsub.f32 %v3145, %v3146
        %v3148 = vand.u32 %v3147, 4294901760
        %3149 = vmatpush.msra.mxu0 %v3148
        %v3150 = vand.u32 %v540, 4294901760
        %v3151 = vsub.f32 %v540, %v3150
        %v3152 = vand.u32 %v3151, 4294901760
        %v3153 = vsub.f32 %v3151, %v3152
        %v3154 = vand.u32 %v3153, 4294901760
        %3155 = vmatpush.msra.mxu0 %v3154
        %v3156 = vand.u32 %v539, 4294901760
        %v3157 = vsub.f32 %v539, %v3156
        %v3158 = vand.u32 %v3157, 4294901760
        %v3159 = vsub.f32 %v3157, %v3158
        %v3160 = vand.u32 %v3159, 4294901760
        %3161 = vmatpush.msra.mxu0 %v3160
        %v3162 = vand.u32 %v538, 4294901760
        %v3163 = vsub.f32 %v538, %v3162
        %v3164 = vand.u32 %v3163, 4294901760
        %v3165 = vsub.f32 %v3163, %v3164
        %v3166 = vand.u32 %v3165, 4294901760
        %3167 = vmatpush.msra.mxu0 %v3166
        %v3168 = vand.u32 %v537, 4294901760
        %v3169 = vsub.f32 %v537, %v3168
        %v3170 = vand.u32 %v3169, 4294901760
        %v3171 = vsub.f32 %v3169, %v3170
        %v3172 = vand.u32 %v3171, 4294901760
        %3173 = vmatpush.msra.mxu0 %v3172
        %v3174 = vand.u32 %v536, 4294901760
        %v3175 = vsub.f32 %v536, %v3174
        %v3176 = vand.u32 %v3175, 4294901760
        %v3177 = vsub.f32 %v3175, %v3176
        %v3178 = vand.u32 %v3177, 4294901760
        %3179 = vmatpush.msra.mxu0 %v3178
        %v3180 = vand.u32 %v535, 4294901760
        %v3181 = vsub.f32 %v535, %v3180
        %v3182 = vand.u32 %v3181, 4294901760
        %v3183 = vsub.f32 %v3181, %v3182
        %v3184 = vand.u32 %v3183, 4294901760
        %3185 = vmatpush.msra.mxu0 %v3184
        %v3186 = vand.u32 %v534, 4294901760
        %v3187 = vsub.f32 %v534, %v3186
        %v3188 = vand.u32 %v3187, 4294901760
        %v3189 = vsub.f32 %v3187, %v3188
        %v3190 = vand.u32 %v3189, 4294901760
        %3191 = vmatpush.msra.mxu0 %v3190
        %v3192 = vand.u32 %v533, 4294901760
        %v3193 = vsub.f32 %v533, %v3192
        %v3194 = vand.u32 %v3193, 4294901760
        %v3195 = vsub.f32 %v3193, %v3194
        %v3196 = vand.u32 %v3195, 4294901760
        %3197 = vmatpush.msra.mxu0 %v3196
        %v3198 = vand.u32 %v532, 4294901760
        %v3199 = vsub.f32 %v532, %v3198
        %v3200 = vand.u32 %v3199, 4294901760
        %v3201 = vsub.f32 %v3199, %v3200
        %v3202 = vand.u32 %v3201, 4294901760
        %3203 = vmatpush.msra.mxu0 %v3202
        %v3204 = vand.u32 %v531, 4294901760
        %v3205 = vsub.f32 %v531, %v3204
        %v3206 = vand.u32 %v3205, 4294901760
        %v3207 = vsub.f32 %v3205, %v3206
        %v3208 = vand.u32 %v3207, 4294901760
        %3209 = vmatpush.msra.mxu0 %v3208
        %v3210 = vand.u32 %v530, 4294901760
        %v3211 = vsub.f32 %v530, %v3210
        %v3212 = vand.u32 %v3211, 4294901760
        %v3213 = vsub.f32 %v3211, %v3212
        %v3214 = vand.u32 %v3213, 4294901760
        %3215 = vmatpush.msra.mxu0 %v3214
        %v3216 = vand.u32 %v529, 4294901760
        %v3217 = vsub.f32 %v529, %v3216
        %v3218 = vand.u32 %v3217, 4294901760
        %v3219 = vsub.f32 %v3217, %v3218
        %v3220 = vand.u32 %v3219, 4294901760
        %3221 = vmatpush.msra.mxu0 %v3220
        %v3222 = vand.u32 %v528, 4294901760
        %v3223 = vsub.f32 %v528, %v3222
        %v3224 = vand.u32 %v3223, 4294901760
        %v3225 = vsub.f32 %v3223, %v3224
        %v3226 = vand.u32 %v3225, 4294901760
        %3227 = vmatpush.msra.mxu0 %v3226
        %v3228 = vand.u32 %v527, 4294901760
        %v3229 = vsub.f32 %v527, %v3228
        %v3230 = vand.u32 %v3229, 4294901760
        %v3231 = vsub.f32 %v3229, %v3230
        %v3232 = vand.u32 %v3231, 4294901760
        %3233 = vmatpush.msra.mxu0 %v3232
        %v3234 = vand.u32 %v3096, 4294901760
        %3235 = vmatmul.f32.gmra.mxu0 %v3234
        %v3236 = vpop.f32.mrf.mxu0
        %v3237 = vadd.f32 %v3136, %v3236
        %3238 = vdwg.mxu0
        %v3239 = vand.u32 %v542, 4294901760
        %v3240 = vsub.f32 %v542, %v3239
        %3241 = vmatpush.msra.mxu0 %v3240
        %v3242 = vand.u32 %v541, 4294901760
        %v3243 = vsub.f32 %v541, %v3242
        %3244 = vmatpush.msra.mxu0 %v3243
        %v3245 = vand.u32 %v540, 4294901760
        %v3246 = vsub.f32 %v540, %v3245
        %3247 = vmatpush.msra.mxu0 %v3246
        %v3248 = vand.u32 %v539, 4294901760
        %v3249 = vsub.f32 %v539, %v3248
        %3250 = vmatpush.msra.mxu0 %v3249
        %v3251 = vand.u32 %v538, 4294901760
        %v3252 = vsub.f32 %v538, %v3251
        %3253 = vmatpush.msra.mxu0 %v3252
        %v3254 = vand.u32 %v537, 4294901760
        %v3255 = vsub.f32 %v537, %v3254
        %3256 = vmatpush.msra.mxu0 %v3255
        %v3257 = vand.u32 %v536, 4294901760
        %v3258 = vsub.f32 %v536, %v3257
        %3259 = vmatpush.msra.mxu0 %v3258
        %v3260 = vand.u32 %v535, 4294901760
        %v3261 = vsub.f32 %v535, %v3260
        %3262 = vmatpush.msra.mxu0 %v3261
        %v3263 = vand.u32 %v534, 4294901760
        %v3264 = vsub.f32 %v534, %v3263
        %3265 = vmatpush.msra.mxu0 %v3264
        %v3266 = vand.u32 %v533, 4294901760
        %v3267 = vsub.f32 %v533, %v3266
        %3268 = vmatpush.msra.mxu0 %v3267
        %v3269 = vand.u32 %v532, 4294901760
        %v3270 = vsub.f32 %v532, %v3269
        %3271 = vmatpush.msra.mxu0 %v3270
        %v3272 = vand.u32 %v531, 4294901760
        %v3273 = vsub.f32 %v531, %v3272
        %3274 = vmatpush.msra.mxu0 %v3273
        %v3275 = vand.u32 %v530, 4294901760
        %v3276 = vsub.f32 %v530, %v3275
        %3277 = vmatpush.msra.mxu0 %v3276
        %v3278 = vand.u32 %v529, 4294901760
        %v3279 = vsub.f32 %v529, %v3278
        %3280 = vmatpush.msra.mxu0 %v3279
        %v3281 = vand.u32 %v528, 4294901760
        %v3282 = vsub.f32 %v528, %v3281
        %3283 = vmatpush.msra.mxu0 %v3282
        %v3284 = vand.u32 %v527, 4294901760
        %v3285 = vsub.f32 %v527, %v3284
        %3286 = vmatpush.msra.mxu0 %v3285
        %v3287 = vand.u32 %v3096, 4294901760
        %v3288 = vsub.f32 %v3096, %v3287
        %3289 = vmatmul.f32.gmra.mxu0 %v3288
        %v3290 = vpop.f32.mrf.mxu0
        %v3291 = vadd.f32 %v3237, %v3290
        %3292 = vdwg.mxu0
        %v3293 = vand.u32 %v542, 4294901760
        %3294 = vmatpush.msra.mxu0 %v3293
        %v3295 = vand.u32 %v541, 4294901760
        %3296 = vmatpush.msra.mxu0 %v3295
        %v3297 = vand.u32 %v540, 4294901760
        %3298 = vmatpush.msra.mxu0 %v3297
        %v3299 = vand.u32 %v539, 4294901760
        %3300 = vmatpush.msra.mxu0 %v3299
        %v3301 = vand.u32 %v538, 4294901760
        %3302 = vmatpush.msra.mxu0 %v3301
        %v3303 = vand.u32 %v537, 4294901760
        %3304 = vmatpush.msra.mxu0 %v3303
        %v3305 = vand.u32 %v536, 4294901760
        %3306 = vmatpush.msra.mxu0 %v3305
        %v3307 = vand.u32 %v535, 4294901760
        %3308 = vmatpush.msra.mxu0 %v3307
        %v3309 = vand.u32 %v534, 4294901760
        %3310 = vmatpush.msra.mxu0 %v3309
        %v3311 = vand.u32 %v533, 4294901760
        %3312 = vmatpush.msra.mxu0 %v3311
        %v3313 = vand.u32 %v532, 4294901760
        %3314 = vmatpush.msra.mxu0 %v3313
        %v3315 = vand.u32 %v531, 4294901760
        %3316 = vmatpush.msra.mxu0 %v3315
        %v3317 = vand.u32 %v530, 4294901760
        %3318 = vmatpush.msra.mxu0 %v3317
        %v3319 = vand.u32 %v529, 4294901760
        %3320 = vmatpush.msra.mxu0 %v3319
        %v3321 = vand.u32 %v528, 4294901760
        %3322 = vmatpush.msra.mxu0 %v3321
        %v3323 = vand.u32 %v527, 4294901760
        %3324 = vmatpush.msra.mxu0 %v3323
        %v3325 = vand.u32 %v3096, 4294901760
        %v3326 = vsub.f32 %v3096, %v3325
        %v3327 = vand.u32 %v3326, 4294901760
        %3328 = vmatmul.f32.gmra.mxu0 %v3327
        %v3329 = vpop.f32.mrf.mxu0
        %v3330 = vadd.f32 %v3291, %v3329
        %3331 = vdwg.mxu0
        %v3332 = vand.u32 %v542, 4294901760
        %v3333 = vsub.f32 %v542, %v3332
        %v3334 = vand.u32 %v3333, 4294901760
        %3335 = vmatpush.msra.mxu0 %v3334
        %v3336 = vand.u32 %v541, 4294901760
        %v3337 = vsub.f32 %v541, %v3336
        %v3338 = vand.u32 %v3337, 4294901760
        %3339 = vmatpush.msra.mxu0 %v3338
        %v3340 = vand.u32 %v540, 4294901760
        %v3341 = vsub.f32 %v540, %v3340
        %v3342 = vand.u32 %v3341, 4294901760
        %3343 = vmatpush.msra.mxu0 %v3342
        %v3344 = vand.u32 %v539, 4294901760
        %v3345 = vsub.f32 %v539, %v3344
        %v3346 = vand.u32 %v3345, 4294901760
        %3347 = vmatpush.msra.mxu0 %v3346
        %v3348 = vand.u32 %v538, 4294901760
        %v3349 = vsub.f32 %v538, %v3348
        %v3350 = vand.u32 %v3349, 4294901760
        %3351 = vmatpush.msra.mxu0 %v3350
        %v3352 = vand.u32 %v537, 4294901760
        %v3353 = vsub.f32 %v537, %v3352
        %v3354 = vand.u32 %v3353, 4294901760
        %3355 = vmatpush.msra.mxu0 %v3354
        %v3356 = vand.u32 %v536, 4294901760
        %v3357 = vsub.f32 %v536, %v3356
        %v3358 = vand.u32 %v3357, 4294901760
        %3359 = vmatpush.msra.mxu0 %v3358
        %v3360 = vand.u32 %v535, 4294901760
        %v3361 = vsub.f32 %v535, %v3360
        %v3362 = vand.u32 %v3361, 4294901760
        %3363 = vmatpush.msra.mxu0 %v3362
        %v3364 = vand.u32 %v534, 4294901760
        %v3365 = vsub.f32 %v534, %v3364
        %v3366 = vand.u32 %v3365, 4294901760
        %3367 = vmatpush.msra.mxu0 %v3366
        %v3368 = vand.u32 %v533, 4294901760
        %v3369 = vsub.f32 %v533, %v3368
        %v3370 = vand.u32 %v3369, 4294901760
        %3371 = vmatpush.msra.mxu0 %v3370
        %v3372 = vand.u32 %v532, 4294901760
        %v3373 = vsub.f32 %v532, %v3372
        %v3374 = vand.u32 %v3373, 4294901760
        %3375 = vmatpush.msra.mxu0 %v3374
        %v3376 = vand.u32 %v531, 4294901760
        %v3377 = vsub.f32 %v531, %v3376
        %v3378 = vand.u32 %v3377, 4294901760
        %3379 = vmatpush.msra.mxu0 %v3378
        %v3380 = vand.u32 %v530, 4294901760
        %v3381 = vsub.f32 %v530, %v3380
        %v3382 = vand.u32 %v3381, 4294901760
        %3383 = vmatpush.msra.mxu0 %v3382
        %v3384 = vand.u32 %v529, 4294901760
        %v3385 = vsub.f32 %v529, %v3384
        %v3386 = vand.u32 %v3385, 4294901760
        %3387 = vmatpush.msra.mxu0 %v3386
        %v3388 = vand.u32 %v528, 4294901760
        %v3389 = vsub.f32 %v528, %v3388
        %v3390 = vand.u32 %v3389, 4294901760
        %3391 = vmatpush.msra.mxu0 %v3390
        %v3392 = vand.u32 %v527, 4294901760
        %v3393 = vsub.f32 %v527, %v3392
        %v3394 = vand.u32 %v3393, 4294901760
        %3395 = vmatpush.msra.mxu0 %v3394
        %v3396 = vand.u32 %v3096, 4294901760
        %3397 = vmatmul.f32.gmra.mxu0 %v3396
        %v3398 = vpop.f32.mrf.mxu0
        %v3399 = vadd.f32 %v3330, %v3398
        %3400 = vdwg.mxu0
        %v3401 = vand.u32 %v542, 4294901760
        %3402 = vmatpush.msra.mxu0 %v3401
        %v3403 = vand.u32 %v541, 4294901760
        %3404 = vmatpush.msra.mxu0 %v3403
        %v3405 = vand.u32 %v540, 4294901760
        %3406 = vmatpush.msra.mxu0 %v3405
        %v3407 = vand.u32 %v539, 4294901760
        %3408 = vmatpush.msra.mxu0 %v3407
        %v3409 = vand.u32 %v538, 4294901760
        %3410 = vmatpush.msra.mxu0 %v3409
        %v3411 = vand.u32 %v537, 4294901760
        %3412 = vmatpush.msra.mxu0 %v3411
        %v3413 = vand.u32 %v536, 4294901760
        %3414 = vmatpush.msra.mxu0 %v3413
        %v3415 = vand.u32 %v535, 4294901760
        %3416 = vmatpush.msra.mxu0 %v3415
        %v3417 = vand.u32 %v534, 4294901760
        %3418 = vmatpush.msra.mxu0 %v3417
        %v3419 = vand.u32 %v533, 4294901760
        %3420 = vmatpush.msra.mxu0 %v3419
        %v3421 = vand.u32 %v532, 4294901760
        %3422 = vmatpush.msra.mxu0 %v3421
        %v3423 = vand.u32 %v531, 4294901760
        %3424 = vmatpush.msra.mxu0 %v3423
        %v3425 = vand.u32 %v530, 4294901760
        %3426 = vmatpush.msra.mxu0 %v3425
        %v3427 = vand.u32 %v529, 4294901760
        %3428 = vmatpush.msra.mxu0 %v3427
        %v3429 = vand.u32 %v528, 4294901760
        %3430 = vmatpush.msra.mxu0 %v3429
        %v3431 = vand.u32 %v527, 4294901760
        %3432 = vmatpush.msra.mxu0 %v3431
        %v3433 = vand.u32 %v3096, 4294901760
        %3434 = vmatmul.f32.gmra.mxu0 %v3433
        %v3435 = vpop.f32.mrf.mxu0
        %v3436 = vadd.f32 %v3399, %v3435
        %3437 = vdwg.mxu0
        %v3438 = vmul.f32 %v3436, 0.001953125
        %v3439 = vadd.f32 %v3438, 1e-05
        %v3440 = vrsqrt.pop %v3439
        %v3441 = vmul.f32 %v3440, %v3439
        %v3442 = vmul.f32 %v3441, %v3440
        %v3443 = vmul.f32 0.5, %v3442
        %v3444 = vsub.f32 1.5, %v3443
        %v3445 = vmul.f32 %v3440, %v3444
        %vm3446 = vweird.f32 %v3439
        %vm3447 = vweird.f32 %v3440
        %vm3448 = vmor %vm3446, %vm3447
        %v3449 = vsel %vm3448, %v3440, %v3445
        %v3450 = vperm.slane %v3449, 0
        %v3451 = vmul.f32 %v3089, %v3450
        %v3452 = vmul.f32 %v3451, %v2738
        %v3453 = vadd.f32 %v3452, %v2739
        %s3454 = sld [smem:[#allocation2]]
        %s3455 = sld [smem:[#allocation2 + $0x1]]
        %s3456 = sld [smem:[#allocation2 + $0x2]]
        %s3457 = sld [smem:[#allocation2 + $0x3]]
        %s3458 = sld [smem:[#allocation2 + $0x4]]
        %s3459 = sld [smem:[#allocation2 + $0x5]]
        %s3460 = sld [smem:[#allocation2 + $0x6]]
        %s3461 = sld [smem:[#allocation2 + $0x7]]
        %s3462 = sld [smem:[#allocation2 + $0x8]]
        %s3463 = sld [smem:[#allocation2 + $0x9]]
        %s3464 = sld [smem:[#allocation2 + $0xa]]
        %s3465 = sld [smem:[#allocation2 + $0xb]]
        %v3466 = vmul.f32 %v2737, %v2737
        %v3467 = vmul.f32 %v3453, %v3453
        %v3468 = vadd.f32 %v3466, %v3467
        %vm3469 = vcmp.lt.f32.partialorder %v3468, 1e-18
        %v3470 = vsel %vm3469, 1.0, %v3468
        %v3471 = vrsqrt.pop %v3470
        %v3472 = vmul.f32 %v3471, %v3470
        %v3473 = vmul.f32 %v3472, %v3471
        %v3474 = vmul.f32 0.5, %v3473
        %v3475 = vsub.f32 1.5, %v3474
        %v3476 = vmul.f32 %v3471, %v3475
        %vm3477 = vweird.f32 %v3470
        %vm3478 = vweird.f32 %v3471
        %vm3479 = vmor %vm3477, %vm3478
        %v3480 = vsel %vm3479, %v3471, %v3476
        %v3481 = vmul.f32 %v3468, %v3480
        %v3482 = vmul.f32 %v2737, %v3480
        %v3483 = vsel %vm3469, 1.0, %v3482
        %v3484 = vmul.f32 %v3453, %v3480
        %v3485 = vsel %vm3469, 0.0, %v3484
        %v3486 = vtanh.pop %v3481
        %v3487 = vmul.f32 %v3486, %v3483
        %v3488 = vmul.f32 %v3486, %v3485
        %s3489 = sadd.f32 %s3456, 1.0
        %v3490 = vstv %s3489
        %v3491 = vmul.f32 %v3487, %v3490
        %v3492 = vstv %s3457
        %v3493 = vmul.f32 %v3488, %v3492
        %v3494 = vsub.f32 %v3491, %v3493
        %v3495 = vmul.f32 %v3487, %v3492
        %v3496 = vmul.f32 %v3488, %v3490
        %v3497 = vadd.f32 %v3495, %v3496
        %v3498 = vstv %s3454
        %v3499 = vadd.f32 %v3494, %v3498
        %v3500 = vstv %s3455
        %v3501 = vadd.f32 %v3497, %v3500
        %s3502 = sadd.f32 %s3460, 1.0
        %v3503 = vstv %s3502
        %v3504 = vmul.f32 %v3487, %v3503
        %v3505 = vstv %s3461
        %v3506 = vmul.f32 %v3488, %v3505
        %v3507 = vsub.f32 %v3504, %v3506
        %v3508 = vmul.f32 %v3487, %v3505
        %v3509 = vmul.f32 %v3488, %v3503
        %v3510 = vadd.f32 %v3508, %v3509
        %v3511 = vstv %s3458
        %v3512 = vadd.f32 %v3507, %v3511
        %v3513 = vstv %s3459
        %v3514 = vadd.f32 %v3510, %v3513
        %v3515 = vmul.f32 %v3512, 2.0
        %v3516 = vmul.f32 %v3514, 2.0
        %v3517 = vand.u32 2147483647, %v3515
        %v3518 = vsub.f32 0.0, %v3517
        %v3519 = vmul.f32 %v3518, 1.442695
        %v3520 = vpow.pop %v3519
        %v3521 = vmul.f32 %v3520, %v3520
        %vm3522 = vcmp.ge.f32.partialorder %v3515, 0.0
        %v3523 = vsel %vm3522, 1.0, -1.0
        %v3524 = vsub.f32 1.0, %v3521
        %v3525 = vmul.f32 %v3523, %v3524
        %v3526 = vmul.f32 %v3520, 2.0
        %v3527 = vand.u32 2147483647, %v3516
        %vm3528 = vcmp.le.f32.partialorder %v3527, 0.7853982
        %vm3529 = vcmp.lt.s32.totalorder %v3516, 0
        %v3530 = vand.u32 %v3516, 2139095040
        %v3531 = vshrl.u32 %v3530, 23
        %v3532 = vsub.s32 %v3531, 127
        %v3533 = vand.u32 2147483647, %v3516
        %v3534 = vand.u32 %v3533, 8388607
        %v3535 = vor.u32 %v3534, 8388608
        %v3536 = vsub.s32 0, %v3535
        %v3537 = vadd.s32 %v3532, 1
        %vm3538 = vcmp.gt.s32.totalorder %v3537, 0
        %v3539 = vsel %vm3538, %v3537, 0
        %v3540 = vshrl.u32 %v3539, 5
        %v3541 = vand.u32 %v3539, 31
        %v3542 = vsub.s32 32, %v3541
        %v3543 = vshrl.u32 683565275, %v3542
        %v3544 = vshll.u32 683565275, %v3541
        %v3545 = vshrl.u32 2475754826, %v3542
        %v3546 = vor.u32 %v3544, %v3545
        %v3547 = vshll.u32 2475754826, %v3541
        %v3548 = vshrl.u32 2131351028, %v3542
        %v3549 = vor.u32 %v3547, %v3548
        %v3550 = vshll.u32 2131351028, %v3541
        %v3551 = vshrl.u32 2102212464, %v3542
        %v3552 = vor.u32 %v3550, %v3551
        %v3553 = vshll.u32 2102212464, %v3541
        %v3554 = vshrl.u32 920167782, %v3542
        %v3555 = vor.u32 %v3553, %v3554
        %v3556 = vshll.u32 920167782, %v3541
        %v3557 = vshrl.u32 1326507024, %v3542
        %v3558 = vor.u32 %v3556, %v3557
        %vm3559 = vcmp.lt.s32.totalorder %v3540, 1
        %vm3560 = vcmp.lt.s32.totalorder %v3540, 2
        %vm3561 = vcmp.lt.s32.totalorder %v3540, 3
        %vm3562 = vcmp.lt.s32.totalorder %v3540, 4
        %v3563 = vsel %vm3559, %v3543, %v3546
        %v3564 = vsel %vm3562, %v3552, 2102212464
        %v3565 = vsel %vm3561, %v3549, %v3564
        %v3566 = vsel %vm3560, %v3563, %v3565
        %v3567 = vsel %vm3559, %v3546, %v3549
        %v3568 = vsel %vm3562, %v3555, 920167782
        %v3569 = vsel %vm3561, %v3552, %v3568
        %v3570 = vsel %vm3560, %v3567, %v3569
        %v3571 = vsel %vm3559, %v3549, %v3552
        %v3572 = vsel %vm3562, %v3558, 1326507024
        %v3573 = vsel %vm3561, %v3555, %v3572
        %v3574 = vsel %vm3560, %v3571, %v3573
        %v3575 = vshll.u32 %v3535, 8
        %v3576 = vand.u32 %v3575, 65535
        %v3577 = vshrl.u32 %v3575, 16
        %v3578 = vand.u32 %v3574, 65535
        %v3579 = vshrl.u32 %v3574, 16
        %v3580 = vmul.u32 %v3576, %v3578
        %v3581 = vmul.u32 %v3576, %v3579
        %v3582 = vmul.u32 %v3577, %v3578
        %v3583 = vmul.u32 %v3577, %v3579
        %v3584 = vshll.u32 %v3581, 16
        %v3585 = vshrl.u32 %v3581, 16
        %v3586 = vshll.u32 %v3582, 16
        %v3587 = vshrl.u32 %v3582, 16
        %vm3588 = vc.u32 %v3580, %v3584
        %v3589 = vsel %vm3588, 1, 0
        %v3590 = vadd.s32 %v3580, %v3584
        %v3591 = vadd.s32 %v3583, %v3589
        %vm3592 = vc.u32 %v3590, %v3586
        %v3593 = vsel %vm3592, 1, 0
        %v3594 = vadd.s32 %v3590, %v3586
        %v3595 = vadd.s32 %v3591, %v3593
        %v3596 = vadd.s32 %v3595, %v3585
        %v3597 = vadd.s32 %v3596, %v3587
        %v3598 = vand.u32 %v3575, 65535
        %v3599 = vshrl.u32 %v3575, 16
        %v3600 = vand.u32 %v3570, 65535
        %v3601 = vshrl.u32 %v3570, 16
        %v3602 = vmul.u32 %v3598, %v3600
        %v3603 = vmul.u32 %v3598, %v3601
        %v3604 = vmul.u32 %v3599, %v3600
        %v3605 = vmul.u32 %v3599, %v3601
        %v3606 = vshll.u32 %v3603, 16
        %v3607 = vshrl.u32 %v3603, 16
        %v3608 = vshll.u32 %v3604, 16
        %v3609 = vshrl.u32 %v3604, 16
        %vm3610 = vc.u32 %v3602, %v3606
        %v3611 = vsel %vm3610, 1, 0
        %v3612 = vadd.s32 %v3602, %v3606
        %v3613 = vadd.s32 %v3605, %v3611
        %vm3614 = vc.u32 %v3612, %v3608
        %v3615 = vsel %vm3614, 1, 0
        %v3616 = vadd.s32 %v3612, %v3608
        %v3617 = vadd.s32 %v3613, %v3615
        %v3618 = vadd.s32 %v3617, %v3607
        %v3619 = vadd.s32 %v3618, %v3609
        %v3620 = vmul.u32 %v3575, %v3566
        %v3621 = vadd.s32 %v3597, %v3616
        %vm3622 = vc.u32 %v3597, %v3616
        %v3623 = vadd.s32 %v3619, 1
        %v3624 = vsel %vm3622, %v3623, %v3619
        %v3625 = vadd.s32 %v3620, %v3624
        %v3626 = vadd.s32 %v3625, 536870912
        %v3627 = vshrl.u32 %v3626, 30
        %v3628 = vshll.u32 %v3627, 30
        %v3629 = vsub.s32 %v3625, %v3628
        %vm3630 = vcmp.lt.s32.totalorder %v3629, 0
        %v3631 = vsub.s32 0, %v3629
        %v3632 = vsel %vm3630, %v3631, %v3629
        %v3633 = vclz %v3632
        %v3634 = vsub.s32 %v3633, 2
        %vm3635 = vcmp.gt.s32.totalorder 0, %v3634
        %v3636 = vsel %vm3635, 0, %v3634
        %v3637 = vsub.s32 32, %v3636
        %v3638 = vshll.u32 %v3629, %v3636
        %v3639 = vshrl.u32 %v3621, %v3637
        %v3640 = vor.u32 %v3638, %v3639
        %v3641 = vsub.s32 4294967266, %v3636
        %v3642 = vadd.s32 %v3641, 127
        %v3643 = vshll.u32 %v3642, 23
        %v3644 = vor.u32 4788187, %v3643
        %v3645 = vand.u32 2147483647, %v3644
        %v3647 = vcvt.s32.f32 %v3640
        %v3648 = vmul.f32 %v3647, %v3645
        %v3649 = vxor.u32 %v3648, 2147483648
        %v3650 = vsel %vm3529, %v3649, %v3648
        %v3651 = vsub.s32 4, %v3627
        %v3652 = vsel %vm3529, %v3651, %v3627
        %v3653 = vsel %vm3528, %v3516, %v3650
        %v3654 = vsel %vm3528, 0, %v3652
        %v3655 = vmul.f32 %v3653, %v3653
        %v3656 = vmul.f32 %v3655, -0.001358992
        %v3657 = vadd.f32 %v3656, 0.041655596
        %v3658 = vmul.f32 %v3655, %v3657
        %v3659 = vadd.f32 %v3658, -0.4999988
        %v3660 = vmul.f32 %v3655, %v3659
        %v3661 = vadd.f32 1.0, %v3660
        %v3662 = vmul.f32 %v3653, %v3653
        %v3663 = vmul.f32 %v3662, -0.00019511016
        %v3664 = vadd.f32 %v3663, 0.008332121
        %v3665 = vmul.f32 %v3662, %v3664
        %v3666 = vadd.f32 %v3665, -0.16666654
        %v3667 = vmul.f32 %v3662, %v3666
        %v3668 = vadd.f32 %v3667, 1.0
        %v3669 = vmul.f32 %v3668, %v3653
        %vm3670 = vweird.f32 %v3516
        %v3671 = vadd.s32 %v3654, 3
        %v3672 = vand.u32 %v3671, 3
        %vm3673 = vcmp.lt.s32.totalorder %v3672, 2
        %vm3674 = vcmp.eq.s32.totalorder %v3672, 0
        %v3675 = vxor.u32 %v3669, 2147483648
        %v3676 = vsel %vm3674, %v3661, %v3675
        %vm3677 = vcmp.eq.s32.totalorder %v3672, 2
        %v3678 = vxor.u32 %v3661, 2147483648
        %v3679 = vsel %vm3677, %v3678, %v3669
        %v3680 = vsel %vm3673, %v3676, %v3679
        %v3681 = vsel %vm3670, nan, %v3680
        %v3682 = vmul.f32 %v3526, %v3681
        %v3683 = vadd.f32 %v3521, 1.0
        %v3684 = vand.u32 2147483647, %v3516
        %vm3685 = vcmp.le.f32.partialorder %v3684, 0.7853982
        %vm3686 = vcmp.lt.s32.totalorder %v3516, 0
        %v3687 = vand.u32 %v3516, 2139095040
        %v3688 = vshrl.u32 %v3687, 23
        %v3689 = vsub.s32 %v3688, 127
        %v3690 = vand.u32 2147483647, %v3516
        %v3691 = vand.u32 %v3690, 8388607
        %v3692 = vor.u32 %v3691, 8388608
        %v3693 = vsub.s32 0, %v3692
        %v3694 = vadd.s32 %v3689, 1
        %vm3695 = vcmp.gt.s32.totalorder %v3694, 0
        %v3696 = vsel %vm3695, %v3694, 0
        %v3697 = vshrl.u32 %v3696, 5
        %v3698 = vand.u32 %v3696, 31
        %v3699 = vsub.s32 32, %v3698
        %v3700 = vshrl.u32 683565275, %v3699
        %v3701 = vshll.u32 683565275, %v3698
        %v3702 = vshrl.u32 2475754826, %v3699
        %v3703 = vor.u32 %v3701, %v3702
        %v3704 = vshll.u32 2475754826, %v3698
        %v3705 = vshrl.u32 2131351028, %v3699
        %v3706 = vor.u32 %v3704, %v3705
        %v3707 = vshll.u32 2131351028, %v3698
        %v3708 = vshrl.u32 2102212464, %v3699
        %v3709 = vor.u32 %v3707, %v3708
        %v3710 = vshll.u32 2102212464, %v3698
        %v3711 = vshrl.u32 920167782, %v3699
        %v3712 = vor.u32 %v3710, %v3711
        %v3713 = vshll.u32 920167782, %v3698
        %v3714 = vshrl.u32 1326507024, %v3699
        %v3715 = vor.u32 %v3713, %v3714
        %vm3716 = vcmp.lt.s32.totalorder %v3697, 1
        %vm3717 = vcmp.lt.s32.totalorder %v3697, 2
        %vm3718 = vcmp.lt.s32.totalorder %v3697, 3
        %vm3719 = vcmp.lt.s32.totalorder %v3697, 4
        %v3720 = vsel %vm3716, %v3700, %v3703
        %v3721 = vsel %vm3719, %v3709, 2102212464
        %v3722 = vsel %vm3718, %v3706, %v3721
        %v3723 = vsel %vm3717, %v3720, %v3722
        %v3724 = vsel %vm3716, %v3703, %v3706
        %v3725 = vsel %vm3719, %v3712, 920167782
        %v3726 = vsel %vm3718, %v3709, %v3725
        %v3727 = vsel %vm3717, %v3724, %v3726
        %v3728 = vsel %vm3716, %v3706, %v3709
        %v3729 = vsel %vm3719, %v3715, 1326507024
        %v3730 = vsel %vm3718, %v3712, %v3729
        %v3731 = vsel %vm3717, %v3728, %v3730
        %v3732 = vshll.u32 %v3692, 8
        %v3733 = vand.u32 %v3732, 65535
        %v3734 = vshrl.u32 %v3732, 16
        %v3735 = vand.u32 %v3731, 65535
        %v3736 = vshrl.u32 %v3731, 16
        %v3737 = vmul.u32 %v3733, %v3735
        %v3738 = vmul.u32 %v3733, %v3736
        %v3739 = vmul.u32 %v3734, %v3735
        %v3740 = vmul.u32 %v3734, %v3736
        %v3741 = vshll.u32 %v3738, 16
        %v3742 = vshrl.u32 %v3738, 16
        %v3743 = vshll.u32 %v3739, 16
        %v3744 = vshrl.u32 %v3739, 16
        %vm3745 = vc.u32 %v3737, %v3741
        %v3746 = vsel %vm3745, 1, 0
        %v3747 = vadd.s32 %v3737, %v3741
        %v3748 = vadd.s32 %v3740, %v3746
        %vm3749 = vc.u32 %v3747, %v3743
        %v3750 = vsel %vm3749, 1, 0
        %v3751 = vadd.s32 %v3747, %v3743
        %v3752 = vadd.s32 %v3748, %v3750
        %v3753 = vadd.s32 %v3752, %v3742
        %v3754 = vadd.s32 %v3753, %v3744
        %v3755 = vand.u32 %v3732, 65535
        %v3756 = vshrl.u32 %v3732, 16
        %v3757 = vand.u32 %v3727, 65535
        %v3758 = vshrl.u32 %v3727, 16
        %v3759 = vmul.u32 %v3755, %v3757
        %v3760 = vmul.u32 %v3755, %v3758
        %v3761 = vmul.u32 %v3756, %v3757
        %v3762 = vmul.u32 %v3756, %v3758
        %v3763 = vshll.u32 %v3760, 16
        %v3764 = vshrl.u32 %v3760, 16
        %v3765 = vshll.u32 %v3761, 16
        %v3766 = vshrl.u32 %v3761, 16
        %vm3767 = vc.u32 %v3759, %v3763
        %v3768 = vsel %vm3767, 1, 0
        %v3769 = vadd.s32 %v3759, %v3763
        %v3770 = vadd.s32 %v3762, %v3768
        %vm3771 = vc.u32 %v3769, %v3765
        %v3772 = vsel %vm3771, 1, 0
        %v3773 = vadd.s32 %v3769, %v3765
        %v3774 = vadd.s32 %v3770, %v3772
        %v3775 = vadd.s32 %v3774, %v3764
        %v3776 = vadd.s32 %v3775, %v3766
        %v3777 = vmul.u32 %v3732, %v3723
        %v3778 = vadd.s32 %v3754, %v3773
        %vm3779 = vc.u32 %v3754, %v3773
        %v3780 = vadd.s32 %v3776, 1
        %v3781 = vsel %vm3779, %v3780, %v3776
        %v3782 = vadd.s32 %v3777, %v3781
        %v3783 = vadd.s32 %v3782, 536870912
        %v3784 = vshrl.u32 %v3783, 30
        %v3785 = vshll.u32 %v3784, 30
        %v3786 = vsub.s32 %v3782, %v3785
        %vm3787 = vcmp.lt.s32.totalorder %v3786, 0
        %v3788 = vsub.s32 0, %v3786
        %v3789 = vsel %vm3787, %v3788, %v3786
        %v3790 = vclz %v3789
        %v3791 = vsub.s32 %v3790, 2
        %vm3792 = vcmp.gt.s32.totalorder 0, %v3791
        %v3793 = vsel %vm3792, 0, %v3791
        %v3794 = vsub.s32 32, %v3793
        %v3795 = vshll.u32 %v3786, %v3793
        %v3796 = vshrl.u32 %v3778, %v3794
        %v3797 = vor.u32 %v3795, %v3796
        %v3798 = vsub.s32 4294967266, %v3793
        %v3799 = vadd.s32 %v3798, 127
        %v3800 = vshll.u32 %v3799, 23
        %v3801 = vor.u32 4788187, %v3800
        %v3802 = vand.u32 2147483647, %v3801
        %v3804 = vcvt.s32.f32 %v3797
        %v3805 = vmul.f32 %v3804, %v3802
        %v3806 = vxor.u32 %v3805, 2147483648
        %v3807 = vsel %vm3686, %v3806, %v3805
        %v3808 = vsub.s32 4, %v3784
        %v3809 = vsel %vm3686, %v3808, %v3784
        %v3810 = vsel %vm3685, %v3516, %v3807
        %v3811 = vsel %vm3685, 0, %v3809
        %v3812 = vmul.f32 %v3810, %v3810
        %v3813 = vmul.f32 %v3812, -0.001358992
        %v3814 = vadd.f32 %v3813, 0.041655596
        %v3815 = vmul.f32 %v3812, %v3814
        %v3816 = vadd.f32 %v3815, -0.4999988
        %v3817 = vmul.f32 %v3812, %v3816
        %v3818 = vadd.f32 1.0, %v3817
        %v3819 = vmul.f32 %v3810, %v3810
        %v3820 = vmul.f32 %v3819, -0.00019511016
        %v3821 = vadd.f32 %v3820, 0.008332121
        %v3822 = vmul.f32 %v3819, %v3821
        %v3823 = vadd.f32 %v3822, -0.16666654
        %v3824 = vmul.f32 %v3819, %v3823
        %v3825 = vadd.f32 %v3824, 1.0
        %v3826 = vmul.f32 %v3825, %v3810
        %vm3827 = vweird.f32 %v3516
        %v3828 = vand.u32 %v3811, 3
        %vm3829 = vcmp.lt.s32.totalorder %v3828, 2
        %vm3830 = vcmp.eq.s32.totalorder %v3828, 0
        %v3831 = vxor.u32 %v3826, 2147483648
        %v3832 = vsel %vm3830, %v3818, %v3831
        %vm3833 = vcmp.eq.s32.totalorder %v3828, 2
        %v3834 = vxor.u32 %v3818, 2147483648
        %v3835 = vsel %vm3833, %v3834, %v3826
        %v3836 = vsel %vm3829, %v3832, %v3835
        %v3837 = vsel %vm3827, nan, %v3836
        %v3838 = vmul.f32 %v3526, %v3837
        %v3839 = vadd.f32 %v3683, %v3838
        %v3840 = vrcp.pop %v3839
        %v3841 = vmul.f32 %v3839, %v3840
        %v3842 = vsub.f32 1.0, %v3841
        %v3843 = vmul.f32 %v3840, %v3842
        %v3844 = vadd.f32 %v3840, %v3843
        %vm3845 = vweird.f32 %v3839
        %vm3846 = vweird.f32 %v3840
        %vm3847 = vmor %vm3845, %vm3846
        %v3848 = vsel %vm3847, %v3840, %v3844
        %v3849 = vand.u32 2147483647, %v3839
        %vm3850 = vcmp.eq.f32.partialorder %v3849, 8.507059e+37
        %v3851 = vand.u32 %v3839, 2147483648
        %v3852 = vor.u32 1.1754944e-38, %v3851
        %v3853 = vsel %vm3850, %v3852, %v3848
        %v3854 = vmul.f32 1.0, %v3853
        %v3855 = vmul.f32 %v3525, %v3854
        %v3856 = vmul.f32 %v3682, %v3854
        %v3857 = vmul.f32 %v3499, %v3855
        %v3858 = vmul.f32 %v3501, %v3856
        %v3859 = vsub.f32 %v3857, %v3858
        %v3860 = vmul.f32 %v3499, %v3856
        %v3861 = vmul.f32 %v3501, %v3855
        %v3862 = vadd.f32 %v3860, %v3861
        %v3863 = vstv %s3462
        %v3864 = vmul.f32 %v3859, %v3863
        %v3865 = vstv %s3463
        %v3866 = vmul.f32 %v3862, %v3865
        %v3867 = vsub.f32 %v3864, %v3866
        %v3868 = vmul.f32 %v3859, %v3865
        %v3869 = vmul.f32 %v3862, %v3863
        %v3870 = vadd.f32 %v3868, %v3869
        %v3871 = vmul.f32 %v3487, 2.0
        %v3872 = vmul.f32 %v3488, 2.0
        %v3873 = vand.u32 2147483647, %v3871
        %v3874 = vsub.f32 0.0, %v3873
        %v3875 = vmul.f32 %v3874, 1.442695
        %v3876 = vpow.pop %v3875
        %v3877 = vmul.f32 %v3876, %v3876
        %vm3878 = vcmp.ge.f32.partialorder %v3871, 0.0
        %v3879 = vsel %vm3878, 1.0, -1.0
        %v3880 = vsub.f32 1.0, %v3877
        %v3881 = vmul.f32 %v3879, %v3880
        %v3882 = vmul.f32 %v3876, 2.0
        %v3883 = vand.u32 2147483647, %v3872
        %vm3884 = vcmp.le.f32.partialorder %v3883, 0.7853982
        %vm3885 = vcmp.lt.s32.totalorder %v3872, 0
        %v3886 = vand.u32 %v3872, 2139095040
        %v3887 = vshrl.u32 %v3886, 23
        %v3888 = vsub.s32 %v3887, 127
        %v3889 = vand.u32 2147483647, %v3872
        %v3890 = vand.u32 %v3889, 8388607
        %v3891 = vor.u32 %v3890, 8388608
        %v3892 = vsub.s32 0, %v3891
        %v3893 = vadd.s32 %v3888, 1
        %vm3894 = vcmp.gt.s32.totalorder %v3893, 0
        %v3895 = vsel %vm3894, %v3893, 0
        %v3896 = vshrl.u32 %v3895, 5
        %v3897 = vand.u32 %v3895, 31
        %v3898 = vsub.s32 32, %v3897
        %v3899 = vshrl.u32 683565275, %v3898
        %v3900 = vshll.u32 683565275, %v3897
        %v3901 = vshrl.u32 2475754826, %v3898
        %v3902 = vor.u32 %v3900, %v3901
        %v3903 = vshll.u32 2475754826, %v3897
        %v3904 = vshrl.u32 2131351028, %v3898
        %v3905 = vor.u32 %v3903, %v3904
        %v3906 = vshll.u32 2131351028, %v3897
        %v3907 = vshrl.u32 2102212464, %v3898
        %v3908 = vor.u32 %v3906, %v3907
        %v3909 = vshll.u32 2102212464, %v3897
        %v3910 = vshrl.u32 920167782, %v3898
        %v3911 = vor.u32 %v3909, %v3910
        %v3912 = vshll.u32 920167782, %v3897
        %v3913 = vshrl.u32 1326507024, %v3898
        %v3914 = vor.u32 %v3912, %v3913
        %vm3915 = vcmp.lt.s32.totalorder %v3896, 1
        %vm3916 = vcmp.lt.s32.totalorder %v3896, 2
        %vm3917 = vcmp.lt.s32.totalorder %v3896, 3
        %vm3918 = vcmp.lt.s32.totalorder %v3896, 4
        %v3919 = vsel %vm3915, %v3899, %v3902
        %v3920 = vsel %vm3918, %v3908, 2102212464
        %v3921 = vsel %vm3917, %v3905, %v3920
        %v3922 = vsel %vm3916, %v3919, %v3921
        %v3923 = vsel %vm3915, %v3902, %v3905
        %v3924 = vsel %vm3918, %v3911, 920167782
        %v3925 = vsel %vm3917, %v3908, %v3924
        %v3926 = vsel %vm3916, %v3923, %v3925
        %v3927 = vsel %vm3915, %v3905, %v3908
        %v3928 = vsel %vm3918, %v3914, 1326507024
        %v3929 = vsel %vm3917, %v3911, %v3928
        %v3930 = vsel %vm3916, %v3927, %v3929
        %v3931 = vshll.u32 %v3891, 8
        %v3932 = vand.u32 %v3931, 65535
        %v3933 = vshrl.u32 %v3931, 16
        %v3934 = vand.u32 %v3930, 65535
        %v3935 = vshrl.u32 %v3930, 16
        %v3936 = vmul.u32 %v3932, %v3934
        %v3937 = vmul.u32 %v3932, %v3935
        %v3938 = vmul.u32 %v3933, %v3934
        %v3939 = vmul.u32 %v3933, %v3935
        %v3940 = vshll.u32 %v3937, 16
        %v3941 = vshrl.u32 %v3937, 16
        %v3942 = vshll.u32 %v3938, 16
        %v3943 = vshrl.u32 %v3938, 16
        %vm3944 = vc.u32 %v3936, %v3940
        %v3945 = vsel %vm3944, 1, 0
        %v3946 = vadd.s32 %v3936, %v3940
        %v3947 = vadd.s32 %v3939, %v3945
        %vm3948 = vc.u32 %v3946, %v3942
        %v3949 = vsel %vm3948, 1, 0
        %v3950 = vadd.s32 %v3946, %v3942
        %v3951 = vadd.s32 %v3947, %v3949
        %v3952 = vadd.s32 %v3951, %v3941
        %v3953 = vadd.s32 %v3952, %v3943
        %v3954 = vand.u32 %v3931, 65535
        %v3955 = vshrl.u32 %v3931, 16
        %v3956 = vand.u32 %v3926, 65535
        %v3957 = vshrl.u32 %v3926, 16
        %v3958 = vmul.u32 %v3954, %v3956
        %v3959 = vmul.u32 %v3954, %v3957
        %v3960 = vmul.u32 %v3955, %v3956
        %v3961 = vmul.u32 %v3955, %v3957
        %v3962 = vshll.u32 %v3959, 16
        %v3963 = vshrl.u32 %v3959, 16
        %v3964 = vshll.u32 %v3960, 16
        %v3965 = vshrl.u32 %v3960, 16
        %vm3966 = vc.u32 %v3958, %v3962
        %v3967 = vsel %vm3966, 1, 0
        %v3968 = vadd.s32 %v3958, %v3962
        %v3969 = vadd.s32 %v3961, %v3967
        %vm3970 = vc.u32 %v3968, %v3964
        %v3971 = vsel %vm3970, 1, 0
        %v3972 = vadd.s32 %v3968, %v3964
        %v3973 = vadd.s32 %v3969, %v3971
        %v3974 = vadd.s32 %v3973, %v3963
        %v3975 = vadd.s32 %v3974, %v3965
        %v3976 = vmul.u32 %v3931, %v3922
        %v3977 = vadd.s32 %v3953, %v3972
        %vm3978 = vc.u32 %v3953, %v3972
        %v3979 = vadd.s32 %v3975, 1
        %v3980 = vsel %vm3978, %v3979, %v3975
        %v3981 = vadd.s32 %v3976, %v3980
        %v3982 = vadd.s32 %v3981, 536870912
        %v3983 = vshrl.u32 %v3982, 30
        %v3984 = vshll.u32 %v3983, 30
        %v3985 = vsub.s32 %v3981, %v3984
        %vm3986 = vcmp.lt.s32.totalorder %v3985, 0
        %v3987 = vsub.s32 0, %v3985
        %v3988 = vsel %vm3986, %v3987, %v3985
        %v3989 = vclz %v3988
        %v3990 = vsub.s32 %v3989, 2
        %vm3991 = vcmp.gt.s32.totalorder 0, %v3990
        %v3992 = vsel %vm3991, 0, %v3990
        %v3993 = vsub.s32 32, %v3992
        %v3994 = vshll.u32 %v3985, %v3992
        %v3995 = vshrl.u32 %v3977, %v3993
        %v3996 = vor.u32 %v3994, %v3995
        %v3997 = vsub.s32 4294967266, %v3992
        %v3998 = vadd.s32 %v3997, 127
        %v3999 = vshll.u32 %v3998, 23
        %v4000 = vor.u32 4788187, %v3999
        %v4001 = vand.u32 2147483647, %v4000
        %v4003 = vcvt.s32.f32 %v3996
        %v4004 = vmul.f32 %v4003, %v4001
        %v4005 = vxor.u32 %v4004, 2147483648
        %v4006 = vsel %vm3885, %v4005, %v4004
        %v4007 = vsub.s32 4, %v3983
        %v4008 = vsel %vm3885, %v4007, %v3983
        %v4009 = vsel %vm3884, %v3872, %v4006
        %v4010 = vsel %vm3884, 0, %v4008
        %v4011 = vmul.f32 %v4009, %v4009
        %v4012 = vmul.f32 %v4011, -0.001358992
        %v4013 = vadd.f32 %v4012, 0.041655596
        %v4014 = vmul.f32 %v4011, %v4013
        %v4015 = vadd.f32 %v4014, -0.4999988
        %v4016 = vmul.f32 %v4011, %v4015
        %v4017 = vadd.f32 1.0, %v4016
        %v4018 = vmul.f32 %v4009, %v4009
        %v4019 = vmul.f32 %v4018, -0.00019511016
        %v4020 = vadd.f32 %v4019, 0.008332121
        %v4021 = vmul.f32 %v4018, %v4020
        %v4022 = vadd.f32 %v4021, -0.16666654
        %v4023 = vmul.f32 %v4018, %v4022
        %v4024 = vadd.f32 %v4023, 1.0
        %v4025 = vmul.f32 %v4024, %v4009
        %vm4026 = vweird.f32 %v3872
        %v4027 = vadd.s32 %v4010, 3
        %v4028 = vand.u32 %v4027, 3
        %vm4029 = vcmp.lt.s32.totalorder %v4028, 2
        %vm4030 = vcmp.eq.s32.totalorder %v4028, 0
        %v4031 = vxor.u32 %v4025, 2147483648
        %v4032 = vsel %vm4030, %v4017, %v4031
        %vm4033 = vcmp.eq.s32.totalorder %v4028, 2
        %v4034 = vxor.u32 %v4017, 2147483648
        %v4035 = vsel %vm4033, %v4034, %v4025
        %v4036 = vsel %vm4029, %v4032, %v4035
        %v4037 = vsel %vm4026, nan, %v4036
        %v4038 = vmul.f32 %v3882, %v4037
        %v4039 = vadd.f32 %v3877, 1.0
        %v4040 = vand.u32 2147483647, %v3872
        %vm4041 = vcmp.le.f32.partialorder %v4040, 0.7853982
        %vm4042 = vcmp.lt.s32.totalorder %v3872, 0
        %v4043 = vand.u32 %v3872, 2139095040
        %v4044 = vshrl.u32 %v4043, 23
        %v4045 = vsub.s32 %v4044, 127
        %v4046 = vand.u32 2147483647, %v3872
        %v4047 = vand.u32 %v4046, 8388607
        %v4048 = vor.u32 %v4047, 8388608
        %v4049 = vsub.s32 0, %v4048
        %v4050 = vadd.s32 %v4045, 1
        %vm4051 = vcmp.gt.s32.totalorder %v4050, 0
        %v4052 = vsel %vm4051, %v4050, 0
        %v4053 = vshrl.u32 %v4052, 5
        %v4054 = vand.u32 %v4052, 31
        %v4055 = vsub.s32 32, %v4054
        %v4056 = vshrl.u32 683565275, %v4055
        %v4057 = vshll.u32 683565275, %v4054
        %v4058 = vshrl.u32 2475754826, %v4055
        %v4059 = vor.u32 %v4057, %v4058
        %v4060 = vshll.u32 2475754826, %v4054
        %v4061 = vshrl.u32 2131351028, %v4055
        %v4062 = vor.u32 %v4060, %v4061
        %v4063 = vshll.u32 2131351028, %v4054
        %v4064 = vshrl.u32 2102212464, %v4055
        %v4065 = vor.u32 %v4063, %v4064
        %v4066 = vshll.u32 2102212464, %v4054
        %v4067 = vshrl.u32 920167782, %v4055
        %v4068 = vor.u32 %v4066, %v4067
        %v4069 = vshll.u32 920167782, %v4054
        %v4070 = vshrl.u32 1326507024, %v4055
        %v4071 = vor.u32 %v4069, %v4070
        %vm4072 = vcmp.lt.s32.totalorder %v4053, 1
        %vm4073 = vcmp.lt.s32.totalorder %v4053, 2
        %vm4074 = vcmp.lt.s32.totalorder %v4053, 3
        %vm4075 = vcmp.lt.s32.totalorder %v4053, 4
        %v4076 = vsel %vm4072, %v4056, %v4059
        %v4077 = vsel %vm4075, %v4065, 2102212464
        %v4078 = vsel %vm4074, %v4062, %v4077
        %v4079 = vsel %vm4073, %v4076, %v4078
        %v4080 = vsel %vm4072, %v4059, %v4062
        %v4081 = vsel %vm4075, %v4068, 920167782
        %v4082 = vsel %vm4074, %v4065, %v4081
        %v4083 = vsel %vm4073, %v4080, %v4082
        %v4084 = vsel %vm4072, %v4062, %v4065
        %v4085 = vsel %vm4075, %v4071, 1326507024
        %v4086 = vsel %vm4074, %v4068, %v4085
        %v4087 = vsel %vm4073, %v4084, %v4086
        %v4088 = vshll.u32 %v4048, 8
        %v4089 = vand.u32 %v4088, 65535
        %v4090 = vshrl.u32 %v4088, 16
        %v4091 = vand.u32 %v4087, 65535
        %v4092 = vshrl.u32 %v4087, 16
        %v4093 = vmul.u32 %v4089, %v4091
        %v4094 = vmul.u32 %v4089, %v4092
        %v4095 = vmul.u32 %v4090, %v4091
        %v4096 = vmul.u32 %v4090, %v4092
        %v4097 = vshll.u32 %v4094, 16
        %v4098 = vshrl.u32 %v4094, 16
        %v4099 = vshll.u32 %v4095, 16
        %v4100 = vshrl.u32 %v4095, 16
        %vm4101 = vc.u32 %v4093, %v4097
        %v4102 = vsel %vm4101, 1, 0
        %v4103 = vadd.s32 %v4093, %v4097
        %v4104 = vadd.s32 %v4096, %v4102
        %vm4105 = vc.u32 %v4103, %v4099
        %v4106 = vsel %vm4105, 1, 0
        %v4107 = vadd.s32 %v4103, %v4099
        %v4108 = vadd.s32 %v4104, %v4106
        %v4109 = vadd.s32 %v4108, %v4098
        %v4110 = vadd.s32 %v4109, %v4100
        %v4111 = vand.u32 %v4088, 65535
        %v4112 = vshrl.u32 %v4088, 16
        %v4113 = vand.u32 %v4083, 65535
        %v4114 = vshrl.u32 %v4083, 16
        %v4115 = vmul.u32 %v4111, %v4113
        %v4116 = vmul.u32 %v4111, %v4114
        %v4117 = vmul.u32 %v4112, %v4113
        %v4118 = vmul.u32 %v4112, %v4114
        %v4119 = vshll.u32 %v4116, 16
        %v4120 = vshrl.u32 %v4116, 16
        %v4121 = vshll.u32 %v4117, 16
        %v4122 = vshrl.u32 %v4117, 16
        %vm4123 = vc.u32 %v4115, %v4119
        %v4124 = vsel %vm4123, 1, 0
        %v4125 = vadd.s32 %v4115, %v4119
        %v4126 = vadd.s32 %v4118, %v4124
        %vm4127 = vc.u32 %v4125, %v4121
        %v4128 = vsel %vm4127, 1, 0
        %v4129 = vadd.s32 %v4125, %v4121
        %v4130 = vadd.s32 %v4126, %v4128
        %v4131 = vadd.s32 %v4130, %v4120
        %v4132 = vadd.s32 %v4131, %v4122
        %v4133 = vmul.u32 %v4088, %v4079
        %v4134 = vadd.s32 %v4110, %v4129
        %vm4135 = vc.u32 %v4110, %v4129
        %v4136 = vadd.s32 %v4132, 1
        %v4137 = vsel %vm4135, %v4136, %v4132
        %v4138 = vadd.s32 %v4133, %v4137
        %v4139 = vadd.s32 %v4138, 536870912
        %v4140 = vshrl.u32 %v4139, 30
        %v4141 = vshll.u32 %v4140, 30
        %v4142 = vsub.s32 %v4138, %v4141
        %vm4143 = vcmp.lt.s32.totalorder %v4142, 0
        %v4144 = vsub.s32 0, %v4142
        %v4145 = vsel %vm4143, %v4144, %v4142
        %v4146 = vclz %v4145
        %v4147 = vsub.s32 %v4146, 2
        %vm4148 = vcmp.gt.s32.totalorder 0, %v4147
        %v4149 = vsel %vm4148, 0, %v4147
        %v4150 = vsub.s32 32, %v4149
        %v4151 = vshll.u32 %v4142, %v4149
        %v4152 = vshrl.u32 %v4134, %v4150
        %v4153 = vor.u32 %v4151, %v4152
        %v4154 = vsub.s32 4294967266, %v4149
        %v4155 = vadd.s32 %v4154, 127
        %v4156 = vshll.u32 %v4155, 23
        %v4157 = vor.u32 4788187, %v4156
        %v4158 = vand.u32 2147483647, %v4157
        %v4160 = vcvt.s32.f32 %v4153
        %v4161 = vmul.f32 %v4160, %v4158
        %v4162 = vxor.u32 %v4161, 2147483648
        %v4163 = vsel %vm4042, %v4162, %v4161
        %v4164 = vsub.s32 4, %v4140
        %v4165 = vsel %vm4042, %v4164, %v4140
        %v4166 = vsel %vm4041, %v3872, %v4163
        %v4167 = vsel %vm4041, 0, %v4165
        %v4168 = vmul.f32 %v4166, %v4166
        %v4169 = vmul.f32 %v4168, -0.001358992
        %v4170 = vadd.f32 %v4169, 0.041655596
        %v4171 = vmul.f32 %v4168, %v4170
        %v4172 = vadd.f32 %v4171, -0.4999988
        %v4173 = vmul.f32 %v4168, %v4172
        %v4174 = vadd.f32 1.0, %v4173
        %v4175 = vmul.f32 %v4166, %v4166
        %v4176 = vmul.f32 %v4175, -0.00019511016
        %v4177 = vadd.f32 %v4176, 0.008332121
        %v4178 = vmul.f32 %v4175, %v4177
        %v4179 = vadd.f32 %v4178, -0.16666654
        %v4180 = vmul.f32 %v4175, %v4179
        %v4181 = vadd.f32 %v4180, 1.0
        %v4182 = vmul.f32 %v4181, %v4166
        %vm4183 = vweird.f32 %v3872
        %v4184 = vand.u32 %v4167, 3
        %vm4185 = vcmp.lt.s32.totalorder %v4184, 2
        %vm4186 = vcmp.eq.s32.totalorder %v4184, 0
        %v4187 = vxor.u32 %v4182, 2147483648
        %v4188 = vsel %vm4186, %v4174, %v4187
        %vm4189 = vcmp.eq.s32.totalorder %v4184, 2
        %v4190 = vxor.u32 %v4174, 2147483648
        %v4191 = vsel %vm4189, %v4190, %v4182
        %v4192 = vsel %vm4185, %v4188, %v4191
        %v4193 = vsel %vm4183, nan, %v4192
        %v4194 = vmul.f32 %v3882, %v4193
        %v4195 = vadd.f32 %v4039, %v4194
        %v4196 = vrcp.pop %v4195
        %v4197 = vmul.f32 %v4195, %v4196
        %v4198 = vsub.f32 1.0, %v4197
        %v4199 = vmul.f32 %v4196, %v4198
        %v4200 = vadd.f32 %v4196, %v4199
        %vm4201 = vweird.f32 %v4195
        %vm4202 = vweird.f32 %v4196
        %vm4203 = vmor %vm4201, %vm4202
        %v4204 = vsel %vm4203, %v4196, %v4200
        %v4205 = vand.u32 2147483647, %v4195
        %vm4206 = vcmp.eq.f32.partialorder %v4205, 8.507059e+37
        %v4207 = vand.u32 %v4195, 2147483648
        %v4208 = vor.u32 1.1754944e-38, %v4207
        %v4209 = vsel %vm4206, %v4208, %v4204
        %v4210 = vmul.f32 1.0, %v4209
        %v4211 = vmul.f32 %v3881, %v4210
        %v4212 = vmul.f32 %v4038, %v4210
        %v4213 = vstv %s3464
        %v4214 = vmul.f32 %v4211, %v4213
        %v4215 = vstv %s3465
        %v4216 = vmul.f32 %v4212, %v4215
        %v4217 = vsub.f32 %v4214, %v4216
        %v4218 = vmul.f32 %v4211, %v4215
        %v4219 = vmul.f32 %v4212, %v4213
        %v4220 = vadd.f32 %v4218, %v4219
        %v4221 = vadd.f32 %v4217, 1.0
        %v4222 = vmul.f32 %v3487, %v4221
        %v4223 = vmul.f32 %v3488, %v4220
        %v4224 = vsub.f32 %v4222, %v4223
        %v4225 = vmul.f32 %v3487, %v4220
        %v4226 = vmul.f32 %v3488, %v4221
        %v4227 = vadd.f32 %v4225, %v4226
        %v4228 = vadd.f32 %v4224, %v3867
        %v4229 = vadd.f32 %v4227, %v3870
        %v4230 = vmul.f32 %v4228, %v4228
        %v4231 = vmul.f32 %v4229, %v4229
        %v4232 = vadd.f32 %v4230, %v4231
        %vm4233 = vcmp.lt.f32.partialorder %v4232, 1e-18
        %v4234 = vsel %vm4233, 1.0, %v4232
        %v4235 = vrsqrt.pop %v4234
        %v4236 = vmul.f32 %v4235, %v4234
        %v4237 = vmul.f32 %v4236, %v4235
        %v4238 = vmul.f32 0.5, %v4237
        %v4239 = vsub.f32 1.5, %v4238
        %v4240 = vmul.f32 %v4235, %v4239
        %vm4241 = vweird.f32 %v4234
        %vm4242 = vweird.f32 %v4235
        %vm4243 = vmor %vm4241, %vm4242
        %v4244 = vsel %vm4243, %v4235, %v4240
        %v4245 = vmul.f32 %v4232, %v4244
        %v4246 = vmul.f32 %v4228, %v4244
        %v4247 = vsel %vm4233, 1.0, %v4246
        %v4248 = vmul.f32 %v4229, %v4244
        %v4249 = vsel %vm4233, 0.0, %v4248
        %v4250 = vtanh.pop %v4245
        %v4251 = vmul.f32 %v4250, %v4247
        %v4252 = vmul.f32 %v4250, %v4249
        %4253 = vst [vmem:[%s513] sm:$0xff] %v4251
        %4254 = vst [vmem:[%s517] sm:$0xff] %v4252
        %p4255 = scmp.lt.s32.totalorder %s28, 1
        %s4256 = scalar_select %p4255, %s28, 1
        %s4257 = smul.addr %s4256, 8
        %s4258 = scalar_lea.vmem %s14, %s4257
        %p4259 = scmp.lt.s32.totalorder %s28, 1
        %s4260 = scalar_select %p4259, %s28, 1
        %s4261 = smul.addr %s4260, 8
        %s4262 = scalar_lea.vmem %s15, %s4261
        // Predicated region
        $region81: #{rg_aeg_block_forward.1} parent=75 // pred_check
          %p4263 = pneg %p345
        $region82: #{rg_aeg_block_forward.1} parent=75 // pred_check_branch
          %4265 = sbr.rel (%p4263) target = $region84
        $region83: #{rg_aeg_block_forward.1} parent=75 // pred_region
          _
        $region84: #{rg_aeg_block_forward.1} parent=75 // pred_fallthru
          _
        // Predicated region
        $region85: #{rg_aeg_block_forward.1} parent=75 // pred_check
          %p4266 = pneg %p371
        $region86: #{rg_aeg_block_forward.1} parent=75 // pred_check_branch
          %4268 = sbr.rel (%p4266) target = $region88
        $region87: #{rg_aeg_block_forward.1} parent=75 // pred_region
          _
        $region88: #{rg_aeg_block_forward.1} parent=75 // pred_fallthru
          _
      $region76: #{rg_aeg_block_forward.1} parent=5 // pred_fallthru
        _
      %p4269 = scmp.le.s32.totalorder 2, %s23
      // Predicated region
      $region89: #{rg_aeg_block_forward.1} parent=5 // pred_check
        %p4270 = pneg %p4269
      $region90: #{rg_aeg_block_forward.1} parent=5 // pred_check_branch
        %4272 = sbr.rel (%p4270) target = $region92
      $region91: #{rg_aeg_block_forward.1} parent=5 // pred_region
        %s4273 = ssub.s32 %s23, 2
        // Predicated region
        $region93: #{rg_aeg_block_forward.1} parent=91 // pred_check
          %p4274 = pneg %p351
        $region94: #{rg_aeg_block_forward.1} parent=91 // pred_check_branch
          %4276 = sbr.rel (%p4274) target = $region96
        $region95: #{rg_aeg_block_forward.1} parent=91 // pred_region
          %p4277 = scmp.lt.s32.totalorder %s29, 1
          %s4278 = scalar_select %p4277, %s29, 1
          %s4279 = smul.addr %s4278, 8
          %s4280 = scalar_lea.vmem %s14, %s4279
        $region96: #{rg_aeg_block_forward.1} parent=91 // pred_fallthru
          _
        // Predicated region
        $region97: #{rg_aeg_block_forward.1} parent=91 // pred_check
          %p4281 = pneg %p377
        $region98: #{rg_aeg_block_forward.1} parent=91 // pred_check_branch
          %4283 = sbr.rel (%p4281) target = $region100
        $region99: #{rg_aeg_block_forward.1} parent=91 // pred_region
          %p4284 = scmp.lt.s32.totalorder %s29, 1
          %s4285 = scalar_select %p4284, %s29, 1
          %s4286 = smul.addr %s4285, 8
          %s4287 = scalar_lea.vmem %s15, %s4286
        $region100: #{rg_aeg_block_forward.1} parent=91 // pred_fallthru
          _
      $region92: #{rg_aeg_block_forward.1} parent=5 // pred_fallthru
        _
    $region6: #{rg_aeg_block_forward.1} parent=1 // loop_footer
      %s27 = sadd.s32 1, %s23
    $region7: #{rg_aeg_block_forward.1} parent=1 // loop_footer_branch
      %22 = sbr.rel target = $region3
    $region8: #{rg_aeg_block_forward.1} parent=1 // loop_exit
      _
    %4288 = vsyncpa [#allocation3], 1
    %s4289 = scalar_lea.sflag [#allocation3], 1
    %4290 = vsyncpa %s4289, 1

</llo_original>
